<compile_context>
chip_gen: v6e
topology: v6e:2x2x1
jax: 0.10.0
libtpu: 0.0.40
codegen_flags: <defaults>
</compile_context>

<pallas_src>
import functools
import math

import jax
import jax.numpy as jnp
from jax import lax
from jax.experimental import pallas as pl
from jax.experimental.pallas import tpu as pltpu


# ----------------------------------------------------------------------------
# Row-phase (sub-pixel) tap sets for the H dimension of the transposed conv.
# For output row oy = qy*S + ry, only kernel rows ky with (oy + P - ky) % S == 0
# contribute; in "flipped kernel" coordinates dy = K-1-ky that is
# dy ≡ (pe - ry) (mod S), and the contributing input row is qy + rowrel where
# rowrel = (ry + dy - pe) / S  (exact integer).   pe = K - 1 - P.
# ----------------------------------------------------------------------------
def _phase_taps(K, padding, stride):
    pe = K - 1 - padding
    phases = []
    for ry in range(stride):
        m = (pe - ry) % stride
        taps = []
        for dy in range(m, K, stride):
            rowrel = (ry + dy - pe) // stride   # exact by construction
            taps.append((dy, rowrel))
        phases.append(tuple(taps))
    return tuple(phases)


# ----------------------------------------------------------------------------
# Fused kernel: per sample, for each output row phase:
#   depthwise stride-1 correlation (ceil(K/S) row taps x K col taps, VALU FMAs
#   on contiguous lane slices of the W-dilated, H-original-resolution input)
#   -> 1x1 pointwise conv as a (C_out, C) @ (C, L) MXU matmul
#   -> rows scattered to their interleaved positions in the padded output.
# ----------------------------------------------------------------------------
def _make_fused_kernel(phases, K, S, Hq, Wd, W_out, L, pad_top, C, C_out):
    def kernel(x_ref, w_ref, pw_ref, b_ref, o_ref):
        # x_ref : (1, C, Hpad*Wd)     flattened input, row stride Wd
        # w_ref : (C, K*K)            spatially flipped depthwise taps
        # pw_ref: (C_out, C)          pointwise 1x1 weights
        # b_ref : (C_out, 1)          fused bias (pw_w @ dw_b + pw_b)
        # o_ref : (1, C_out, Hq*S, Wd) row-interleaved padded output
        w_all = w_ref[...]            # hoisted: single load of all taps
        pw = pw_ref[...]
        b = b_ref[...]

        for ry, taps in enumerate(phases):            # static loop over phases
            acc = None
            for (dy, rowrel) in taps:                 # ceil(K/S) row taps
                base = (rowrel + pad_top) * Wd
                for dx in range(K):                   # K column taps (W dilated)
                    off = base + dx                   # static lane offset
                    idx = dy * K + dx
                    term = x_ref[0, :, off:off + L] * w_all[:, idx:idx + 1]
                    acc = term if acc is None else acc + term
            if acc is None:                           # stride > K: bias-only rows
                acc = jnp.zeros((C, L), jnp.float32)

            # 1x1 pointwise conv == channel matmul on the MXU (f32 accumulate)
            y = jnp.dot(pw, acc, preferred_element_type=jnp.float32) + b

            # Scatter this phase's rows to their interleaved output rows.
            for qy in range(Hq):
                o_ref[0, :, qy * S + ry, 0:W_out] = y[:, qy * Wd:qy * Wd + W_out]

    return kernel


# ----------------------------------------------------------------------------
# Wrapper: ConvTranspose2d(groups=C) -> 1x1 Conv2d, fused into one pallas_call.
# ----------------------------------------------------------------------------
def dsc_conv_transpose2d(x, params, *, kernel_size, padding, stride):
    dw_w, dw_b = params["dw_w"], params["dw_b"]      # (C, K, K), (C,)
    pw_w, pw_b = params["pw_w"], params["pw_b"]      # (C_out, C), (C_out,)

    N, C, H, W = x.shape
    K, P, S = kernel_size, padding, stride
    pe = K - 1 - P
    assert pe >= 0, "padding > kernel_size - 1 not supported"
    C_out = pw_w.shape[0]

    H_out = (H - 1) * S - 2 * P + K
    W_out = (W - 1) * S - 2 * P + K
    Hq = -(-H_out // S)                 # output rows per phase (ceil)
    Hout_pad = Hq * S                   # padded output height (junk rows sliced)
    Wd = W_out + K - 1                  # W-dilated/padded input width

    phases = _phase_taps(K, P, S)
    rowrels = [r for taps in phases for (_, r) in taps] or [0]
    pad_top = max(0, -min(rowrels))
    pad_bot = max(0, Hq + max(rowrels) - H)
    Hpad = H + pad_top + pad_bot
    L = (Hq - 1) * Wd + W_out           # flat per-phase compute length

    # W: zero-insertion (dilate by stride) + edge pad pe.  H: edge pad only.
    xf = x.astype(jnp.float32)
    xw = lax.pad(xf, jnp.float32(0.0),
                 ((0, 0, 0), (0, 0, 0),
                  (pad_top, pad_bot, 0),
                  (pe, pe, S - 1)))
    xflat = xw.reshape(N, C, Hpad * Wd)              # lane-dense kernel input

    wf = dw_w[:, ::-1, ::-1].reshape(C, K * K).astype(jnp.float32)  # flipped taps
    pw2 = pw_w.astype(jnp.float32)
    # Fold depthwise bias through the pointwise conv (exact):
    #   pw(dw_out + b_dw) + b_pw == pw(dw_out) + (pw @ b_dw + b_pw)
    fused_b = (pw2 @ dw_b.astype(jnp.float32)
               + pw_b.astype(jnp.float32)).reshape(C_out, 1)

    taps_total = sum(len(t) for t in phases) * K     # == K*K when S <= K
    flops = int(N * (2 * taps_total * C * L + 2 * S * C_out * C * L))
    bytes_accessed = int(4 * (N * C * Hpad * Wd + C * K * K + C_out * C + C_out
                              + N * C_out * Hout_pad * Wd))

    kernel = _make_fused_kernel(phases, K, S, Hq, Wd, W_out, L, pad_top, C, C_out)
    out_buf = pl.pallas_call(
        kernel,
        out_shape=jax.ShapeDtypeStruct((N, C_out, Hout_pad, Wd), jnp.float32),
        grid=(N,),
        in_specs=[
            pl.BlockSpec((1, C, Hpad * Wd), lambda n: (n, 0, 0)),
            pl.BlockSpec((C, K * K), lambda n: (0, 0)),
            pl.BlockSpec((C_out, C), lambda n: (0, 0)),
            pl.BlockSpec((C_out, 1), lambda n: (0, 0)),
        ],
        out_specs=pl.BlockSpec((1, C_out, Hout_pad, Wd), lambda n: (n, 0, 0, 0)),
        compiler_params=pltpu.CompilerParams(
            dimension_semantics=("parallel",)),
        cost_estimate=pl.CostEstimate(
            flops=flops, transcendentals=0, bytes_accessed=bytes_accessed),
    )(xflat, wf, pw2, fused_b)

    # Pure slice epilogue (fuses into the consumer); no pad / transpose pass.
    return out_buf[:, :, :H_out, :W_out]


# ----------------------------------------------------------------------------
# Pure-JAX reference (Precision.HIGHEST so the comparison can be tight).
# Same kernel-flip / lhs-dilation convention as torch.nn.ConvTranspose2d.
# ----------------------------------------------------------------------------
def dsc_conv_transpose2d_ref(x, params, *, kernel_size, padding, stride):
    dw_w, dw_b = params["dw_w"], params["dw_b"]
    pw_w, pw_b = params["pw_w"], params["pw_b"]
    C = x.shape[1]
    K = kernel_size
    rhs = dw_w[:, ::-1, ::-1][:, None].astype(jnp.float32)   # (C,1,K,K) OIHW flipped
    y = lax.conv_general_dilated(
        x.astype(jnp.float32), rhs,
        window_strides=(1, 1),
        padding=[(K - 1 - padding, K - 1 - padding)] * 2,
        lhs_dilation=(stride, stride),
        dimension_numbers=("NCHW", "OIHW", "NCHW"),
        feature_group_count=C,
        precision=lax.Precision.HIGHEST)
    y = y + dw_b.astype(jnp.float32)[None, :, None, None]
    z = jnp.einsum("oc,nchw->nohw", pw_w.astype(jnp.float32), y,
                   precision=lax.Precision.HIGHEST)
    return z + pw_b.astype(jnp.float32)[None, :, None, None]


# ----------------------------------------------------------------------------
# Parameter init (PyTorch-like uniform bounds; exact init scheme is irrelevant
# for a forward-pass demo)
# ----------------------------------------------------------------------------
def init_params(key, C, C_out, K):
    k1, k2, k3, k4 = jax.random.split(key, 4)
    dw_bound = 1.0 / math.sqrt(K * K)
    pw_bound = 1.0 / math.sqrt(C)
    return dict(
        dw_w=jax.random.uniform(k1, (C, K, K), jnp.float32, -dw_bound, dw_bound),
        dw_b=jax.random.uniform(k2, (C,), jnp.float32, -dw_bound, dw_bound),
        pw_w=jax.random.uniform(k3, (C_out, C), jnp.float32, -pw_bound, pw_bound),
        pw_b=jax.random.uniform(k4, (C_out,), jnp.float32, -pw_bound, pw_bound),
    )


if __name__ == "__main__":
    key = jax.random.PRNGKey(0)
    key, kx = jax.random.split(key)
    x = jax.random.normal(kx, (2, 4, 16, 16), jnp.float32)   # NCHW

    configs = [
        # (kernel_size, padding, stride, expected H_out/W_out)
        (4, 1, 2, 32),   # typical StarGAN2 2x upsampling deconv: 16 -> 32
        (3, 0, 1, 18),   # module defaults: 16 -> 18
        (3, 1, 2, 31),   # uneven phase tap counts + odd output size
    ]

    for K, P, S, H_exp in configs:
        key, kp = jax.random.split(key)
        params = init_params(kp, C=4, C_out=8, K=K)

        fwd = jax.jit(functools.partial(
            dsc_conv_transpose2d, kernel_size=K, padding=P, stride=S))
        out = jax.block_until_ready(fwd(x, params))

        assert out.shape == (2, 8, H_exp, H_exp), out.shape
        assert bool(jnp.all(jnp.isfinite(out)))

        ref = dsc_conv_transpose2d_ref(
            x, params, kernel_size=K, padding=P, stride=S)
        max_err = float(jnp.max(jnp.abs(out - ref)))
        assert max_err < 2e-4, f"K={K} P={P} S={S}: max_err={max_err}"

    print("KERNEL_OK")
</pallas_src>

<mosaic_0001>
module attributes {stable_mosaic.version = 11 : i64} {
  func.func @kernel(%arg0: i32, %arg1: memref<1x4x630xf32, #tpu.memory_space<vmem>>, %arg2: memref<4x16xf32, #tpu.memory_space<vmem>>, %arg3: memref<8x4xf32, #tpu.memory_space<vmem>>, %arg4: memref<8x1xf32, #tpu.memory_space<vmem>>, %arg5: memref<1x8x32x35xf32, #tpu.memory_space<vmem>>) attributes {dimension_semantics = [#tpu.dimension_semantics<parallel>], iteration_bounds = array<i64: 2>, scalar_prefetch = 0 : i64, scratch_operands = 0 : i64, tpu.core_type = #tpu.core_type<tc>, window_params = [{transform_indices = @transform_0, window_bounds = array<i64: 1, 4, 630>}, {pipeline_mode = #tpu.pipeline_mode<synchronous>, transform_indices = @transform_1, window_bounds = array<i64: 4, 16>}, {pipeline_mode = #tpu.pipeline_mode<synchronous>, transform_indices = @transform_2, window_bounds = array<i64: 8, 4>}, {pipeline_mode = #tpu.pipeline_mode<synchronous>, transform_indices = @transform_3, window_bounds = array<i64: 8, 1>}, {transform_indices = @transform_4, window_bounds = array<i64: 1, 8, 32, 35>}]} {
    %c0 = arith.constant 0 : index
    %c0_0 = arith.constant 0 : index
    %0 = vector.load %arg2[%c0, %c0_0] : memref<4x16xf32, #tpu.memory_space<vmem>>, vector<4x16xf32>
    %c0_1 = arith.constant 0 : index
    %c0_2 = arith.constant 0 : index
    %1 = vector.load %arg3[%c0_1, %c0_2] : memref<8x4xf32, #tpu.memory_space<vmem>>, vector<8x4xf32>
    %c0_3 = arith.constant 0 : index
    %c0_4 = arith.constant 0 : index
    %2 = vector.load %arg4[%c0_3, %c0_4] : memref<8x1xf32, #tpu.memory_space<vmem>>, vector<8x1xf32>
    %c0_5 = arith.constant 0 : index
    %c0_6 = arith.constant 0 : index
    %c0_7 = arith.constant 0 : index
    %3 = vector.load %arg1[%c0_5, %c0_6, %c0_7] : memref<1x4x630xf32, #tpu.memory_space<vmem>>, vector<1x4x557xf32>
    %4 = vector.shape_cast %3 : vector<1x4x557xf32> to vector<4x557xf32>
    %5 = vector.extract_strided_slice %0 {offsets = [0, 0], sizes = [4, 1], strides = [1, 1]} : vector<4x16xf32> to vector<4x1xf32>
    %6 = vector.broadcast %5 : vector<4x1xf32> to vector<4x557xf32>
    %7 = arith.mulf %4, %6 : vector<4x557xf32>
    %c0_8 = arith.constant 0 : index
    %c0_9 = arith.constant 0 : index
    %c1 = arith.constant 1 : index
    %8 = vector.load %arg1[%c0_8, %c0_9, %c1] : memref<1x4x630xf32, #tpu.memory_space<vmem>>, vector<1x4x557xf32>
    %9 = vector.shape_cast %8 : vector<1x4x557xf32> to vector<4x557xf32>
    %10 = vector.extract_strided_slice %0 {offsets = [0, 1], sizes = [4, 1], strides = [1, 1]} : vector<4x16xf32> to vector<4x1xf32>
    %11 = vector.broadcast %10 : vector<4x1xf32> to vector<4x557xf32>
    %12 = arith.mulf %9, %11 : vector<4x557xf32>
    %13 = arith.addf %7, %12 : vector<4x557xf32>
    %c0_10 = arith.constant 0 : index
    %c0_11 = arith.constant 0 : index
    %c2 = arith.constant 2 : index
    %14 = vector.load %arg1[%c0_10, %c0_11, %c2] : memref<1x4x630xf32, #tpu.memory_space<vmem>>, vector<1x4x557xf32>
    %15 = vector.shape_cast %14 : vector<1x4x557xf32> to vector<4x557xf32>
    %16 = vector.extract_strided_slice %0 {offsets = [0, 2], sizes = [4, 1], strides = [1, 1]} : vector<4x16xf32> to vector<4x1xf32>
    %17 = vector.broadcast %16 : vector<4x1xf32> to vector<4x557xf32>
    %18 = arith.mulf %15, %17 : vector<4x557xf32>
    %19 = arith.addf %13, %18 : vector<4x557xf32>
    %c0_12 = arith.constant 0 : index
    %c0_13 = arith.constant 0 : index
    %c3 = arith.constant 3 : index
    %20 = vector.load %arg1[%c0_12, %c0_13, %c3] : memref<1x4x630xf32, #tpu.memory_space<vmem>>, vector<1x4x557xf32>
    %21 = vector.shape_cast %20 : vector<1x4x557xf32> to vector<4x557xf32>
    %22 = vector.extract_strided_slice %0 {offsets = [0, 3], sizes = [4, 1], strides = [1, 1]} : vector<4x16xf32> to vector<4x1xf32>
    %23 = vector.broadcast %22 : vector<4x1xf32> to vector<4x557xf32>
    %24 = arith.mulf %21, %23 : vector<4x557xf32>
    %25 = arith.addf %19, %24 : vector<4x557xf32>
    %c0_14 = arith.constant 0 : index
    %c0_15 = arith.constant 0 : index
    %c35 = arith.constant 35 : index
    %26 = vector.load %arg1[%c0_14, %c0_15, %c35] : memref<1x4x630xf32, #tpu.memory_space<vmem>>, vector<1x4x557xf32>
    %27 = vector.shape_cast %26 : vector<1x4x557xf32> to vector<4x557xf32>
    %28 = vector.extract_strided_slice %0 {offsets = [0, 8], sizes = [4, 1], strides = [1, 1]} : vector<4x16xf32> to vector<4x1xf32>
    %29 = vector.broadcast %28 : vector<4x1xf32> to vector<4x557xf32>
    %30 = arith.mulf %27, %29 : vector<4x557xf32>
    %31 = arith.addf %25, %30 : vector<4x557xf32>
    %c0_16 = arith.constant 0 : index
    %c0_17 = arith.constant 0 : index
    %c36 = arith.constant 36 : index
    %32 = vector.load %arg1[%c0_16, %c0_17, %c36] : memref<1x4x630xf32, #tpu.memory_space<vmem>>, vector<1x4x557xf32>
    %33 = vector.shape_cast %32 : vector<1x4x557xf32> to vector<4x557xf32>
    %34 = vector.extract_strided_slice %0 {offsets = [0, 9], sizes = [4, 1], strides = [1, 1]} : vector<4x16xf32> to vector<4x1xf32>
    %35 = vector.broadcast %34 : vector<4x1xf32> to vector<4x557xf32>
    %36 = arith.mulf %33, %35 : vector<4x557xf32>
    %37 = arith.addf %31, %36 : vector<4x557xf32>
    %c0_18 = arith.constant 0 : index
    %c0_19 = arith.constant 0 : index
    %c37 = arith.constant 37 : index
    %38 = vector.load %arg1[%c0_18, %c0_19, %c37] : memref<1x4x630xf32, #tpu.memory_space<vmem>>, vector<1x4x557xf32>
    %39 = vector.shape_cast %38 : vector<1x4x557xf32> to vector<4x557xf32>
    %40 = vector.extract_strided_slice %0 {offsets = [0, 10], sizes = [4, 1], strides = [1, 1]} : vector<4x16xf32> to vector<4x1xf32>
    %41 = vector.broadcast %40 : vector<4x1xf32> to vector<4x557xf32>
    %42 = arith.mulf %39, %41 : vector<4x557xf32>
    %43 = arith.addf %37, %42 : vector<4x557xf32>
    %c0_20 = arith.constant 0 : index
    %c0_21 = arith.constant 0 : index
    %c38 = arith.constant 38 : index
    %44 = vector.load %arg1[%c0_20, %c0_21, %c38] : memref<1x4x630xf32, #tpu.memory_space<vmem>>, vector<1x4x557xf32>
    %45 = vector.shape_cast %44 : vector<1x4x557xf32> to vector<4x557xf32>
    %46 = vector.extract_strided_slice %0 {offsets = [0, 11], sizes = [4, 1], strides = [1, 1]} : vector<4x16xf32> to vector<4x1xf32>
    %47 = vector.broadcast %46 : vector<4x1xf32> to vector<4x557xf32>
    %48 = arith.mulf %45, %47 : vector<4x557xf32>
    %49 = arith.addf %43, %48 : vector<4x557xf32>
    %cst = arith.constant dense<0.000000e+00> : vector<8x557xf32>
    %50 = tpu.matmul %1, %49, %cst {dimension_numbers = #tpu.dot_dimension_numbers<[1], [0], [0], [1], [0, 0, 1, 1], [], []>} : vector<8x4xf32>, vector<4x557xf32>, vector<8x557xf32> -> vector<8x557xf32>
    %51 = vector.broadcast %2 : vector<8x1xf32> to vector<8x557xf32>
    %52 = arith.addf %50, %51 : vector<8x557xf32>
    %53 = vector.extract_strided_slice %52 {offsets = [0, 0], sizes = [8, 32], strides = [1, 1]} : vector<8x557xf32> to vector<8x32xf32>
    %c0_22 = arith.constant 0 : index
    %c0_23 = arith.constant 0 : index
    %c0_24 = arith.constant 0 : index
    %c0_25 = arith.constant 0 : index
    %54 = vector.load %arg5[%c0_22, %c0_23, %c0_24, %c0_25] : memref<1x8x32x35xf32, #tpu.memory_space<vmem>>, vector<1x8x1x32xf32>
    %55 = vector.shape_cast %54 : vector<1x8x1x32xf32> to vector<8x32xf32>
    %56 = vector.shape_cast %53 : vector<8x32xf32> to vector<1x8x1x32xf32>
    tpu.vector_store %arg5[%c0_22, %c0_23, %c0_24, %c0_25], %56 {strides = array<i32>} : memref<1x8x32x35xf32, #tpu.memory_space<vmem>>, vector<1x8x1x32xf32>,
    %57 = vector.extract_strided_slice %52 {offsets = [0, 35], sizes = [8, 32], strides = [1, 1]} : vector<8x557xf32> to vector<8x32xf32>
    %c0_26 = arith.constant 0 : index
    %c0_27 = arith.constant 0 : index
    %c2_28 = arith.constant 2 : index
    %c0_29 = arith.constant 0 : index
    %58 = vector.load %arg5[%c0_26, %c0_27, %c2_28, %c0_29] : memref<1x8x32x35xf32, #tpu.memory_space<vmem>>, vector<1x8x1x32xf32>
    %59 = vector.shape_cast %58 : vector<1x8x1x32xf32> to vector<8x32xf32>
    %60 = vector.shape_cast %57 : vector<8x32xf32> to vector<1x8x1x32xf32>
    tpu.vector_store %arg5[%c0_26, %c0_27, %c2_28, %c0_29], %60 {strides = array<i32>} : memref<1x8x32x35xf32, #tpu.memory_space<vmem>>, vector<1x8x1x32xf32>,
    %61 = vector.extract_strided_slice %52 {offsets = [0, 70], sizes = [8, 32], strides = [1, 1]} : vector<8x557xf32> to vector<8x32xf32>
    %c0_30 = arith.constant 0 : index
    %c0_31 = arith.constant 0 : index
    %c4 = arith.constant 4 : index
    %c0_32 = arith.constant 0 : index
    %62 = vector.load %arg5[%c0_30, %c0_31, %c4, %c0_32] : memref<1x8x32x35xf32, #tpu.memory_space<vmem>>, vector<1x8x1x32xf32>
    %63 = vector.shape_cast %62 : vector<1x8x1x32xf32> to vector<8x32xf32>
    %64 = vector.shape_cast %61 : vector<8x32xf32> to vector<1x8x1x32xf32>
    tpu.vector_store %arg5[%c0_30, %c0_31, %c4, %c0_32], %64 {strides = array<i32>} : memref<1x8x32x35xf32, #tpu.memory_space<vmem>>, vector<1x8x1x32xf32>,
    %65 = vector.extract_strided_slice %52 {offsets = [0, 105], sizes = [8, 32], strides = [1, 1]} : vector<8x557xf32> to vector<8x32xf32>
    %c0_33 = arith.constant 0 : index
    %c0_34 = arith.constant 0 : index
    %c6 = arith.constant 6 : index
    %c0_35 = arith.constant 0 : index
    %66 = vector.load %arg5[%c0_33, %c0_34, %c6, %c0_35] : memref<1x8x32x35xf32, #tpu.memory_space<vmem>>, vector<1x8x1x32xf32>
    %67 = vector.shape_cast %66 : vector<1x8x1x32xf32> to vector<8x32xf32>
    %68 = vector.shape_cast %65 : vector<8x32xf32> to vector<1x8x1x32xf32>
    tpu.vector_store %arg5[%c0_33, %c0_34, %c6, %c0_35], %68 {strides = array<i32>} : memref<1x8x32x35xf32, #tpu.memory_space<vmem>>, vector<1x8x1x32xf32>,
    %69 = vector.extract_strided_slice %52 {offsets = [0, 140], sizes = [8, 32], strides = [1, 1]} : vector<8x557xf32> to vector<8x32xf32>
    %c0_36 = arith.constant 0 : index
    %c0_37 = arith.constant 0 : index
    %c8 = arith.constant 8 : index
    %c0_38 = arith.constant 0 : index
    %70 = vector.load %arg5[%c0_36, %c0_37, %c8, %c0_38] : memref<1x8x32x35xf32, #tpu.memory_space<vmem>>, vector<1x8x1x32xf32>
    %71 = vector.shape_cast %70 : vector<1x8x1x32xf32> to vector<8x32xf32>
    %72 = vector.shape_cast %69 : vector<8x32xf32> to vector<1x8x1x32xf32>
    tpu.vector_store %arg5[%c0_36, %c0_37, %c8, %c0_38], %72 {strides = array<i32>} : memref<1x8x32x35xf32, #tpu.memory_space<vmem>>, vector<1x8x1x32xf32>,
    %73 = vector.extract_strided_slice %52 {offsets = [0, 175], sizes = [8, 32], strides = [1, 1]} : vector<8x557xf32> to vector<8x32xf32>
    %c0_39 = arith.constant 0 : index
    %c0_40 = arith.constant 0 : index
    %c10 = arith.constant 10 : index
    %c0_41 = arith.constant 0 : index
    %74 = vector.load %arg5[%c0_39, %c0_40, %c10, %c0_41] : memref<1x8x32x35xf32, #tpu.memory_space<vmem>>, vector<1x8x1x32xf32>
    %75 = vector.shape_cast %74 : vector<1x8x1x32xf32> to vector<8x32xf32>
    %76 = vector.shape_cast %73 : vector<8x32xf32> to vector<1x8x1x32xf32>
    tpu.vector_store %arg5[%c0_39, %c0_40, %c10, %c0_41], %76 {strides = array<i32>} : memref<1x8x32x35xf32, #tpu.memory_space<vmem>>, vector<1x8x1x32xf32>,
    %77 = vector.extract_strided_slice %52 {offsets = [0, 210], sizes = [8, 32], strides = [1, 1]} : vector<8x557xf32> to vector<8x32xf32>
    %c0_42 = arith.constant 0 : index
    %c0_43 = arith.constant 0 : index
    %c12 = arith.constant 12 : index
    %c0_44 = arith.constant 0 : index
    %78 = vector.load %arg5[%c0_42, %c0_43, %c12, %c0_44] : memref<1x8x32x35xf32, #tpu.memory_space<vmem>>, vector<1x8x1x32xf32>
    %79 = vector.shape_cast %78 : vector<1x8x1x32xf32> to vector<8x32xf32>
    %80 = vector.shape_cast %77 : vector<8x32xf32> to vector<1x8x1x32xf32>
    tpu.vector_store %arg5[%c0_42, %c0_43, %c12, %c0_44], %80 {strides = array<i32>} : memref<1x8x32x35xf32, #tpu.memory_space<vmem>>, vector<1x8x1x32xf32>,
    %81 = vector.extract_strided_slice %52 {offsets = [0, 245], sizes = [8, 32], strides = [1, 1]} : vector<8x557xf32> to vector<8x32xf32>
    %c0_45 = arith.constant 0 : index
    %c0_46 = arith.constant 0 : index
    %c14 = arith.constant 14 : index
    %c0_47 = arith.constant 0 : index
    %82 = vector.load %arg5[%c0_45, %c0_46, %c14, %c0_47] : memref<1x8x32x35xf32, #tpu.memory_space<vmem>>, vector<1x8x1x32xf32>
    %83 = vector.shape_cast %82 : vector<1x8x1x32xf32> to vector<8x32xf32>
    %84 = vector.shape_cast %81 : vector<8x32xf32> to vector<1x8x1x32xf32>
    tpu.vector_store %arg5[%c0_45, %c0_46, %c14, %c0_47], %84 {strides = array<i32>} : memref<1x8x32x35xf32, #tpu.memory_space<vmem>>, vector<1x8x1x32xf32>,
    %85 = vector.extract_strided_slice %52 {offsets = [0, 280], sizes = [8, 32], strides = [1, 1]} : vector<8x557xf32> to vector<8x32xf32>
    %c0_48 = arith.constant 0 : index
    %c0_49 = arith.constant 0 : index
    %c16 = arith.constant 16 : index
    %c0_50 = arith.constant 0 : index
    %86 = vector.load %arg5[%c0_48, %c0_49, %c16, %c0_50] : memref<1x8x32x35xf32, #tpu.memory_space<vmem>>, vector<1x8x1x32xf32>
    %87 = vector.shape_cast %86 : vector<1x8x1x32xf32> to vector<8x32xf32>
    %88 = vector.shape_cast %85 : vector<8x32xf32> to vector<1x8x1x32xf32>
    tpu.vector_store %arg5[%c0_48, %c0_49, %c16, %c0_50], %88 {strides = array<i32>} : memref<1x8x32x35xf32, #tpu.memory_space<vmem>>, vector<1x8x1x32xf32>,
    %89 = vector.extract_strided_slice %52 {offsets = [0, 315], sizes = [8, 32], strides = [1, 1]} : vector<8x557xf32> to vector<8x32xf32>
    %c0_51 = arith.constant 0 : index
    %c0_52 = arith.constant 0 : index
    %c18 = arith.constant 18 : index
    %c0_53 = arith.constant 0 : index
    %90 = vector.load %arg5[%c0_51, %c0_52, %c18, %c0_53] : memref<1x8x32x35xf32, #tpu.memory_space<vmem>>, vector<1x8x1x32xf32>
    %91 = vector.shape_cast %90 : vector<1x8x1x32xf32> to vector<8x32xf32>
    %92 = vector.shape_cast %89 : vector<8x32xf32> to vector<1x8x1x32xf32>
    tpu.vector_store %arg5[%c0_51, %c0_52, %c18, %c0_53], %92 {strides = array<i32>} : memref<1x8x32x35xf32, #tpu.memory_space<vmem>>, vector<1x8x1x32xf32>,
    %93 = vector.extract_strided_slice %52 {offsets = [0, 350], sizes = [8, 32], strides = [1, 1]} : vector<8x557xf32> to vector<8x32xf32>
    %c0_54 = arith.constant 0 : index
    %c0_55 = arith.constant 0 : index
    %c20 = arith.constant 20 : index
    %c0_56 = arith.constant 0 : index
    %94 = vector.load %arg5[%c0_54, %c0_55, %c20, %c0_56] : memref<1x8x32x35xf32, #tpu.memory_space<vmem>>, vector<1x8x1x32xf32>
    %95 = vector.shape_cast %94 : vector<1x8x1x32xf32> to vector<8x32xf32>
    %96 = vector.shape_cast %93 : vector<8x32xf32> to vector<1x8x1x32xf32>
    tpu.vector_store %arg5[%c0_54, %c0_55, %c20, %c0_56], %96 {strides = array<i32>} : memref<1x8x32x35xf32, #tpu.memory_space<vmem>>, vector<1x8x1x32xf32>,
    %97 = vector.extract_strided_slice %52 {offsets = [0, 385], sizes = [8, 32], strides = [1, 1]} : vector<8x557xf32> to vector<8x32xf32>
    %c0_57 = arith.constant 0 : index
    %c0_58 = arith.constant 0 : index
    %c22 = arith.constant 22 : index
    %c0_59 = arith.constant 0 : index
    %98 = vector.load %arg5[%c0_57, %c0_58, %c22, %c0_59] : memref<1x8x32x35xf32, #tpu.memory_space<vmem>>, vector<1x8x1x32xf32>
    %99 = vector.shape_cast %98 : vector<1x8x1x32xf32> to vector<8x32xf32>
    %100 = vector.shape_cast %97 : vector<8x32xf32> to vector<1x8x1x32xf32>
    tpu.vector_store %arg5[%c0_57, %c0_58, %c22, %c0_59], %100 {strides = array<i32>} : memref<1x8x32x35xf32, #tpu.memory_space<vmem>>, vector<1x8x1x32xf32>,
    %101 = vector.extract_strided_slice %52 {offsets = [0, 420], sizes = [8, 32], strides = [1, 1]} : vector<8x557xf32> to vector<8x32xf32>
    %c0_60 = arith.constant 0 : index
    %c0_61 = arith.constant 0 : index
    %c24 = arith.constant 24 : index
    %c0_62 = arith.constant 0 : index
    %102 = vector.load %arg5[%c0_60, %c0_61, %c24, %c0_62] : memref<1x8x32x35xf32, #tpu.memory_space<vmem>>, vector<1x8x1x32xf32>
    %103 = vector.shape_cast %102 : vector<1x8x1x32xf32> to vector<8x32xf32>
    %104 = vector.shape_cast %101 : vector<8x32xf32> to vector<1x8x1x32xf32>
    tpu.vector_store %arg5[%c0_60, %c0_61, %c24, %c0_62], %104 {strides = array<i32>} : memref<1x8x32x35xf32, #tpu.memory_space<vmem>>, vector<1x8x1x32xf32>,
    %105 = vector.extract_strided_slice %52 {offsets = [0, 455], sizes = [8, 32], strides = [1, 1]} : vector<8x557xf32> to vector<8x32xf32>
    %c0_63 = arith.constant 0 : index
    %c0_64 = arith.constant 0 : index
    %c26 = arith.constant 26 : index
    %c0_65 = arith.constant 0 : index
    %106 = vector.load %arg5[%c0_63, %c0_64, %c26, %c0_65] : memref<1x8x32x35xf32, #tpu.memory_space<vmem>>, vector<1x8x1x32xf32>
    %107 = vector.shape_cast %106 : vector<1x8x1x32xf32> to vector<8x32xf32>
    %108 = vector.shape_cast %105 : vector<8x32xf32> to vector<1x8x1x32xf32>
    tpu.vector_store %arg5[%c0_63, %c0_64, %c26, %c0_65], %108 {strides = array<i32>} : memref<1x8x32x35xf32, #tpu.memory_space<vmem>>, vector<1x8x1x32xf32>,
    %109 = vector.extract_strided_slice %52 {offsets = [0, 490], sizes = [8, 32], strides = [1, 1]} : vector<8x557xf32> to vector<8x32xf32>
    %c0_66 = arith.constant 0 : index
    %c0_67 = arith.constant 0 : index
    %c28 = arith.constant 28 : index
    %c0_68 = arith.constant 0 : index
    %110 = vector.load %arg5[%c0_66, %c0_67, %c28, %c0_68] : memref<1x8x32x35xf32, #tpu.memory_space<vmem>>, vector<1x8x1x32xf32>
    %111 = vector.shape_cast %110 : vector<1x8x1x32xf32> to vector<8x32xf32>
    %112 = vector.shape_cast %109 : vector<8x32xf32> to vector<1x8x1x32xf32>
    tpu.vector_store %arg5[%c0_66, %c0_67, %c28, %c0_68], %112 {strides = array<i32>} : memref<1x8x32x35xf32, #tpu.memory_space<vmem>>, vector<1x8x1x32xf32>,
    %113 = vector.extract_strided_slice %52 {offsets = [0, 525], sizes = [8, 32], strides = [1, 1]} : vector<8x557xf32> to vector<8x32xf32>
    %c0_69 = arith.constant 0 : index
    %c0_70 = arith.constant 0 : index
    %c30 = arith.constant 30 : index
    %c0_71 = arith.constant 0 : index
    %114 = vector.load %arg5[%c0_69, %c0_70, %c30, %c0_71] : memref<1x8x32x35xf32, #tpu.memory_space<vmem>>, vector<1x8x1x32xf32>
    %115 = vector.shape_cast %114 : vector<1x8x1x32xf32> to vector<8x32xf32>
    %116 = vector.shape_cast %113 : vector<8x32xf32> to vector<1x8x1x32xf32>
    tpu.vector_store %arg5[%c0_69, %c0_70, %c30, %c0_71], %116 {strides = array<i32>} : memref<1x8x32x35xf32, #tpu.memory_space<vmem>>, vector<1x8x1x32xf32>,
    %c0_72 = arith.constant 0 : index
    %c0_73 = arith.constant 0 : index
    %c35_74 = arith.constant 35 : index
    %117 = vector.load %arg1[%c0_72, %c0_73, %c35_74] : memref<1x4x630xf32, #tpu.memory_space<vmem>>, vector<1x4x557xf32>
    %118 = vector.shape_cast %117 : vector<1x4x557xf32> to vector<4x557xf32>
    %119 = vector.extract_strided_slice %0 {offsets = [0, 4], sizes = [4, 1], strides = [1, 1]} : vector<4x16xf32> to vector<4x1xf32>
    %120 = vector.broadcast %119 : vector<4x1xf32> to vector<4x557xf32>
    %121 = arith.mulf %118, %120 : vector<4x557xf32>
    %c0_75 = arith.constant 0 : index
    %c0_76 = arith.constant 0 : index
    %c36_77 = arith.constant 36 : index
    %122 = vector.load %arg1[%c0_75, %c0_76, %c36_77] : memref<1x4x630xf32, #tpu.memory_space<vmem>>, vector<1x4x557xf32>
    %123 = vector.shape_cast %122 : vector<1x4x557xf32> to vector<4x557xf32>
    %124 = vector.extract_strided_slice %0 {offsets = [0, 5], sizes = [4, 1], strides = [1, 1]} : vector<4x16xf32> to vector<4x1xf32>
    %125 = vector.broadcast %124 : vector<4x1xf32> to vector<4x557xf32>
    %126 = arith.mulf %123, %125 : vector<4x557xf32>
    %127 = arith.addf %121, %126 : vector<4x557xf32>
    %c0_78 = arith.constant 0 : index
    %c0_79 = arith.constant 0 : index
    %c37_80 = arith.constant 37 : index
    %128 = vector.load %arg1[%c0_78, %c0_79, %c37_80] : memref<1x4x630xf32, #tpu.memory_space<vmem>>, vector<1x4x557xf32>
    %129 = vector.shape_cast %128 : vector<1x4x557xf32> to vector<4x557xf32>
    %130 = vector.extract_strided_slice %0 {offsets = [0, 6], sizes = [4, 1], strides = [1, 1]} : vector<4x16xf32> to vector<4x1xf32>
    %131 = vector.broadcast %130 : vector<4x1xf32> to vector<4x557xf32>
    %132 = arith.mulf %129, %131 : vector<4x557xf32>
    %133 = arith.addf %127, %132 : vector<4x557xf32>
    %c0_81 = arith.constant 0 : index
    %c0_82 = arith.constant 0 : index
    %c38_83 = arith.constant 38 : index
    %134 = vector.load %arg1[%c0_81, %c0_82, %c38_83] : memref<1x4x630xf32, #tpu.memory_space<vmem>>, vector<1x4x557xf32>
    %135 = vector.shape_cast %134 : vector<1x4x557xf32> to vector<4x557xf32>
    %136 = vector.extract_strided_slice %0 {offsets = [0, 7], sizes = [4, 1], strides = [1, 1]} : vector<4x16xf32> to vector<4x1xf32>
    %137 = vector.broadcast %136 : vector<4x1xf32> to vector<4x557xf32>
    %138 = arith.mulf %135, %137 : vector<4x557xf32>
    %139 = arith.addf %133, %138 : vector<4x557xf32>
    %c0_84 = arith.constant 0 : index
    %c0_85 = arith.constant 0 : index
    %c70 = arith.constant 70 : index
    %140 = vector.load %arg1[%c0_84, %c0_85, %c70] : memref<1x4x630xf32, #tpu.memory_space<vmem>>, vector<1x4x557xf32>
    %141 = vector.shape_cast %140 : vector<1x4x557xf32> to vector<4x557xf32>
    %142 = vector.extract_strided_slice %0 {offsets = [0, 12], sizes = [4, 1], strides = [1, 1]} : vector<4x16xf32> to vector<4x1xf32>
    %143 = vector.broadcast %142 : vector<4x1xf32> to vector<4x557xf32>
    %144 = arith.mulf %141, %143 : vector<4x557xf32>
    %145 = arith.addf %139, %144 : vector<4x557xf32>
    %c0_86 = arith.constant 0 : index
    %c0_87 = arith.constant 0 : index
    %c71 = arith.constant 71 : index
    %146 = vector.load %arg1[%c0_86, %c0_87, %c71] : memref<1x4x630xf32, #tpu.memory_space<vmem>>, vector<1x4x557xf32>
    %147 = vector.shape_cast %146 : vector<1x4x557xf32> to vector<4x557xf32>
    %148 = vector.extract_strided_slice %0 {offsets = [0, 13], sizes = [4, 1], strides = [1, 1]} : vector<4x16xf32> to vector<4x1xf32>
    %149 = vector.broadcast %148 : vector<4x1xf32> to vector<4x557xf32>
    %150 = arith.mulf %147, %149 : vector<4x557xf32>
    %151 = arith.addf %145, %150 : vector<4x557xf32>
    %c0_88 = arith.constant 0 : index
    %c0_89 = arith.constant 0 : index
    %c72 = arith.constant 72 : index
    %152 = vector.load %arg1[%c0_88, %c0_89, %c72] : memref<1x4x630xf32, #tpu.memory_space<vmem>>, vector<1x4x557xf32>
    %153 = vector.shape_cast %152 : vector<1x4x557xf32> to vector<4x557xf32>
    %154 = vector.extract_strided_slice %0 {offsets = [0, 14], sizes = [4, 1], strides = [1, 1]} : vector<4x16xf32> to vector<4x1xf32>
    %155 = vector.broadcast %154 : vector<4x1xf32> to vector<4x557xf32>
    %156 = arith.mulf %153, %155 : vector<4x557xf32>
    %157 = arith.addf %151, %156 : vector<4x557xf32>
    %c0_90 = arith.constant 0 : index
    %c0_91 = arith.constant 0 : index
    %c73 = arith.constant 73 : index
    %158 = vector.load %arg1[%c0_90, %c0_91, %c73] : memref<1x4x630xf32, #tpu.memory_space<vmem>>, vector<1x4x557xf32>
    %159 = vector.shape_cast %158 : vector<1x4x557xf32> to vector<4x557xf32>
    %160 = vector.extract_strided_slice %0 {offsets = [0, 15], sizes = [4, 1], strides = [1, 1]} : vector<4x16xf32> to vector<4x1xf32>
    %161 = vector.broadcast %160 : vector<4x1xf32> to vector<4x557xf32>
    %162 = arith.mulf %159, %161 : vector<4x557xf32>
    %163 = arith.addf %157, %162 : vector<4x557xf32>
    %cst_92 = arith.constant dense<0.000000e+00> : vector<8x557xf32>
    %164 = tpu.matmul %1, %163, %cst_92 {dimension_numbers = #tpu.dot_dimension_numbers<[1], [0], [0], [1], [0, 0, 1, 1], [], []>} : vector<8x4xf32>, vector<4x557xf32>, vector<8x557xf32> -> vector<8x557xf32>
    %165 = vector.broadcast %2 : vector<8x1xf32> to vector<8x557xf32>
    %166 = arith.addf %164, %165 : vector<8x557xf32>
    %167 = vector.extract_strided_slice %166 {offsets = [0, 0], sizes = [8, 32], strides = [1, 1]} : vector<8x557xf32> to vector<8x32xf32>
    %c0_93 = arith.constant 0 : index
    %c0_94 = arith.constant 0 : index
    %c1_95 = arith.constant 1 : index
    %c0_96 = arith.constant 0 : index
    %168 = vector.load %arg5[%c0_93, %c0_94, %c1_95, %c0_96] : memref<1x8x32x35xf32, #tpu.memory_space<vmem>>, vector<1x8x1x32xf32>
    %169 = vector.shape_cast %168 : vector<1x8x1x32xf32> to vector<8x32xf32>
    %170 = vector.shape_cast %167 : vector<8x32xf32> to vector<1x8x1x32xf32>
    tpu.vector_store %arg5[%c0_93, %c0_94, %c1_95, %c0_96], %170 {strides = array<i32>} : memref<1x8x32x35xf32, #tpu.memory_space<vmem>>, vector<1x8x1x32xf32>,
    %171 = vector.extract_strided_slice %166 {offsets = [0, 35], sizes = [8, 32], strides = [1, 1]} : vector<8x557xf32> to vector<8x32xf32>
    %c0_97 = arith.constant 0 : index
    %c0_98 = arith.constant 0 : index
    %c3_99 = arith.constant 3 : index
    %c0_100 = arith.constant 0 : index
    %172 = vector.load %arg5[%c0_97, %c0_98, %c3_99, %c0_100] : memref<1x8x32x35xf32, #tpu.memory_space<vmem>>, vector<1x8x1x32xf32>
    %173 = vector.shape_cast %172 : vector<1x8x1x32xf32> to vector<8x32xf32>
    %174 = vector.shape_cast %171 : vector<8x32xf32> to vector<1x8x1x32xf32>
    tpu.vector_store %arg5[%c0_97, %c0_98, %c3_99, %c0_100], %174 {strides = array<i32>} : memref<1x8x32x35xf32, #tpu.memory_space<vmem>>, vector<1x8x1x32xf32>,
    %175 = vector.extract_strided_slice %166 {offsets = [0, 70], sizes = [8, 32], strides = [1, 1]} : vector<8x557xf32> to vector<8x32xf32>
    %c0_101 = arith.constant 0 : index
    %c0_102 = arith.constant 0 : index
    %c5 = arith.constant 5 : index
    %c0_103 = arith.constant 0 : index
    %176 = vector.load %arg5[%c0_101, %c0_102, %c5, %c0_103] : memref<1x8x32x35xf32, #tpu.memory_space<vmem>>, vector<1x8x1x32xf32>
    %177 = vector.shape_cast %176 : vector<1x8x1x32xf32> to vector<8x32xf32>
    %178 = vector.shape_cast %175 : vector<8x32xf32> to vector<1x8x1x32xf32>
    tpu.vector_store %arg5[%c0_101, %c0_102, %c5, %c0_103], %178 {strides = array<i32>} : memref<1x8x32x35xf32, #tpu.memory_space<vmem>>, vector<1x8x1x32xf32>,
    %179 = vector.extract_strided_slice %166 {offsets = [0, 105], sizes = [8, 32], strides = [1, 1]} : vector<8x557xf32> to vector<8x32xf32>
    %c0_104 = arith.constant 0 : index
    %c0_105 = arith.constant 0 : index
    %c7 = arith.constant 7 : index
    %c0_106 = arith.constant 0 : index
    %180 = vector.load %arg5[%c0_104, %c0_105, %c7, %c0_106] : memref<1x8x32x35xf32, #tpu.memory_space<vmem>>, vector<1x8x1x32xf32>
    %181 = vector.shape_cast %180 : vector<1x8x1x32xf32> to vector<8x32xf32>
    %182 = vector.shape_cast %179 : vector<8x32xf32> to vector<1x8x1x32xf32>
    tpu.vector_store %arg5[%c0_104, %c0_105, %c7, %c0_106], %182 {strides = array<i32>} : memref<1x8x32x35xf32, #tpu.memory_space<vmem>>, vector<1x8x1x32xf32>,
    %183 = vector.extract_strided_slice %166 {offsets = [0, 140], sizes = [8, 32], strides = [1, 1]} : vector<8x557xf32> to vector<8x32xf32>
    %c0_107 = arith.constant 0 : index
    %c0_108 = arith.constant 0 : index
    %c9 = arith.constant 9 : index
    %c0_109 = arith.constant 0 : index
    %184 = vector.load %arg5[%c0_107, %c0_108, %c9, %c0_109] : memref<1x8x32x35xf32, #tpu.memory_space<vmem>>, vector<1x8x1x32xf32>
    %185 = vector.shape_cast %184 : vector<1x8x1x32xf32> to vector<8x32xf32>
    %186 = vector.shape_cast %183 : vector<8x32xf32> to vector<1x8x1x32xf32>
    tpu.vector_store %arg5[%c0_107, %c0_108, %c9, %c0_109], %186 {strides = array<i32>} : memref<1x8x32x35xf32, #tpu.memory_space<vmem>>, vector<1x8x1x32xf32>,
    %187 = vector.extract_strided_slice %166 {offsets = [0, 175], sizes = [8, 32], strides = [1, 1]} : vector<8x557xf32> to vector<8x32xf32>
    %c0_110 = arith.constant 0 : index
    %c0_111 = arith.constant 0 : index
    %c11 = arith.constant 11 : index
    %c0_112 = arith.constant 0 : index
    %188 = vector.load %arg5[%c0_110, %c0_111, %c11, %c0_112] : memref<1x8x32x35xf32, #tpu.memory_space<vmem>>, vector<1x8x1x32xf32>
    %189 = vector.shape_cast %188 : vector<1x8x1x32xf32> to vector<8x32xf32>
    %190 = vector.shape_cast %187 : vector<8x32xf32> to vector<1x8x1x32xf32>
    tpu.vector_store %arg5[%c0_110, %c0_111, %c11, %c0_112], %190 {strides = array<i32>} : memref<1x8x32x35xf32, #tpu.memory_space<vmem>>, vector<1x8x1x32xf32>,
    %191 = vector.extract_strided_slice %166 {offsets = [0, 210], sizes = [8, 32], strides = [1, 1]} : vector<8x557xf32> to vector<8x32xf32>
    %c0_113 = arith.constant 0 : index
    %c0_114 = arith.constant 0 : index
    %c13 = arith.constant 13 : index
    %c0_115 = arith.constant 0 : index
    %192 = vector.load %arg5[%c0_113, %c0_114, %c13, %c0_115] : memref<1x8x32x35xf32, #tpu.memory_space<vmem>>, vector<1x8x1x32xf32>
    %193 = vector.shape_cast %192 : vector<1x8x1x32xf32> to vector<8x32xf32>
    %194 = vector.shape_cast %191 : vector<8x32xf32> to vector<1x8x1x32xf32>
    tpu.vector_store %arg5[%c0_113, %c0_114, %c13, %c0_115], %194 {strides = array<i32>} : memref<1x8x32x35xf32, #tpu.memory_space<vmem>>, vector<1x8x1x32xf32>,
    %195 = vector.extract_strided_slice %166 {offsets = [0, 245], sizes = [8, 32], strides = [1, 1]} : vector<8x557xf32> to vector<8x32xf32>
    %c0_116 = arith.constant 0 : index
    %c0_117 = arith.constant 0 : index
    %c15 = arith.constant 15 : index
    %c0_118 = arith.constant 0 : index
    %196 = vector.load %arg5[%c0_116, %c0_117, %c15, %c0_118] : memref<1x8x32x35xf32, #tpu.memory_space<vmem>>, vector<1x8x1x32xf32>
    %197 = vector.shape_cast %196 : vector<1x8x1x32xf32> to vector<8x32xf32>
    %198 = vector.shape_cast %195 : vector<8x32xf32> to vector<1x8x1x32xf32>
    tpu.vector_store %arg5[%c0_116, %c0_117, %c15, %c0_118], %198 {strides = array<i32>} : memref<1x8x32x35xf32, #tpu.memory_space<vmem>>, vector<1x8x1x32xf32>,
    %199 = vector.extract_strided_slice %166 {offsets = [0, 280], sizes = [8, 32], strides = [1, 1]} : vector<8x557xf32> to vector<8x32xf32>
    %c0_119 = arith.constant 0 : index
    %c0_120 = arith.constant 0 : index
    %c17 = arith.constant 17 : index
    %c0_121 = arith.constant 0 : index
    %200 = vector.load %arg5[%c0_119, %c0_120, %c17, %c0_121] : memref<1x8x32x35xf32, #tpu.memory_space<vmem>>, vector<1x8x1x32xf32>
    %201 = vector.shape_cast %200 : vector<1x8x1x32xf32> to vector<8x32xf32>
    %202 = vector.shape_cast %199 : vector<8x32xf32> to vector<1x8x1x32xf32>
    tpu.vector_store %arg5[%c0_119, %c0_120, %c17, %c0_121], %202 {strides = array<i32>} : memref<1x8x32x35xf32, #tpu.memory_space<vmem>>, vector<1x8x1x32xf32>,
    %203 = vector.extract_strided_slice %166 {offsets = [0, 315], sizes = [8, 32], strides = [1, 1]} : vector<8x557xf32> to vector<8x32xf32>
    %c0_122 = arith.constant 0 : index
    %c0_123 = arith.constant 0 : index
    %c19 = arith.constant 19 : index
    %c0_124 = arith.constant 0 : index
    %204 = vector.load %arg5[%c0_122, %c0_123, %c19, %c0_124] : memref<1x8x32x35xf32, #tpu.memory_space<vmem>>, vector<1x8x1x32xf32>
    %205 = vector.shape_cast %204 : vector<1x8x1x32xf32> to vector<8x32xf32>
    %206 = vector.shape_cast %203 : vector<8x32xf32> to vector<1x8x1x32xf32>
    tpu.vector_store %arg5[%c0_122, %c0_123, %c19, %c0_124], %206 {strides = array<i32>} : memref<1x8x32x35xf32, #tpu.memory_space<vmem>>, vector<1x8x1x32xf32>,
    %207 = vector.extract_strided_slice %166 {offsets = [0, 350], sizes = [8, 32], strides = [1, 1]} : vector<8x557xf32> to vector<8x32xf32>
    %c0_125 = arith.constant 0 : index
    %c0_126 = arith.constant 0 : index
    %c21 = arith.constant 21 : index
    %c0_127 = arith.constant 0 : index
    %208 = vector.load %arg5[%c0_125, %c0_126, %c21, %c0_127] : memref<1x8x32x35xf32, #tpu.memory_space<vmem>>, vector<1x8x1x32xf32>
    %209 = vector.shape_cast %208 : vector<1x8x1x32xf32> to vector<8x32xf32>
    %210 = vector.shape_cast %207 : vector<8x32xf32> to vector<1x8x1x32xf32>
    tpu.vector_store %arg5[%c0_125, %c0_126, %c21, %c0_127], %210 {strides = array<i32>} : memref<1x8x32x35xf32, #tpu.memory_space<vmem>>, vector<1x8x1x32xf32>,
    %211 = vector.extract_strided_slice %166 {offsets = [0, 385], sizes = [8, 32], strides = [1, 1]} : vector<8x557xf32> to vector<8x32xf32>
    %c0_128 = arith.constant 0 : index
    %c0_129 = arith.constant 0 : index
    %c23 = arith.constant 23 : index
    %c0_130 = arith.constant 0 : index
    %212 = vector.load %arg5[%c0_128, %c0_129, %c23, %c0_130] : memref<1x8x32x35xf32, #tpu.memory_space<vmem>>, vector<1x8x1x32xf32>
    %213 = vector.shape_cast %212 : vector<1x8x1x32xf32> to vector<8x32xf32>
    %214 = vector.shape_cast %211 : vector<8x32xf32> to vector<1x8x1x32xf32>
    tpu.vector_store %arg5[%c0_128, %c0_129, %c23, %c0_130], %214 {strides = array<i32>} : memref<1x8x32x35xf32, #tpu.memory_space<vmem>>, vector<1x8x1x32xf32>,
    %215 = vector.extract_strided_slice %166 {offsets = [0, 420], sizes = [8, 32], strides = [1, 1]} : vector<8x557xf32> to vector<8x32xf32>
    %c0_131 = arith.constant 0 : index
    %c0_132 = arith.constant 0 : index
    %c25 = arith.constant 25 : index
    %c0_133 = arith.constant 0 : index
    %216 = vector.load %arg5[%c0_131, %c0_132, %c25, %c0_133] : memref<1x8x32x35xf32, #tpu.memory_space<vmem>>, vector<1x8x1x32xf32>
    %217 = vector.shape_cast %216 : vector<1x8x1x32xf32> to vector<8x32xf32>
    %218 = vector.shape_cast %215 : vector<8x32xf32> to vector<1x8x1x32xf32>
    tpu.vector_store %arg5[%c0_131, %c0_132, %c25, %c0_133], %218 {strides = array<i32>} : memref<1x8x32x35xf32, #tpu.memory_space<vmem>>, vector<1x8x1x32xf32>,
    %219 = vector.extract_strided_slice %166 {offsets = [0, 455], sizes = [8, 32], strides = [1, 1]} : vector<8x557xf32> to vector<8x32xf32>
    %c0_134 = arith.constant 0 : index
    %c0_135 = arith.constant 0 : index
    %c27 = arith.constant 27 : index
    %c0_136 = arith.constant 0 : index
    %220 = vector.load %arg5[%c0_134, %c0_135, %c27, %c0_136] : memref<1x8x32x35xf32, #tpu.memory_space<vmem>>, vector<1x8x1x32xf32>
    %221 = vector.shape_cast %220 : vector<1x8x1x32xf32> to vector<8x32xf32>
    %222 = vector.shape_cast %219 : vector<8x32xf32> to vector<1x8x1x32xf32>
    tpu.vector_store %arg5[%c0_134, %c0_135, %c27, %c0_136], %222 {strides = array<i32>} : memref<1x8x32x35xf32, #tpu.memory_space<vmem>>, vector<1x8x1x32xf32>,
    %223 = vector.extract_strided_slice %166 {offsets = [0, 490], sizes = [8, 32], strides = [1, 1]} : vector<8x557xf32> to vector<8x32xf32>
    %c0_137 = arith.constant 0 : index
    %c0_138 = arith.constant 0 : index
    %c29 = arith.constant 29 : index
    %c0_139 = arith.constant 0 : index
    %224 = vector.load %arg5[%c0_137, %c0_138, %c29, %c0_139] : memref<1x8x32x35xf32, #tpu.memory_space<vmem>>, vector<1x8x1x32xf32>
    %225 = vector.shape_cast %224 : vector<1x8x1x32xf32> to vector<8x32xf32>
    %226 = vector.shape_cast %223 : vector<8x32xf32> to vector<1x8x1x32xf32>
    tpu.vector_store %arg5[%c0_137, %c0_138, %c29, %c0_139], %226 {strides = array<i32>} : memref<1x8x32x35xf32, #tpu.memory_space<vmem>>, vector<1x8x1x32xf32>,
    %227 = vector.extract_strided_slice %166 {offsets = [0, 525], sizes = [8, 32], strides = [1, 1]} : vector<8x557xf32> to vector<8x32xf32>
    %c0_140 = arith.constant 0 : index
    %c0_141 = arith.constant 0 : index
    %c31 = arith.constant 31 : index
    %c0_142 = arith.constant 0 : index
    %228 = vector.load %arg5[%c0_140, %c0_141, %c31, %c0_142] : memref<1x8x32x35xf32, #tpu.memory_space<vmem>>, vector<1x8x1x32xf32>
    %229 = vector.shape_cast %228 : vector<1x8x1x32xf32> to vector<8x32xf32>
    %230 = vector.shape_cast %227 : vector<8x32xf32> to vector<1x8x1x32xf32>
    tpu.vector_store %arg5[%c0_140, %c0_141, %c31, %c0_142], %230 {strides = array<i32>} : memref<1x8x32x35xf32, #tpu.memory_space<vmem>>, vector<1x8x1x32xf32>,
    return
  }
  func.func @transform_0(%arg0: i32) -> (i32, i32, i32) {
    %c0_i32 = arith.constant 0 : i32
    %c0_i32_0 = arith.constant 0 : i32
    %c0_i32_1 = arith.constant 0 : i32
    return %arg0, %c0_i32, %c0_i32_0 : i32, i32, i32
  }
  func.func @transform_1(%arg0: i32) -> (i32, i32) {
    %c0_i32 = arith.constant 0 : i32
    %c0_i32_0 = arith.constant 0 : i32
    %c0_i32_1 = arith.constant 0 : i32
    return %c0_i32, %c0_i32_0 : i32, i32
  }
  func.func @transform_2(%arg0: i32) -> (i32, i32) {
    %c0_i32 = arith.constant 0 : i32
    %c0_i32_0 = arith.constant 0 : i32
    %c0_i32_1 = arith.constant 0 : i32
    return %c0_i32, %c0_i32_0 : i32, i32
  }
  func.func @transform_3(%arg0: i32) -> (i32, i32) {
    %c0_i32 = arith.constant 0 : i32
    %c0_i32_0 = arith.constant 0 : i32
    %c0_i32_1 = arith.constant 0 : i32
    return %c0_i32, %c0_i32_0 : i32, i32
  }
  func.func @transform_4(%arg0: i32) -> (i32, i32, i32, i32) {
    %c0_i32 = arith.constant 0 : i32
    %c0_i32_0 = arith.constant 0 : i32
    %c0_i32_1 = arith.constant 0 : i32
    %c0_i32_2 = arith.constant 0 : i32
    return %arg0, %c0_i32, %c0_i32_0, %c0_i32_1 : i32, i32, i32, i32
  }
}

</mosaic_0001>

<llo_original>
// kernel: dsc_conv_transpose2d.1
$region0: #{dsc_conv_transpose2d.1}
  #allocation0 [shape = 'u32[]', space=smem, size = 0x4, offset = 0x4, fixed_abs, tag = 'smem constant byte address 0x4 - core index']
  #allocation1 [shape = 'u32[144,128]{1,0:T(1,128)}', space=vmem, size = 0x12000, scoped, tag = 'internal scratch']
  %s0 = inlined_call_operand.vmem [shape: f32[2,4,630], index: 0, kind: input, shape index: {}]
  %s1 = inlined_call_operand.vmem [shape: f32[4,16], index: 1, kind: input, shape index: {}]
  %s2 = inlined_call_operand.vmem [shape: f32[8,4], index: 2, kind: input, shape index: {}]
  %s3 = inlined_call_operand.vmem [shape: f32[8,1], index: 3, kind: input, shape index: {}]
  %s4 = inlined_call_operand.hbm [shape: f32[2,8,32,35], index: 4, kind: output, shape index: {}]
  %s5 = sld [smem:[#allocation0]]
  $region49: #{dsc_conv_transpose2d.1} parent=0
    _
  %s7 = ssub.s32 1, %s5
  %s8 = scalar_select 0, %s7, %s5
  $region1: #{dsc_conv_transpose2d.1} parent=0
    #allocation2 [shape = 'u8[262144]{0}', space=vmem, size = 0x40000, scoped, tag = 'output window, operand 0']
    #allocation3 [shape = 's32[2]{0}', space=sflag, size = 0x8, scoped, tag = 'scoped memory for dsc_conv_transpose2d.1']
    %9 = vsyncpa [#allocation3], 0
    %s10 = scalar_lea.sflag [#allocation3], 1
    %11 = vsyncpa %s10, 0
    loop: start=0, step=1, limit=4
    $region2: #{dsc_conv_transpose2d.1} parent=1 // loop_pre_header
      _
    $region3: #{dsc_conv_transpose2d.1} parent=1 // loop_header
      %s13 = sphi 0, %s17
      %p14 = scmp.ge.s32.totalorder %s13, 4
      %s23 = sphi 0, %s25
      %s26 = sphi 0, %s23
      %s27 = sphi 0, %s26
      %s43 = sphi 0, %s27
      %s47 = sphi 0, %s47
      %s49 = sphi 0, %s47
      %s50 = sphi 0, %s49
      %s64 = sphi 0, %s50
      %s68 = sphi 0, %s68
      %s70 = sphi 0, %s68
      %s71 = sphi 0, %s70
      %s85 = sphi 0, %s71
      %s89 = sphi 0, %s89
      %s91 = sphi 0, %s89
      %s92 = sphi 0, %s91
      %s106 = sphi 0, %s92
      %s112 = sphi 0, %s114
      %s115 = sphi 0, %s112
      %s116 = sphi 0, %s115
      %s132 = sphi 0, %s116
    $region4: #{dsc_conv_transpose2d.1} parent=1 // loop_header_branch
      %16 = sbr.rel (%p14) target = $region8
    $region5: #{dsc_conv_transpose2d.1} parent=1 // loop_body
      %s18 = ssub.s32 %s13, 1
      %s19 = ssub.s32 %s13, 2
      %s20 = sadd.s32 %s13, 1
      %s21 = ssub.s32 %s13, %s20
      %p22 = scmp.eq.s32.totalorder %s21, 0
      %s24 = sadd.s32 %s23, 1
      %s25 = scalar_select %p22, %s23, %s24
      %p28 = pneg %p22
      %p29 = scmp.eq.s32.totalorder %s13, 1
      %p30 = por %p28, %p29
      %p31 = scmp.ne.s32.totalorder %s23, %s26
      %p32 = scmp.eq.s32.totalorder %s13, 0
      %p33 = por %p31, %p32
      %p34 = scmp.ne.s32.totalorder %s23, %s26
      %p35 = scmp.eq.s32.totalorder %s18, 1
      %p36 = por %p34, %p35
      %p37 = scmp.ne.s32.totalorder %s26, %s27
      %p38 = scmp.eq.s32.totalorder %s18, 0
      %p39 = por %p37, %p38
      %p40 = scmp.ne.s32.totalorder %s26, %s27
      %p41 = scmp.eq.s32.totalorder %s19, 1
      %p42 = por %p40, %p41
      %p44 = scmp.ne.s32.totalorder %s27, %s43
      %p45 = scmp.eq.s32.totalorder %s19, 0
      %p46 = por %p44, %p45
      %s48 = sadd.s32 %s47, 1
      %p51 = scmp.eq.s32.totalorder %s13, 1
      %p52 = scmp.ne.s32.totalorder %s47, %s49
      %p53 = scmp.eq.s32.totalorder %s13, 0
      %p54 = por %p52, %p53
      %p55 = scmp.ne.s32.totalorder %s47, %s49
      %p56 = scmp.eq.s32.totalorder %s18, 1
      %p57 = por %p55, %p56
      %p58 = scmp.ne.s32.totalorder %s49, %s50
      %p59 = scmp.eq.s32.totalorder %s18, 0
      %p60 = por %p58, %p59
      %p61 = scmp.ne.s32.totalorder %s49, %s50
      %p62 = scmp.eq.s32.totalorder %s19, 1
      %p63 = por %p61, %p62
      %p65 = scmp.ne.s32.totalorder %s50, %s64
      %p66 = scmp.eq.s32.totalorder %s19, 0
      %p67 = por %p65, %p66
      %s69 = sadd.s32 %s68, 1
      %p72 = scmp.eq.s32.totalorder %s13, 1
      %p73 = scmp.ne.s32.totalorder %s68, %s70
      %p74 = scmp.eq.s32.totalorder %s13, 0
      %p75 = por %p73, %p74
      %p76 = scmp.ne.s32.totalorder %s68, %s70
      %p77 = scmp.eq.s32.totalorder %s18, 1
      %p78 = por %p76, %p77
      %p79 = scmp.ne.s32.totalorder %s70, %s71
      %p80 = scmp.eq.s32.totalorder %s18, 0
      %p81 = por %p79, %p80
      %p82 = scmp.ne.s32.totalorder %s70, %s71
      %p83 = scmp.eq.s32.totalorder %s19, 1
      %p84 = por %p82, %p83
      %p86 = scmp.ne.s32.totalorder %s71, %s85
      %p87 = scmp.eq.s32.totalorder %s19, 0
      %p88 = por %p86, %p87
      %s90 = sadd.s32 %s89, 1
      %p93 = scmp.eq.s32.totalorder %s13, 1
      %p94 = scmp.ne.s32.totalorder %s89, %s91
      %p95 = scmp.eq.s32.totalorder %s13, 0
      %p96 = por %p94, %p95
      %p97 = scmp.ne.s32.totalorder %s89, %s91
      %p98 = scmp.eq.s32.totalorder %s18, 1
      %p99 = por %p97, %p98
      %p100 = scmp.ne.s32.totalorder %s91, %s92
      %p101 = scmp.eq.s32.totalorder %s18, 0
      %p102 = por %p100, %p101
      %p103 = scmp.ne.s32.totalorder %s91, %s92
      %p104 = scmp.eq.s32.totalorder %s19, 1
      %p105 = por %p103, %p104
      %p107 = scmp.ne.s32.totalorder %s92, %s106
      %p108 = scmp.eq.s32.totalorder %s19, 0
      %p109 = por %p107, %p108
      %s110 = ssub.s32 %s13, %s20
      %p111 = scmp.eq.s32.totalorder %s110, 0
      %s113 = sadd.s32 %s112, 1
      %s114 = scalar_select %p111, %s112, %s113
      %p117 = pneg %p111
      %p118 = scmp.eq.s32.totalorder %s13, 1
      %p119 = por %p117, %p118
      %p120 = scmp.ne.s32.totalorder %s112, %s115
      %p121 = scmp.eq.s32.totalorder %s13, 0
      %p122 = por %p120, %p121
      %p123 = scmp.ne.s32.totalorder %s112, %s115
      %p124 = scmp.eq.s32.totalorder %s18, 1
      %p125 = por %p123, %p124
      %p126 = scmp.ne.s32.totalorder %s115, %s116
      %p127 = scmp.eq.s32.totalorder %s18, 0
      %p128 = por %p126, %p127
      %p129 = scmp.ne.s32.totalorder %s115, %s116
      %p130 = scmp.eq.s32.totalorder %s19, 1
      %p131 = por %p129, %p130
      %p133 = scmp.ne.s32.totalorder %s116, %s132
      %p134 = scmp.eq.s32.totalorder %s19, 0
      %p135 = por %p133, %p134
      %p136 = scmp.le.s32.totalorder 1, %s13
      %p137 = scmp.lt.s32.totalorder %s13, 3
      %p138 = pnand %p136, %p137
      %p139 = pneg %p138
      // Predicated region
      $region9: #{dsc_conv_transpose2d.1} parent=5 // pred_check
        _
      $region10: #{dsc_conv_transpose2d.1} parent=5 // pred_check_branch
        %141 = sbr.rel (%p138) target = $region12
      $region11: #{dsc_conv_transpose2d.1} parent=5 // pred_region
        %s142 = ssub.s32 %s13, 1
        // Predicated region
        $region13: #{dsc_conv_transpose2d.1} parent=11 // pred_check
          %p143 = pneg %p60
        $region14: #{dsc_conv_transpose2d.1} parent=11 // pred_check_branch
          %145 = sbr.rel (%p143) target = $region16
        $region15: #{dsc_conv_transpose2d.1} parent=11 // pred_region
          _
        $region16: #{dsc_conv_transpose2d.1} parent=11 // pred_fallthru
          _
        // Predicated region
        $region17: #{dsc_conv_transpose2d.1} parent=11 // pred_check
          %p146 = pneg %p81
        $region18: #{dsc_conv_transpose2d.1} parent=11 // pred_check_branch
          %148 = sbr.rel (%p146) target = $region20
        $region19: #{dsc_conv_transpose2d.1} parent=11 // pred_region
          _
        $region20: #{dsc_conv_transpose2d.1} parent=11 // pred_fallthru
          _
        // Predicated region
        $region21: #{dsc_conv_transpose2d.1} parent=11 // pred_check
          %p149 = pneg %p102
        $region22: #{dsc_conv_transpose2d.1} parent=11 // pred_check_branch
          %151 = sbr.rel (%p149) target = $region24
        $region23: #{dsc_conv_transpose2d.1} parent=11 // pred_region
          _
        $region24: #{dsc_conv_transpose2d.1} parent=11 // pred_fallthru
          _
      $region12: #{dsc_conv_transpose2d.1} parent=5 // pred_fallthru
        _
      %p152 = scmp.lt.s32.totalorder %s13, 2
      // Predicated region
      $region25: #{dsc_conv_transpose2d.1} parent=5 // pred_check
        %p153 = pneg %p152
      $region26: #{dsc_conv_transpose2d.1} parent=5 // pred_check_branch
        %155 = sbr.rel (%p153) target = $region28
      $region27: #{dsc_conv_transpose2d.1} parent=5 // pred_region
        // Predicated region
        $region29: #{dsc_conv_transpose2d.1} parent=27 // pred_check
          %p156 = pneg %p33
        $region30: #{dsc_conv_transpose2d.1} parent=27 // pred_check_branch
          %158 = sbr.rel (%p156) target = $region32
        $region31: #{dsc_conv_transpose2d.1} parent=27 // pred_region
          %p159 = scmp.lt.s32.totalorder %s13, 1
          %s160 = scalar_select %p159, %s13, 1
          %s161 = smul.addr %s160, 5
          %s162 = smul.addr %s161, 4
          %s163 = scalar_lea.vmem %s0, %s162
        $region32: #{dsc_conv_transpose2d.1} parent=27 // pred_fallthru
          _
      $region28: #{dsc_conv_transpose2d.1} parent=5 // pred_fallthru
        _
      %p164 = scmp.le.s32.totalorder 1, %s13
      %p165 = scmp.lt.s32.totalorder %s13, 3
      %p166 = pnand %p164, %p165
      %p167 = pneg %p166
      // Predicated region
      $region33: #{dsc_conv_transpose2d.1} parent=5 // pred_check
        _
      $region34: #{dsc_conv_transpose2d.1} parent=5 // pred_check_branch
        %169 = sbr.rel (%p166) target = $region36
      $region35: #{dsc_conv_transpose2d.1} parent=5 // pred_region
        %s170 = ssub.s32 %s13, 1
        %p171 = scmp.lt.s32.totalorder %s18, 1
        %s172 = scalar_select %p171, %s18, 1
        %s173 = smul.addr %s172, 5
        %s174 = smul.addr %s173, 4
        %s175 = scalar_lea.vmem %s0, %s174
        %p176 = pneg %p39
        %p177 = pneg %p36
        %p178 = pneg %p60
        %p179 = pneg %p57
        %p180 = pneg %p81
        %p181 = pneg %p78
        %p182 = pneg %p102
        %p183 = pneg %p99
        %p184 = pneg %p128
        %p185 = pneg %p125
        %s186 = sand.u32 %s115, 1
        %s187 = scalar_lea.sflag [#allocation3], %s186
        %s188 = sand.u32 %s115, 1
        %s189 = smul.addr %s188, 256
        %s190 = scalar_lea.vmem [#allocation2], %s189
        %p191 = scmp.lt.s32.totalorder %s18, 1
        %s192 = scalar_select %p191, %s18, 1
        %s193 = smul.addr %s192, 5
        %s194 = smul.addr %s193, 4
        %s195 = scalar_lea.vmem %s0, %s194
        %v196 = vld [vmem:[%s1] sm:$0xf]
        %v197 = vld [vmem:[%s2] sm:$0xff]
        %v198 = vld [vmem:[%s3] sm:$0xff]
        %v199 = vld [vmem:[%s195] sm:$0xff]
        %v200 = vld [vmem:[%s195 + $0x8] sm:$0xff]
        %v201 = vld [vmem:[%s195 + $0x10] sm:$0xf]
        %203 = vset.pattern.permute.xlu0 0
        %204 = vperm.xlu0 %203, %v196
        %v205 = vpop.permute.xlu0 %204
        %v207 = vunpack.c.l.s4 839922192
        %v208 = vunpack.c.0.s8 %v207
        %v209 = vlaneseq
        %v210 = vshrl.u32 %v209, 7
        %v211 = vsub.s32 %v208, %v210
        %v212 = vrot.slane %v205, %v211
        %v214 = vmul.f32 %v199, %v212
        %v215 = vmul.f32 %v200, %v212
        %v216 = vmul.f32 %v201, %v212
        %217 = vset.pattern.permute.xlu0 1
        %218 = vperm.xlu0 %217, %v196
        %v219 = vpop.permute.xlu0 %218
        %v221 = vunpack.c.l.s4 839922192
        %v222 = vunpack.c.0.s8 %v221
        %v223 = vlaneseq
        %v224 = vshrl.u32 %v223, 7
        %v225 = vsub.s32 %v222, %v224
        %v226 = vrot.slane %v219, %v225
        %v228 = vmul.f32 %v199, %v226
        %v229 = vmul.f32 %v200, %v226
        %v230 = vmul.f32 %v201, %v226
        %234 = vrot.lane.b32.xlu0 %v228, 127
        %v235 = vpop.permute.xlu0 %234
        %236 = vrot.lane.b32.xlu0 %v229, 127
        %v237 = vpop.permute.xlu0 %236
        %238 = vrot.lane.b32.xlu0 %v230, 127
        %v239 = vpop.permute.xlu0 %238
        %v240 = vrot.slane %v235, 4
        %v241 = vrot.slane %v237, 4
        %v242 = vrot.slane %v239, 4
        %vm243 = vcmask 1043456
        %v244 = vsel %vm243, %v240, %v241
        %vm245 = vcmask 1039360
        %v246 = vsel %vm245, %v235, %v244
        %v247 = vsel %vm243, %v241, %v242
        %v248 = vsel %vm245, %v237, %v247
        %v252 = vadd.f32 %v214, %v246
        %v253 = vadd.f32 %v215, %v248
        %v254 = vadd.f32 %v216, %v239
        %255 = vset.pattern.permute.xlu0 2
        %256 = vperm.xlu0 %255, %v196
        %v257 = vpop.permute.xlu0 %256
        %v259 = vunpack.c.l.s4 839922192
        %v260 = vunpack.c.0.s8 %v259
        %v261 = vlaneseq
        %v262 = vshrl.u32 %v261, 7
        %v263 = vsub.s32 %v260, %v262
        %v264 = vrot.slane %v257, %v263
        %v266 = vmul.f32 %v199, %v264
        %v267 = vmul.f32 %v200, %v264
        %v268 = vmul.f32 %v201, %v264
        %272 = vrot.lane.b32.xlu0 %v266, 126
        %v273 = vpop.permute.xlu0 %272
        %274 = vrot.lane.b32.xlu0 %v267, 126
        %v275 = vpop.permute.xlu0 %274
        %276 = vrot.lane.b32.xlu0 %v268, 126
        %v277 = vpop.permute.xlu0 %276
        %v278 = vrot.slane %v273, 4
        %v279 = vrot.slane %v275, 4
        %v280 = vrot.slane %v277, 4
        %v281 = vsel %vm243, %v278, %v279
        %vm282 = vcmask 1031168
        %v283 = vsel %vm282, %v273, %v281
        %v284 = vsel %vm243, %v279, %v280
        %v285 = vsel %vm282, %v275, %v284
        %v289 = vadd.f32 %v252, %v283
        %v290 = vadd.f32 %v253, %v285
        %v291 = vadd.f32 %v254, %v277
        %292 = vset.pattern.permute.xlu0 3
        %293 = vperm.xlu0 %292, %v196
        %v294 = vpop.permute.xlu0 %293
        %v296 = vunpack.c.l.s4 839922192
        %v297 = vunpack.c.0.s8 %v296
        %v298 = vlaneseq
        %v299 = vshrl.u32 %v298, 7
        %v300 = vsub.s32 %v297, %v299
        %v301 = vrot.slane %v294, %v300
        %v303 = vmul.f32 %v199, %v301
        %v304 = vmul.f32 %v200, %v301
        %v305 = vmul.f32 %v201, %v301
        %309 = vrot.lane.b32.xlu0 %v303, 125
        %v310 = vpop.permute.xlu0 %309
        %311 = vrot.lane.b32.xlu0 %v304, 125
        %v312 = vpop.permute.xlu0 %311
        %313 = vrot.lane.b32.xlu0 %v305, 125
        %v314 = vpop.permute.xlu0 %313
        %v315 = vrot.slane %v310, 4
        %v316 = vrot.slane %v312, 4
        %v317 = vrot.slane %v314, 4
        %v318 = vsel %vm243, %v315, %v316
        %vm319 = vcmask 1022976
        %v320 = vsel %vm319, %v310, %v318
        %v321 = vsel %vm243, %v316, %v317
        %v322 = vsel %vm319, %v312, %v321
        %v326 = vadd.f32 %v289, %v320
        %v327 = vadd.f32 %v290, %v322
        %v328 = vadd.f32 %v291, %v314
        %329 = vset.pattern.permute.xlu0 8
        %330 = vperm.xlu0 %329, %v196
        %v331 = vpop.permute.xlu0 %330
        %v333 = vunpack.c.l.s4 839922192
        %v334 = vunpack.c.0.s8 %v333
        %v335 = vlaneseq
        %v336 = vshrl.u32 %v335, 7
        %v337 = vsub.s32 %v334, %v336
        %v338 = vrot.slane %v331, %v337
        %v340 = vmul.f32 %v199, %v338
        %v341 = vmul.f32 %v200, %v338
        %v342 = vmul.f32 %v201, %v338
        %346 = vrot.lane.b32.xlu0 %v340, 93
        %v347 = vpop.permute.xlu0 %346
        %348 = vrot.lane.b32.xlu0 %v341, 93
        %v349 = vpop.permute.xlu0 %348
        %350 = vrot.lane.b32.xlu0 %v342, 93
        %v351 = vpop.permute.xlu0 %350
        %v352 = vrot.slane %v347, 4
        %v353 = vrot.slane %v349, 4
        %v354 = vrot.slane %v351, 4
        %v355 = vsel %vm243, %v352, %v353
        %vm356 = vcmask 760832
        %v357 = vsel %vm356, %v347, %v355
        %v358 = vsel %vm243, %v353, %v354
        %v359 = vsel %vm356, %v349, %v358
        %v363 = vadd.f32 %v326, %v357
        %v364 = vadd.f32 %v327, %v359
        %v365 = vadd.f32 %v328, %v351
        %366 = vset.pattern.permute.xlu0 9
        %367 = vperm.xlu0 %366, %v196
        %v368 = vpop.permute.xlu0 %367
        %v370 = vunpack.c.l.s4 839922192
        %v371 = vunpack.c.0.s8 %v370
        %v372 = vlaneseq
        %v373 = vshrl.u32 %v372, 7
        %v374 = vsub.s32 %v371, %v373
        %v375 = vrot.slane %v368, %v374
        %v377 = vmul.f32 %v199, %v375
        %v378 = vmul.f32 %v200, %v375
        %v379 = vmul.f32 %v201, %v375
        %383 = vrot.lane.b32.xlu0 %v377, 92
        %v384 = vpop.permute.xlu0 %383
        %385 = vrot.lane.b32.xlu0 %v378, 92
        %v386 = vpop.permute.xlu0 %385
        %387 = vrot.lane.b32.xlu0 %v379, 92
        %v388 = vpop.permute.xlu0 %387
        %v389 = vrot.slane %v384, 4
        %v390 = vrot.slane %v386, 4
        %v391 = vrot.slane %v388, 4
        %v392 = vsel %vm243, %v389, %v390
        %vm393 = vcmask 752640
        %v394 = vsel %vm393, %v384, %v392
        %v395 = vsel %vm243, %v390, %v391
        %v396 = vsel %vm393, %v386, %v395
        %v400 = vadd.f32 %v363, %v394
        %v401 = vadd.f32 %v364, %v396
        %v402 = vadd.f32 %v365, %v388
        %403 = vset.pattern.permute.xlu0 10
        %404 = vperm.xlu0 %403, %v196
        %v405 = vpop.permute.xlu0 %404
        %v407 = vunpack.c.l.s4 839922192
        %v408 = vunpack.c.0.s8 %v407
        %v409 = vlaneseq
        %v410 = vshrl.u32 %v409, 7
        %v411 = vsub.s32 %v408, %v410
        %v412 = vrot.slane %v405, %v411
        %v414 = vmul.f32 %v199, %v412
        %v415 = vmul.f32 %v200, %v412
        %v416 = vmul.f32 %v201, %v412
        %420 = vrot.lane.b32.xlu0 %v414, 91
        %v421 = vpop.permute.xlu0 %420
        %422 = vrot.lane.b32.xlu0 %v415, 91
        %v423 = vpop.permute.xlu0 %422
        %424 = vrot.lane.b32.xlu0 %v416, 91
        %v425 = vpop.permute.xlu0 %424
        %v426 = vrot.slane %v421, 4
        %v427 = vrot.slane %v423, 4
        %v428 = vrot.slane %v425, 4
        %v429 = vsel %vm243, %v426, %v427
        %vm430 = vcmask 744448
        %v431 = vsel %vm430, %v421, %v429
        %v432 = vsel %vm243, %v427, %v428
        %v433 = vsel %vm430, %v423, %v432
        %v437 = vadd.f32 %v400, %v431
        %v438 = vadd.f32 %v401, %v433
        %v439 = vadd.f32 %v402, %v425
        %440 = vset.pattern.permute.xlu0 11
        %441 = vperm.xlu0 %440, %v196
        %v442 = vpop.permute.xlu0 %441
        %v444 = vunpack.c.l.s4 839922192
        %v445 = vunpack.c.0.s8 %v444
        %v446 = vlaneseq
        %v447 = vshrl.u32 %v446, 7
        %v448 = vsub.s32 %v445, %v447
        %v449 = vrot.slane %v442, %v448
        %v451 = vmul.f32 %v199, %v449
        %v452 = vmul.f32 %v200, %v449
        %v453 = vmul.f32 %v201, %v449
        %457 = vrot.lane.b32.xlu0 %v451, 90
        %v458 = vpop.permute.xlu0 %457
        %459 = vrot.lane.b32.xlu0 %v452, 90
        %v460 = vpop.permute.xlu0 %459
        %461 = vrot.lane.b32.xlu0 %v453, 90
        %v462 = vpop.permute.xlu0 %461
        %v463 = vrot.slane %v458, 4
        %v464 = vrot.slane %v460, 4
        %v465 = vrot.slane %v462, 4
        %v466 = vsel %vm243, %v463, %v464
        %vm467 = vcmask 736256
        %v468 = vsel %vm467, %v458, %v466
        %v469 = vsel %vm243, %v464, %v465
        %v470 = vsel %vm467, %v460, %v469
        %v474 = vadd.f32 %v437, %v468
        %v475 = vadd.f32 %v438, %v470
        %v476 = vadd.f32 %v439, %v462
        %478 = vset.pattern.permute.xlu0 0
        %479 = vperm.xlu0 %478, %v198
        %v480 = vpop.permute.xlu0 %479
        %v485 = vcombine.high %v474, %v474
        %v486 = vcombine.high %v475, %v475
        %vm487 = vcmask 31744
        %v489 = vsel %vm487, %v197, 0
        %v491 = vsel %vm243, %v474, 0
        %v493 = vsel %vm243, %v485, 0
        %v495 = vsel %vm243, %v475, 0
        %v497 = vsel %vm243, %v486, 0
        %v499 = vsel %vm243, %v476, 0
        %501 = vmatprep.subr.mxu0 0.0
        %502 = vmatpush1.msra.mxu0 0.0
        %503 = vmatprep.subr.mxu0 0.0
        %504 = vmatpush1.msra.mxu0 0.0
        %505 = vmatprep.subr.mxu0 0.0
        %506 = vmatpush1.msra.mxu0 0.0
        %507 = vmatprep.subr.mxu0 0.0
        %508 = vmatpush1.msra.mxu0 0.0
        %509 = vmatprep.subr.mxu0 0.0
        %510 = vmatpush1.msra.mxu0 0.0
        %511 = vmatprep.subr.mxu0 0.0
        %512 = vmatpush1.msra.mxu0 0.0
        %513 = vmatprep.subr.mxu0 0.0
        %514 = vmatpush1.msra.mxu0 0.0
        %515 = vmatprep.subr.mxu0 0.0
        %516 = vmatpush1.msra.mxu0 0.0
        %517 = vmatprep.subr.mxu0 0.0
        %518 = vmatpush1.msra.mxu0 0.0
        %519 = vmatprep.subr.mxu0 0.0
        %520 = vmatpush1.msra.mxu0 0.0
        %521 = vmatprep.subr.mxu0 0.0
        %522 = vmatpush1.msra.mxu0 0.0
        %523 = vmatprep.subr.mxu0 0.0
        %524 = vmatpush1.msra.mxu0 0.0
        %525 = vmatprep.subr.mxu0 0.0
        %526 = vmatpush1.msra.mxu0 0.0
        %527 = vmatprep.subr.mxu0 0.0
        %528 = vmatpush1.msra.mxu0 0.0
        %529 = vmatprep.subr.mxu0 0.0
        %530 = vmatpush1.msra.mxu0 0.0
        %531 = vmatprep.subr.mxu0 %v493
        %532 = vmatpush1.msra.mxu0 %v491
        %533 = vmatprep.subr.mxu0 0.0
        %534 = vmatpush2.msra.mxu0 0.0
        %535 = vmatprep.subr.mxu0 0.0
        %536 = vmatpush2.msra.mxu0 0.0
        %537 = vmatprep.subr.mxu0 0.0
        %538 = vmatpush2.msra.mxu0 0.0
        %539 = vmatprep.subr.mxu0 0.0
        %540 = vmatpush2.msra.mxu0 0.0
        %541 = vmatprep.subr.mxu0 0.0
        %542 = vmatpush2.msra.mxu0 0.0
        %543 = vmatprep.subr.mxu0 0.0
        %544 = vmatpush2.msra.mxu0 0.0
        %545 = vmatprep.subr.mxu0 0.0
        %546 = vmatpush2.msra.mxu0 0.0
        %547 = vmatprep.subr.mxu0 0.0
        %548 = vmatpush2.msra.mxu0 0.0
        %549 = vmatprep.subr.mxu0 0.0
        %550 = vmatpush2.msra.mxu0 0.0
        %551 = vmatprep.subr.mxu0 0.0
        %552 = vmatpush2.msra.mxu0 0.0
        %553 = vmatprep.subr.mxu0 0.0
        %554 = vmatpush2.msra.mxu0 0.0
        %555 = vmatprep.subr.mxu0 0.0
        %556 = vmatpush2.msra.mxu0 0.0
        %557 = vmatprep.subr.mxu0 0.0
        %558 = vmatpush2.msra.mxu0 0.0
        %559 = vmatprep.subr.mxu0 0.0
        %560 = vmatpush2.msra.mxu0 0.0
        %561 = vmatprep.subr.mxu0 0.0
        %562 = vmatpush2.msra.mxu0 0.0
        %563 = vmatprep.subr.mxu0 0.0
        %564 = vmatpush2.msra.mxu0 0.0
        %565 = vmatprep.mubr.f32.mxu0 0.0
        %566 = vmatmul.mubr.f32.gmra.mxu0 %v489
        %v567 = vpop.f32.mrf.mxu0
        %v568 = vadd.f32 %v480, %v567
        %v569 = vpop.f32.mrf.mxu0
        %v570 = vadd.f32 %v480, %v569
        %571 = vdwg.mxu0
        %572 = vmatprep.subr.mxu0 0.0
        %573 = vmatpush1.msra.mxu0 0.0
        %574 = vmatprep.subr.mxu0 0.0
        %575 = vmatpush1.msra.mxu0 0.0
        %576 = vmatprep.subr.mxu0 0.0
        %577 = vmatpush1.msra.mxu0 0.0
        %578 = vmatprep.subr.mxu0 0.0
        %579 = vmatpush1.msra.mxu0 0.0
        %580 = vmatprep.subr.mxu0 0.0
        %581 = vmatpush1.msra.mxu0 0.0
        %582 = vmatprep.subr.mxu0 0.0
        %583 = vmatpush1.msra.mxu0 0.0
        %584 = vmatprep.subr.mxu0 0.0
        %585 = vmatpush1.msra.mxu0 0.0
        %586 = vmatprep.subr.mxu0 0.0
        %587 = vmatpush1.msra.mxu0 0.0
        %588 = vmatprep.subr.mxu0 0.0
        %589 = vmatpush1.msra.mxu0 0.0
        %590 = vmatprep.subr.mxu0 0.0
        %591 = vmatpush1.msra.mxu0 0.0
        %592 = vmatprep.subr.mxu0 0.0
        %593 = vmatpush1.msra.mxu0 0.0
        %594 = vmatprep.subr.mxu0 0.0
        %595 = vmatpush1.msra.mxu0 0.0
        %596 = vmatprep.subr.mxu0 0.0
        %597 = vmatpush1.msra.mxu0 0.0
        %598 = vmatprep.subr.mxu0 0.0
        %599 = vmatpush1.msra.mxu0 0.0
        %600 = vmatprep.subr.mxu0 0.0
        %601 = vmatpush1.msra.mxu0 0.0
        %602 = vmatprep.subr.mxu0 %v497
        %603 = vmatpush1.msra.mxu0 %v495
        %604 = vmatprep.subr.mxu0 0.0
        %605 = vmatpush2.msra.mxu0 0.0
        %606 = vmatprep.subr.mxu0 0.0
        %607 = vmatpush2.msra.mxu0 0.0
        %608 = vmatprep.subr.mxu0 0.0
        %609 = vmatpush2.msra.mxu0 0.0
        %610 = vmatprep.subr.mxu0 0.0
        %611 = vmatpush2.msra.mxu0 0.0
        %612 = vmatprep.subr.mxu0 0.0
        %613 = vmatpush2.msra.mxu0 0.0
        %614 = vmatprep.subr.mxu0 0.0
        %615 = vmatpush2.msra.mxu0 0.0
        %616 = vmatprep.subr.mxu0 0.0
        %617 = vmatpush2.msra.mxu0 0.0
        %618 = vmatprep.subr.mxu0 0.0
        %619 = vmatpush2.msra.mxu0 0.0
        %620 = vmatprep.subr.mxu0 0.0
        %621 = vmatpush2.msra.mxu0 0.0
        %622 = vmatprep.subr.mxu0 0.0
        %623 = vmatpush2.msra.mxu0 0.0
        %624 = vmatprep.subr.mxu0 0.0
        %625 = vmatpush2.msra.mxu0 0.0
        %626 = vmatprep.subr.mxu0 0.0
        %627 = vmatpush2.msra.mxu0 0.0
        %628 = vmatprep.subr.mxu0 0.0
        %629 = vmatpush2.msra.mxu0 0.0
        %630 = vmatprep.subr.mxu0 0.0
        %631 = vmatpush2.msra.mxu0 0.0
        %632 = vmatprep.subr.mxu0 0.0
        %633 = vmatpush2.msra.mxu0 0.0
        %634 = vmatprep.subr.mxu0 0.0
        %635 = vmatpush2.msra.mxu0 0.0
        %636 = vmatprep.mubr.f32.mxu0 0.0
        %637 = vmatmul.mubr.f32.gmra.mxu0 %v489
        %v638 = vpop.f32.mrf.mxu0
        %v639 = vadd.f32 %v480, %v638
        %v640 = vpop.f32.mrf.mxu0
        %v641 = vadd.f32 %v480, %v640
        %642 = vdwg.mxu0
        %643 = vmatprep.subr.mxu0 0.0
        %644 = vmatpush1.msra.mxu0 0.0
        %645 = vmatprep.subr.mxu0 0.0
        %646 = vmatpush1.msra.mxu0 0.0
        %647 = vmatprep.subr.mxu0 0.0
        %648 = vmatpush1.msra.mxu0 0.0
        %649 = vmatprep.subr.mxu0 0.0
        %650 = vmatpush1.msra.mxu0 0.0
        %651 = vmatprep.subr.mxu0 0.0
        %652 = vmatpush1.msra.mxu0 0.0
        %653 = vmatprep.subr.mxu0 0.0
        %654 = vmatpush1.msra.mxu0 0.0
        %655 = vmatprep.subr.mxu0 0.0
        %656 = vmatpush1.msra.mxu0 0.0
        %657 = vmatprep.subr.mxu0 0.0
        %658 = vmatpush1.msra.mxu0 0.0
        %659 = vmatprep.subr.mxu0 0.0
        %660 = vmatpush1.msra.mxu0 0.0
        %661 = vmatprep.subr.mxu0 0.0
        %662 = vmatpush1.msra.mxu0 0.0
        %663 = vmatprep.subr.mxu0 0.0
        %664 = vmatpush1.msra.mxu0 0.0
        %665 = vmatprep.subr.mxu0 0.0
        %666 = vmatpush1.msra.mxu0 0.0
        %667 = vmatprep.subr.mxu0 0.0
        %668 = vmatpush1.msra.mxu0 0.0
        %669 = vmatprep.subr.mxu0 0.0
        %670 = vmatpush1.msra.mxu0 0.0
        %671 = vmatprep.subr.mxu0 0.0
        %672 = vmatpush1.msra.mxu0 0.0
        %673 = vmatprep.subr.mxu0 0.0
        %674 = vmatpush1.msra.mxu0 %v499
        %675 = vmatprep.subr.mxu0 0.0
        %676 = vmatpush2.msra.mxu0 0.0
        %677 = vmatprep.subr.mxu0 0.0
        %678 = vmatpush2.msra.mxu0 0.0
        %679 = vmatprep.subr.mxu0 0.0
        %680 = vmatpush2.msra.mxu0 0.0
        %681 = vmatprep.subr.mxu0 0.0
        %682 = vmatpush2.msra.mxu0 0.0
        %683 = vmatprep.subr.mxu0 0.0
        %684 = vmatpush2.msra.mxu0 0.0
        %685 = vmatprep.subr.mxu0 0.0
        %686 = vmatpush2.msra.mxu0 0.0
        %687 = vmatprep.subr.mxu0 0.0
        %688 = vmatpush2.msra.mxu0 0.0
        %689 = vmatprep.subr.mxu0 0.0
        %690 = vmatpush2.msra.mxu0 0.0
        %691 = vmatprep.subr.mxu0 0.0
        %692 = vmatpush2.msra.mxu0 0.0
        %693 = vmatprep.subr.mxu0 0.0
        %694 = vmatpush2.msra.mxu0 0.0
        %695 = vmatprep.subr.mxu0 0.0
        %696 = vmatpush2.msra.mxu0 0.0
        %697 = vmatprep.subr.mxu0 0.0
        %698 = vmatpush2.msra.mxu0 0.0
        %699 = vmatprep.subr.mxu0 0.0
        %700 = vmatpush2.msra.mxu0 0.0
        %701 = vmatprep.subr.mxu0 0.0
        %702 = vmatpush2.msra.mxu0 0.0
        %703 = vmatprep.subr.mxu0 0.0
        %704 = vmatpush2.msra.mxu0 0.0
        %705 = vmatprep.subr.mxu0 0.0
        %706 = vmatpush2.msra.mxu0 0.0
        %707 = vmatprep.mubr.f32.mxu0 0.0
        %708 = vmatmul.mubr.f32.gmra.mxu0 %v489
        %v709 = vpop.f32.mrf.mxu0
        %v710 = vadd.f32 %v480, %v709
        %v711 = vpop.f32.mrf.mxu0
        %712 = vdwg.mxu0
        %v714 = vcombine.high %v568, %v568
        %v716 = vunpack.c.l.s4 1966171168
        %v717 = vunpack.c.0.s8 %v716
        %v718 = vlaneseq
        %v719 = vshrl.u32 %v718, 7
        %v720 = vsub.s32 %v717, %v719
        %v721 = vrot.slane %v568, %v720
        %v723 = vunpack.c.l.s4 1966171168
        %v724 = vunpack.c.0.s8 %v723
        %v725 = vlaneseq
        %v726 = vshrl.u32 %v725, 7
        %v727 = vsub.s32 %v724, %v726
        %v728 = vrot.slane %v714, %v727
        %v729 = vcombine.high %v721, %v721
        %v730 = vcombine.high %v728, %v728
        %v732 = vunpack.c.l.s4 1966171168
        %v733 = vunpack.c.0.s8 %v732
        %v734 = vlaneseq
        %v735 = vshrl.u32 %v734, 7
        %v736 = vsub.s32 %v733, %v735
        %v737 = vrot.slane %v721, %v736
        %v739 = vunpack.c.l.s4 1966171168
        %v740 = vunpack.c.0.s8 %v739
        %v741 = vlaneseq
        %v742 = vshrl.u32 %v741, 7
        %v743 = vsub.s32 %v740, %v742
        %v744 = vrot.slane %v728, %v743
        %v746 = vunpack.c.l.s4 1966171168
        %v747 = vunpack.c.0.s8 %v746
        %v748 = vlaneseq
        %v749 = vshrl.u32 %v748, 7
        %v750 = vsub.s32 %v747, %v749
        %v751 = vrot.slane %v729, %v750
        %v753 = vunpack.c.l.s4 1966171168
        %v754 = vunpack.c.0.s8 %v753
        %v755 = vlaneseq
        %v756 = vshrl.u32 %v755, 7
        %v757 = vsub.s32 %v754, %v756
        %v758 = vrot.slane %v730, %v757
        %v759 = vcombine.high %v737, %v737
        %v760 = vcombine.high %v744, %v744
        %v761 = vcombine.high %v751, %v751
        %v762 = vcombine.high %v758, %v758
        %vm771 = vcmask 253952
        %772 = vst.msk [vmem:[%s190] sm:$0x1] %vm771, %v737
        %773 = vst.msk [vmem:[%s190 + $0x20] sm:$0x1] %vm771, %v751
        %774 = vst.msk [vmem:[%s190 + $0x40] sm:$0x1] %vm771, %v759
        %775 = vst.msk [vmem:[%s190 + $0x60] sm:$0x1] %vm771, %v761
        %776 = vst.msk [vmem:[%s190 + $0x80] sm:$0x1] %vm771, %v744
        %777 = vst.msk [vmem:[%s190 + $0xa0] sm:$0x1] %vm771, %v758
        %778 = vst.msk [vmem:[%s190 + $0xc0] sm:$0x1] %vm771, %v760
        %779 = vst.msk [vmem:[%s190 + $0xe0] sm:$0x1] %vm771, %v762
        %v780 = vlaneseq
        %v781 = vshrl.u32 %v780, 7
        %v782 = vsub.s32 0, %v781
        %v783 = vrot.slane %v737, %v782
        %v784 = vlaneseq
        %v785 = vshrl.u32 %v784, 7
        %v786 = vsub.s32 0, %v785
        %v787 = vrot.slane %v751, %v786
        %v788 = vlaneseq
        %v789 = vshrl.u32 %v788, 7
        %v790 = vsub.s32 0, %v789
        %v791 = vrot.slane %v759, %v790
        %v792 = vlaneseq
        %v793 = vshrl.u32 %v792, 7
        %v794 = vsub.s32 0, %v793
        %v795 = vrot.slane %v761, %v794
        %v796 = vlaneseq
        %v797 = vshrl.u32 %v796, 7
        %v798 = vsub.s32 0, %v797
        %v799 = vrot.slane %v744, %v798
        %v800 = vlaneseq
        %v801 = vshrl.u32 %v800, 7
        %v802 = vsub.s32 0, %v801
        %v803 = vrot.slane %v758, %v802
        %v804 = vlaneseq
        %v805 = vshrl.u32 %v804, 7
        %v806 = vsub.s32 0, %v805
        %v807 = vrot.slane %v760, %v806
        %v808 = vlaneseq
        %v809 = vshrl.u32 %v808, 7
        %v810 = vsub.s32 0, %v809
        %v811 = vrot.slane %v762, %v810
        %812 = vrot.lane.b32.xlu0 %v783, 93
        %v813 = vpop.permute.xlu0 %812
        %814 = vrot.lane.b32.xlu0 %v787, 93
        %v815 = vpop.permute.xlu0 %814
        %816 = vrot.lane.b32.xlu0 %v791, 93
        %v817 = vpop.permute.xlu0 %816
        %818 = vrot.lane.b32.xlu0 %v795, 93
        %v819 = vpop.permute.xlu0 %818
        %820 = vrot.lane.b32.xlu0 %v799, 93
        %v821 = vpop.permute.xlu0 %820
        %822 = vrot.lane.b32.xlu0 %v803, 93
        %v823 = vpop.permute.xlu0 %822
        %824 = vrot.lane.b32.xlu0 %v807, 93
        %v825 = vpop.permute.xlu0 %824
        %826 = vrot.lane.b32.xlu0 %v811, 93
        %v827 = vpop.permute.xlu0 %826
        %836 = vst.msk [vmem:[%s190 + $0x2] sm:$0x1] %vm771, %v813
        %837 = vst.msk [vmem:[%s190 + $0x22] sm:$0x1] %vm771, %v815
        %838 = vst.msk [vmem:[%s190 + $0x42] sm:$0x1] %vm771, %v817
        %839 = vst.msk [vmem:[%s190 + $0x62] sm:$0x1] %vm771, %v819
        %840 = vst.msk [vmem:[%s190 + $0x82] sm:$0x1] %vm771, %v821
        %841 = vst.msk [vmem:[%s190 + $0xa2] sm:$0x1] %vm771, %v823
        %842 = vst.msk [vmem:[%s190 + $0xc2] sm:$0x1] %vm771, %v825
        %843 = vst.msk [vmem:[%s190 + $0xe2] sm:$0x1] %vm771, %v827
        %844 = vrot.lane.b32.xlu0 %v783, 58
        %v845 = vpop.permute.xlu0 %844
        %846 = vrot.lane.b32.xlu0 %v787, 58
        %v847 = vpop.permute.xlu0 %846
        %848 = vrot.lane.b32.xlu0 %v791, 58
        %v849 = vpop.permute.xlu0 %848
        %850 = vrot.lane.b32.xlu0 %v795, 58
        %v851 = vpop.permute.xlu0 %850
        %852 = vrot.lane.b32.xlu0 %v799, 58
        %v853 = vpop.permute.xlu0 %852
        %854 = vrot.lane.b32.xlu0 %v803, 58
        %v855 = vpop.permute.xlu0 %854
        %856 = vrot.lane.b32.xlu0 %v807, 58
        %v857 = vpop.permute.xlu0 %856
        %858 = vrot.lane.b32.xlu0 %v811, 58
        %v859 = vpop.permute.xlu0 %858
        %868 = vst.msk [vmem:[%s190 + $0x4] sm:$0x1] %vm771, %v845
        %869 = vst.msk [vmem:[%s190 + $0x24] sm:$0x1] %vm771, %v847
        %870 = vst.msk [vmem:[%s190 + $0x44] sm:$0x1] %vm771, %v849
        %871 = vst.msk [vmem:[%s190 + $0x64] sm:$0x1] %vm771, %v851
        %872 = vst.msk [vmem:[%s190 + $0x84] sm:$0x1] %vm771, %v853
        %873 = vst.msk [vmem:[%s190 + $0xa4] sm:$0x1] %vm771, %v855
        %874 = vst.msk [vmem:[%s190 + $0xc4] sm:$0x1] %vm771, %v857
        %875 = vst.msk [vmem:[%s190 + $0xe4] sm:$0x1] %vm771, %v859
        %v877 = vcombine.low %v568, %v570
        %v878 = vcombine.high %v568, %v570
        %v880 = vunpack.c.l.s4 1966171168
        %v881 = vunpack.c.0.s8 %v880
        %v882 = vlaneseq
        %v883 = vshrl.u32 %v882, 7
        %v884 = vsub.s32 %v881, %v883
        %v885 = vrot.slane %v877, %v884
        %v887 = vunpack.c.l.s4 1966171168
        %v888 = vunpack.c.0.s8 %v887
        %v889 = vlaneseq
        %v890 = vshrl.u32 %v889, 7
        %v891 = vsub.s32 %v888, %v890
        %v892 = vrot.slane %v878, %v891
        %v893 = vcombine.high %v885, %v885
        %v894 = vcombine.high %v892, %v892
        %v896 = vunpack.c.l.s4 1966171168
        %v897 = vunpack.c.0.s8 %v896
        %v898 = vlaneseq
        %v899 = vshrl.u32 %v898, 7
        %v900 = vsub.s32 %v897, %v899
        %v901 = vrot.slane %v885, %v900
        %v903 = vunpack.c.l.s4 1966171168
        %v904 = vunpack.c.0.s8 %v903
        %v905 = vlaneseq
        %v906 = vshrl.u32 %v905, 7
        %v907 = vsub.s32 %v904, %v906
        %v908 = vrot.slane %v892, %v907
        %v910 = vunpack.c.l.s4 1966171168
        %v911 = vunpack.c.0.s8 %v910
        %v912 = vlaneseq
        %v913 = vshrl.u32 %v912, 7
        %v914 = vsub.s32 %v911, %v913
        %v915 = vrot.slane %v893, %v914
        %v917 = vunpack.c.l.s4 1966171168
        %v918 = vunpack.c.0.s8 %v917
        %v919 = vlaneseq
        %v920 = vshrl.u32 %v919, 7
        %v921 = vsub.s32 %v918, %v920
        %v922 = vrot.slane %v894, %v921
        %v923 = vcombine.high %v901, %v901
        %v924 = vcombine.high %v908, %v908
        %v925 = vcombine.high %v915, %v915
        %v926 = vcombine.high %v922, %v922
        %v927 = vlaneseq
        %v928 = vshrl.u32 %v927, 7
        %v929 = vsub.s32 0, %v928
        %v930 = vrot.slane %v901, %v929
        %v931 = vlaneseq
        %v932 = vshrl.u32 %v931, 7
        %v933 = vsub.s32 1, %v932
        %v934 = vrot.slane %v901, %v933
        %v935 = vlaneseq
        %v936 = vshrl.u32 %v935, 7
        %v937 = vsub.s32 0, %v936
        %v938 = vrot.slane %v915, %v937
        %v939 = vlaneseq
        %v940 = vshrl.u32 %v939, 7
        %v941 = vsub.s32 1, %v940
        %v942 = vrot.slane %v915, %v941
        %v943 = vlaneseq
        %v944 = vshrl.u32 %v943, 7
        %v945 = vsub.s32 0, %v944
        %v946 = vrot.slane %v923, %v945
        %v947 = vlaneseq
        %v948 = vshrl.u32 %v947, 7
        %v949 = vsub.s32 1, %v948
        %v950 = vrot.slane %v923, %v949
        %v951 = vlaneseq
        %v952 = vshrl.u32 %v951, 7
        %v953 = vsub.s32 0, %v952
        %v954 = vrot.slane %v925, %v953
        %v955 = vlaneseq
        %v956 = vshrl.u32 %v955, 7
        %v957 = vsub.s32 1, %v956
        %v958 = vrot.slane %v925, %v957
        %v959 = vlaneseq
        %v960 = vshrl.u32 %v959, 7
        %v961 = vsub.s32 0, %v960
        %v962 = vrot.slane %v908, %v961
        %v963 = vlaneseq
        %v964 = vshrl.u32 %v963, 7
        %v965 = vsub.s32 1, %v964
        %v966 = vrot.slane %v908, %v965
        %v967 = vlaneseq
        %v968 = vshrl.u32 %v967, 7
        %v969 = vsub.s32 0, %v968
        %v970 = vrot.slane %v922, %v969
        %v971 = vlaneseq
        %v972 = vshrl.u32 %v971, 7
        %v973 = vsub.s32 1, %v972
        %v974 = vrot.slane %v922, %v973
        %v975 = vlaneseq
        %v976 = vshrl.u32 %v975, 7
        %v977 = vsub.s32 0, %v976
        %v978 = vrot.slane %v924, %v977
        %v979 = vlaneseq
        %v980 = vshrl.u32 %v979, 7
        %v981 = vsub.s32 1, %v980
        %v982 = vrot.slane %v924, %v981
        %v983 = vlaneseq
        %v984 = vshrl.u32 %v983, 7
        %v985 = vsub.s32 0, %v984
        %v986 = vrot.slane %v926, %v985
        %v987 = vlaneseq
        %v988 = vshrl.u32 %v987, 7
        %v989 = vsub.s32 1, %v988
        %v990 = vrot.slane %v926, %v989
        %991 = vrot.lane.b32.xlu0 %v930, 23
        %v992 = vpop.permute.xlu0 %991
        %993 = vrot.lane.b32.xlu0 %v934, 23
        %v994 = vpop.permute.xlu0 %993
        %995 = vrot.lane.b32.xlu0 %v938, 23
        %v996 = vpop.permute.xlu0 %995
        %997 = vrot.lane.b32.xlu0 %v942, 23
        %v998 = vpop.permute.xlu0 %997
        %999 = vrot.lane.b32.xlu0 %v946, 23
        %v1000 = vpop.permute.xlu0 %999
        %1001 = vrot.lane.b32.xlu0 %v950, 23
        %v1002 = vpop.permute.xlu0 %1001
        %1003 = vrot.lane.b32.xlu0 %v954, 23
        %v1004 = vpop.permute.xlu0 %1003
        %1005 = vrot.lane.b32.xlu0 %v958, 23
        %v1006 = vpop.permute.xlu0 %1005
        %1007 = vrot.lane.b32.xlu0 %v962, 23
        %v1008 = vpop.permute.xlu0 %1007
        %1009 = vrot.lane.b32.xlu0 %v966, 23
        %v1010 = vpop.permute.xlu0 %1009
        %1011 = vrot.lane.b32.xlu0 %v970, 23
        %v1012 = vpop.permute.xlu0 %1011
        %1013 = vrot.lane.b32.xlu0 %v974, 23
        %v1014 = vpop.permute.xlu0 %1013
        %1015 = vrot.lane.b32.xlu0 %v978, 23
        %v1016 = vpop.permute.xlu0 %1015
        %1017 = vrot.lane.b32.xlu0 %v982, 23
        %v1018 = vpop.permute.xlu0 %1017
        %1019 = vrot.lane.b32.xlu0 %v986, 23
        %v1020 = vpop.permute.xlu0 %1019
        %1021 = vrot.lane.b32.xlu0 %v990, 23
        %v1022 = vpop.permute.xlu0 %1021
        %vm1023 = vcmask 187392
        %v1024 = vsel %vm1023, %v992, %v994
        %v1025 = vsel %vm1023, %v996, %v998
        %v1026 = vsel %vm1023, %v1000, %v1002
        %v1027 = vsel %vm1023, %v1004, %v1006
        %v1028 = vsel %vm1023, %v1008, %v1010
        %v1029 = vsel %vm1023, %v1012, %v1014
        %v1030 = vsel %vm1023, %v1016, %v1018
        %v1031 = vsel %vm1023, %v1020, %v1022
        %1040 = vst.msk [vmem:[%s190 + $0x6] sm:$0x1] %vm771, %v1024
        %1041 = vst.msk [vmem:[%s190 + $0x26] sm:$0x1] %vm771, %v1025
        %1042 = vst.msk [vmem:[%s190 + $0x46] sm:$0x1] %vm771, %v1026
        %1043 = vst.msk [vmem:[%s190 + $0x66] sm:$0x1] %vm771, %v1027
        %1044 = vst.msk [vmem:[%s190 + $0x86] sm:$0x1] %vm771, %v1028
        %1045 = vst.msk [vmem:[%s190 + $0xa6] sm:$0x1] %vm771, %v1029
        %1046 = vst.msk [vmem:[%s190 + $0xc6] sm:$0x1] %vm771, %v1030
        %1047 = vst.msk [vmem:[%s190 + $0xe6] sm:$0x1] %vm771, %v1031
        %v1048 = vcombine.high %v570, %v570
        %v1050 = vunpack.c.l.s4 1966171168
        %v1051 = vunpack.c.0.s8 %v1050
        %v1052 = vlaneseq
        %v1053 = vshrl.u32 %v1052, 7
        %v1054 = vsub.s32 %v1051, %v1053
        %v1055 = vrot.slane %v570, %v1054
        %v1057 = vunpack.c.l.s4 1966171168
        %v1058 = vunpack.c.0.s8 %v1057
        %v1059 = vlaneseq
        %v1060 = vshrl.u32 %v1059, 7
        %v1061 = vsub.s32 %v1058, %v1060
        %v1062 = vrot.slane %v1048, %v1061
        %v1063 = vcombine.high %v1055, %v1055
        %v1064 = vcombine.high %v1062, %v1062
        %v1066 = vunpack.c.l.s4 1966171168
        %v1067 = vunpack.c.0.s8 %v1066
        %v1068 = vlaneseq
        %v1069 = vshrl.u32 %v1068, 7
        %v1070 = vsub.s32 %v1067, %v1069
        %v1071 = vrot.slane %v1055, %v1070
        %v1073 = vunpack.c.l.s4 1966171168
        %v1074 = vunpack.c.0.s8 %v1073
        %v1075 = vlaneseq
        %v1076 = vshrl.u32 %v1075, 7
        %v1077 = vsub.s32 %v1074, %v1076
        %v1078 = vrot.slane %v1062, %v1077
        %v1080 = vunpack.c.l.s4 1966171168
        %v1081 = vunpack.c.0.s8 %v1080
        %v1082 = vlaneseq
        %v1083 = vshrl.u32 %v1082, 7
        %v1084 = vsub.s32 %v1081, %v1083
        %v1085 = vrot.slane %v1063, %v1084
        %v1087 = vunpack.c.l.s4 1966171168
        %v1088 = vunpack.c.0.s8 %v1087
        %v1089 = vlaneseq
        %v1090 = vshrl.u32 %v1089, 7
        %v1091 = vsub.s32 %v1088, %v1090
        %v1092 = vrot.slane %v1064, %v1091
        %v1093 = vcombine.high %v1071, %v1071
        %v1094 = vcombine.high %v1078, %v1078
        %v1095 = vcombine.high %v1085, %v1085
        %v1096 = vcombine.high %v1092, %v1092
        %v1097 = vlaneseq
        %v1098 = vshrl.u32 %v1097, 7
        %v1099 = vsub.s32 0, %v1098
        %v1100 = vrot.slane %v1071, %v1099
        %v1101 = vlaneseq
        %v1102 = vshrl.u32 %v1101, 7
        %v1103 = vsub.s32 0, %v1102
        %v1104 = vrot.slane %v1085, %v1103
        %v1105 = vlaneseq
        %v1106 = vshrl.u32 %v1105, 7
        %v1107 = vsub.s32 0, %v1106
        %v1108 = vrot.slane %v1093, %v1107
        %v1109 = vlaneseq
        %v1110 = vshrl.u32 %v1109, 7
        %v1111 = vsub.s32 0, %v1110
        %v1112 = vrot.slane %v1095, %v1111
        %v1113 = vlaneseq
        %v1114 = vshrl.u32 %v1113, 7
        %v1115 = vsub.s32 0, %v1114
        %v1116 = vrot.slane %v1078, %v1115
        %v1117 = vlaneseq
        %v1118 = vshrl.u32 %v1117, 7
        %v1119 = vsub.s32 0, %v1118
        %v1120 = vrot.slane %v1092, %v1119
        %v1121 = vlaneseq
        %v1122 = vshrl.u32 %v1121, 7
        %v1123 = vsub.s32 0, %v1122
        %v1124 = vrot.slane %v1094, %v1123
        %v1125 = vlaneseq
        %v1126 = vshrl.u32 %v1125, 7
        %v1127 = vsub.s32 0, %v1126
        %v1128 = vrot.slane %v1096, %v1127
        %1129 = vrot.lane.b32.xlu0 %v1100, 116
        %v1130 = vpop.permute.xlu0 %1129
        %1131 = vrot.lane.b32.xlu0 %v1104, 116
        %v1132 = vpop.permute.xlu0 %1131
        %1133 = vrot.lane.b32.xlu0 %v1108, 116
        %v1134 = vpop.permute.xlu0 %1133
        %1135 = vrot.lane.b32.xlu0 %v1112, 116
        %v1136 = vpop.permute.xlu0 %1135
        %1137 = vrot.lane.b32.xlu0 %v1116, 116
        %v1138 = vpop.permute.xlu0 %1137
        %1139 = vrot.lane.b32.xlu0 %v1120, 116
        %v1140 = vpop.permute.xlu0 %1139
        %1141 = vrot.lane.b32.xlu0 %v1124, 116
        %v1142 = vpop.permute.xlu0 %1141
        %1143 = vrot.lane.b32.xlu0 %v1128, 116
        %v1144 = vpop.permute.xlu0 %1143
        %1153 = vst.msk [vmem:[%s190 + $0x8] sm:$0x1] %vm771, %v1130
        %1154 = vst.msk [vmem:[%s190 + $0x28] sm:$0x1] %vm771, %v1132
        %1155 = vst.msk [vmem:[%s190 + $0x48] sm:$0x1] %vm771, %v1134
        %1156 = vst.msk [vmem:[%s190 + $0x68] sm:$0x1] %vm771, %v1136
        %1157 = vst.msk [vmem:[%s190 + $0x88] sm:$0x1] %vm771, %v1138
        %1158 = vst.msk [vmem:[%s190 + $0xa8] sm:$0x1] %vm771, %v1140
        %1159 = vst.msk [vmem:[%s190 + $0xc8] sm:$0x1] %vm771, %v1142
        %1160 = vst.msk [vmem:[%s190 + $0xe8] sm:$0x1] %vm771, %v1144
        %1161 = vrot.lane.b32.xlu0 %v1100, 81
        %v1162 = vpop.permute.xlu0 %1161
        %1163 = vrot.lane.b32.xlu0 %v1104, 81
        %v1164 = vpop.permute.xlu0 %1163
        %1165 = vrot.lane.b32.xlu0 %v1108, 81
        %v1166 = vpop.permute.xlu0 %1165
        %1167 = vrot.lane.b32.xlu0 %v1112, 81
        %v1168 = vpop.permute.xlu0 %1167
        %1169 = vrot.lane.b32.xlu0 %v1116, 81
        %v1170 = vpop.permute.xlu0 %1169
        %1171 = vrot.lane.b32.xlu0 %v1120, 81
        %v1172 = vpop.permute.xlu0 %1171
        %1173 = vrot.lane.b32.xlu0 %v1124, 81
        %v1174 = vpop.permute.xlu0 %1173
        %1175 = vrot.lane.b32.xlu0 %v1128, 81
        %v1176 = vpop.permute.xlu0 %1175
        %1185 = vst.msk [vmem:[%s190 + $0xa] sm:$0x1] %vm771, %v1162
        %1186 = vst.msk [vmem:[%s190 + $0x2a] sm:$0x1] %vm771, %v1164
        %1187 = vst.msk [vmem:[%s190 + $0x4a] sm:$0x1] %vm771, %v1166
        %1188 = vst.msk [vmem:[%s190 + $0x6a] sm:$0x1] %vm771, %v1168
        %1189 = vst.msk [vmem:[%s190 + $0x8a] sm:$0x1] %vm771, %v1170
        %1190 = vst.msk [vmem:[%s190 + $0xaa] sm:$0x1] %vm771, %v1172
        %1191 = vst.msk [vmem:[%s190 + $0xca] sm:$0x1] %vm771, %v1174
        %1192 = vst.msk [vmem:[%s190 + $0xea] sm:$0x1] %vm771, %v1176
        %1193 = vrot.lane.b32.xlu0 %v1100, 46
        %v1194 = vpop.permute.xlu0 %1193
        %1195 = vrot.lane.b32.xlu0 %v1104, 46
        %v1196 = vpop.permute.xlu0 %1195
        %1197 = vrot.lane.b32.xlu0 %v1108, 46
        %v1198 = vpop.permute.xlu0 %1197
        %1199 = vrot.lane.b32.xlu0 %v1112, 46
        %v1200 = vpop.permute.xlu0 %1199
        %1201 = vrot.lane.b32.xlu0 %v1116, 46
        %v1202 = vpop.permute.xlu0 %1201
        %1203 = vrot.lane.b32.xlu0 %v1120, 46
        %v1204 = vpop.permute.xlu0 %1203
        %1205 = vrot.lane.b32.xlu0 %v1124, 46
        %v1206 = vpop.permute.xlu0 %1205
        %1207 = vrot.lane.b32.xlu0 %v1128, 46
        %v1208 = vpop.permute.xlu0 %1207
        %1217 = vst.msk [vmem:[%s190 + $0xc] sm:$0x1] %vm771, %v1194
        %1218 = vst.msk [vmem:[%s190 + $0x2c] sm:$0x1] %vm771, %v1196
        %1219 = vst.msk [vmem:[%s190 + $0x4c] sm:$0x1] %vm771, %v1198
        %1220 = vst.msk [vmem:[%s190 + $0x6c] sm:$0x1] %vm771, %v1200
        %1221 = vst.msk [vmem:[%s190 + $0x8c] sm:$0x1] %vm771, %v1202
        %1222 = vst.msk [vmem:[%s190 + $0xac] sm:$0x1] %vm771, %v1204
        %1223 = vst.msk [vmem:[%s190 + $0xcc] sm:$0x1] %vm771, %v1206
        %1224 = vst.msk [vmem:[%s190 + $0xec] sm:$0x1] %vm771, %v1208
        %v1226 = vcombine.low %v570, %v639
        %v1227 = vcombine.high %v570, %v639
        %v1229 = vunpack.c.l.s4 1966171168
        %v1230 = vunpack.c.0.s8 %v1229
        %v1231 = vlaneseq
        %v1232 = vshrl.u32 %v1231, 7
        %v1233 = vsub.s32 %v1230, %v1232
        %v1234 = vrot.slane %v1226, %v1233
        %v1236 = vunpack.c.l.s4 1966171168
        %v1237 = vunpack.c.0.s8 %v1236
        %v1238 = vlaneseq
        %v1239 = vshrl.u32 %v1238, 7
        %v1240 = vsub.s32 %v1237, %v1239
        %v1241 = vrot.slane %v1227, %v1240
        %v1242 = vcombine.high %v1234, %v1234
        %v1243 = vcombine.high %v1241, %v1241
        %v1245 = vunpack.c.l.s4 1966171168
        %v1246 = vunpack.c.0.s8 %v1245
        %v1247 = vlaneseq
        %v1248 = vshrl.u32 %v1247, 7
        %v1249 = vsub.s32 %v1246, %v1248
        %v1250 = vrot.slane %v1234, %v1249
        %v1252 = vunpack.c.l.s4 1966171168
        %v1253 = vunpack.c.0.s8 %v1252
        %v1254 = vlaneseq
        %v1255 = vshrl.u32 %v1254, 7
        %v1256 = vsub.s32 %v1253, %v1255
        %v1257 = vrot.slane %v1241, %v1256
        %v1259 = vunpack.c.l.s4 1966171168
        %v1260 = vunpack.c.0.s8 %v1259
        %v1261 = vlaneseq
        %v1262 = vshrl.u32 %v1261, 7
        %v1263 = vsub.s32 %v1260, %v1262
        %v1264 = vrot.slane %v1242, %v1263
        %v1266 = vunpack.c.l.s4 1966171168
        %v1267 = vunpack.c.0.s8 %v1266
        %v1268 = vlaneseq
        %v1269 = vshrl.u32 %v1268, 7
        %v1270 = vsub.s32 %v1267, %v1269
        %v1271 = vrot.slane %v1243, %v1270
        %v1272 = vcombine.high %v1250, %v1250
        %v1273 = vcombine.high %v1257, %v1257
        %v1274 = vcombine.high %v1264, %v1264
        %v1275 = vcombine.high %v1271, %v1271
        %v1276 = vlaneseq
        %v1277 = vshrl.u32 %v1276, 7
        %v1278 = vsub.s32 0, %v1277
        %v1279 = vrot.slane %v1250, %v1278
        %v1280 = vlaneseq
        %v1281 = vshrl.u32 %v1280, 7
        %v1282 = vsub.s32 1, %v1281
        %v1283 = vrot.slane %v1250, %v1282
        %v1284 = vlaneseq
        %v1285 = vshrl.u32 %v1284, 7
        %v1286 = vsub.s32 0, %v1285
        %v1287 = vrot.slane %v1264, %v1286
        %v1288 = vlaneseq
        %v1289 = vshrl.u32 %v1288, 7
        %v1290 = vsub.s32 1, %v1289
        %v1291 = vrot.slane %v1264, %v1290
        %v1292 = vlaneseq
        %v1293 = vshrl.u32 %v1292, 7
        %v1294 = vsub.s32 0, %v1293
        %v1295 = vrot.slane %v1272, %v1294
        %v1296 = vlaneseq
        %v1297 = vshrl.u32 %v1296, 7
        %v1298 = vsub.s32 1, %v1297
        %v1299 = vrot.slane %v1272, %v1298
        %v1300 = vlaneseq
        %v1301 = vshrl.u32 %v1300, 7
        %v1302 = vsub.s32 0, %v1301
        %v1303 = vrot.slane %v1274, %v1302
        %v1304 = vlaneseq
        %v1305 = vshrl.u32 %v1304, 7
        %v1306 = vsub.s32 1, %v1305
        %v1307 = vrot.slane %v1274, %v1306
        %v1308 = vlaneseq
        %v1309 = vshrl.u32 %v1308, 7
        %v1310 = vsub.s32 0, %v1309
        %v1311 = vrot.slane %v1257, %v1310
        %v1312 = vlaneseq
        %v1313 = vshrl.u32 %v1312, 7
        %v1314 = vsub.s32 1, %v1313
        %v1315 = vrot.slane %v1257, %v1314
        %v1316 = vlaneseq
        %v1317 = vshrl.u32 %v1316, 7
        %v1318 = vsub.s32 0, %v1317
        %v1319 = vrot.slane %v1271, %v1318
        %v1320 = vlaneseq
        %v1321 = vshrl.u32 %v1320, 7
        %v1322 = vsub.s32 1, %v1321
        %v1323 = vrot.slane %v1271, %v1322
        %v1324 = vlaneseq
        %v1325 = vshrl.u32 %v1324, 7
        %v1326 = vsub.s32 0, %v1325
        %v1327 = vrot.slane %v1273, %v1326
        %v1328 = vlaneseq
        %v1329 = vshrl.u32 %v1328, 7
        %v1330 = vsub.s32 1, %v1329
        %v1331 = vrot.slane %v1273, %v1330
        %v1332 = vlaneseq
        %v1333 = vshrl.u32 %v1332, 7
        %v1334 = vsub.s32 0, %v1333
        %v1335 = vrot.slane %v1275, %v1334
        %v1336 = vlaneseq
        %v1337 = vshrl.u32 %v1336, 7
        %v1338 = vsub.s32 1, %v1337
        %v1339 = vrot.slane %v1275, %v1338
        %1340 = vrot.lane.b32.xlu0 %v1279, 11
        %v1341 = vpop.permute.xlu0 %1340
        %1342 = vrot.lane.b32.xlu0 %v1283, 11
        %v1343 = vpop.permute.xlu0 %1342
        %1344 = vrot.lane.b32.xlu0 %v1287, 11
        %v1345 = vpop.permute.xlu0 %1344
        %1346 = vrot.lane.b32.xlu0 %v1291, 11
        %v1347 = vpop.permute.xlu0 %1346
        %1348 = vrot.lane.b32.xlu0 %v1295, 11
        %v1349 = vpop.permute.xlu0 %1348
        %1350 = vrot.lane.b32.xlu0 %v1299, 11
        %v1351 = vpop.permute.xlu0 %1350
        %1352 = vrot.lane.b32.xlu0 %v1303, 11
        %v1353 = vpop.permute.xlu0 %1352
        %1354 = vrot.lane.b32.xlu0 %v1307, 11
        %v1355 = vpop.permute.xlu0 %1354
        %1356 = vrot.lane.b32.xlu0 %v1311, 11
        %v1357 = vpop.permute.xlu0 %1356
        %1358 = vrot.lane.b32.xlu0 %v1315, 11
        %v1359 = vpop.permute.xlu0 %1358
        %1360 = vrot.lane.b32.xlu0 %v1319, 11
        %v1361 = vpop.permute.xlu0 %1360
        %1362 = vrot.lane.b32.xlu0 %v1323, 11
        %v1363 = vpop.permute.xlu0 %1362
        %1364 = vrot.lane.b32.xlu0 %v1327, 11
        %v1365 = vpop.permute.xlu0 %1364
        %1366 = vrot.lane.b32.xlu0 %v1331, 11
        %v1367 = vpop.permute.xlu0 %1366
        %1368 = vrot.lane.b32.xlu0 %v1335, 11
        %v1369 = vpop.permute.xlu0 %1368
        %1370 = vrot.lane.b32.xlu0 %v1339, 11
        %v1371 = vpop.permute.xlu0 %1370
        %vm1372 = vcmask 89088
        %v1373 = vsel %vm1372, %v1341, %v1343
        %v1374 = vsel %vm1372, %v1345, %v1347
        %v1375 = vsel %vm1372, %v1349, %v1351
        %v1376 = vsel %vm1372, %v1353, %v1355
        %v1377 = vsel %vm1372, %v1357, %v1359
        %v1378 = vsel %vm1372, %v1361, %v1363
        %v1379 = vsel %vm1372, %v1365, %v1367
        %v1380 = vsel %vm1372, %v1369, %v1371
        %1389 = vst.msk [vmem:[%s190 + $0xe] sm:$0x1] %vm771, %v1373
        %1390 = vst.msk [vmem:[%s190 + $0x2e] sm:$0x1] %vm771, %v1374
        %1391 = vst.msk [vmem:[%s190 + $0x4e] sm:$0x1] %vm771, %v1375
        %1392 = vst.msk [vmem:[%s190 + $0x6e] sm:$0x1] %vm771, %v1376
        %1393 = vst.msk [vmem:[%s190 + $0x8e] sm:$0x1] %vm771, %v1377
        %1394 = vst.msk [vmem:[%s190 + $0xae] sm:$0x1] %vm771, %v1378
        %1395 = vst.msk [vmem:[%s190 + $0xce] sm:$0x1] %vm771, %v1379
        %1396 = vst.msk [vmem:[%s190 + $0xee] sm:$0x1] %vm771, %v1380
        %v1397 = vcombine.high %v639, %v639
        %v1399 = vunpack.c.l.s4 1966171168
        %v1400 = vunpack.c.0.s8 %v1399
        %v1401 = vlaneseq
        %v1402 = vshrl.u32 %v1401, 7
        %v1403 = vsub.s32 %v1400, %v1402
        %v1404 = vrot.slane %v639, %v1403
        %v1406 = vunpack.c.l.s4 1966171168
        %v1407 = vunpack.c.0.s8 %v1406
        %v1408 = vlaneseq
        %v1409 = vshrl.u32 %v1408, 7
        %v1410 = vsub.s32 %v1407, %v1409
        %v1411 = vrot.slane %v1397, %v1410
        %v1412 = vcombine.high %v1404, %v1404
        %v1413 = vcombine.high %v1411, %v1411
        %v1415 = vunpack.c.l.s4 1966171168
        %v1416 = vunpack.c.0.s8 %v1415
        %v1417 = vlaneseq
        %v1418 = vshrl.u32 %v1417, 7
        %v1419 = vsub.s32 %v1416, %v1418
        %v1420 = vrot.slane %v1404, %v1419
        %v1422 = vunpack.c.l.s4 1966171168
        %v1423 = vunpack.c.0.s8 %v1422
        %v1424 = vlaneseq
        %v1425 = vshrl.u32 %v1424, 7
        %v1426 = vsub.s32 %v1423, %v1425
        %v1427 = vrot.slane %v1411, %v1426
        %v1429 = vunpack.c.l.s4 1966171168
        %v1430 = vunpack.c.0.s8 %v1429
        %v1431 = vlaneseq
        %v1432 = vshrl.u32 %v1431, 7
        %v1433 = vsub.s32 %v1430, %v1432
        %v1434 = vrot.slane %v1412, %v1433
        %v1436 = vunpack.c.l.s4 1966171168
        %v1437 = vunpack.c.0.s8 %v1436
        %v1438 = vlaneseq
        %v1439 = vshrl.u32 %v1438, 7
        %v1440 = vsub.s32 %v1437, %v1439
        %v1441 = vrot.slane %v1413, %v1440
        %v1442 = vcombine.high %v1420, %v1420
        %v1443 = vcombine.high %v1427, %v1427
        %v1444 = vcombine.high %v1434, %v1434
        %v1445 = vcombine.high %v1441, %v1441
        %v1446 = vlaneseq
        %v1447 = vshrl.u32 %v1446, 7
        %v1448 = vsub.s32 0, %v1447
        %v1449 = vrot.slane %v1420, %v1448
        %v1450 = vlaneseq
        %v1451 = vshrl.u32 %v1450, 7
        %v1452 = vsub.s32 0, %v1451
        %v1453 = vrot.slane %v1434, %v1452
        %v1454 = vlaneseq
        %v1455 = vshrl.u32 %v1454, 7
        %v1456 = vsub.s32 0, %v1455
        %v1457 = vrot.slane %v1442, %v1456
        %v1458 = vlaneseq
        %v1459 = vshrl.u32 %v1458, 7
        %v1460 = vsub.s32 0, %v1459
        %v1461 = vrot.slane %v1444, %v1460
        %v1462 = vlaneseq
        %v1463 = vshrl.u32 %v1462, 7
        %v1464 = vsub.s32 0, %v1463
        %v1465 = vrot.slane %v1427, %v1464
        %v1466 = vlaneseq
        %v1467 = vshrl.u32 %v1466, 7
        %v1468 = vsub.s32 0, %v1467
        %v1469 = vrot.slane %v1441, %v1468
        %v1470 = vlaneseq
        %v1471 = vshrl.u32 %v1470, 7
        %v1472 = vsub.s32 0, %v1471
        %v1473 = vrot.slane %v1443, %v1472
        %v1474 = vlaneseq
        %v1475 = vshrl.u32 %v1474, 7
        %v1476 = vsub.s32 0, %v1475
        %v1477 = vrot.slane %v1445, %v1476
        %1478 = vrot.lane.b32.xlu0 %v1449, 104
        %v1479 = vpop.permute.xlu0 %1478
        %1480 = vrot.lane.b32.xlu0 %v1453, 104
        %v1481 = vpop.permute.xlu0 %1480
        %1482 = vrot.lane.b32.xlu0 %v1457, 104
        %v1483 = vpop.permute.xlu0 %1482
        %1484 = vrot.lane.b32.xlu0 %v1461, 104
        %v1485 = vpop.permute.xlu0 %1484
        %1486 = vrot.lane.b32.xlu0 %v1465, 104
        %v1487 = vpop.permute.xlu0 %1486
        %1488 = vrot.lane.b32.xlu0 %v1469, 104
        %v1489 = vpop.permute.xlu0 %1488
        %1490 = vrot.lane.b32.xlu0 %v1473, 104
        %v1491 = vpop.permute.xlu0 %1490
        %1492 = vrot.lane.b32.xlu0 %v1477, 104
        %v1493 = vpop.permute.xlu0 %1492
        %1502 = vst.msk [vmem:[%s190 + $0x10] sm:$0x1] %vm771, %v1479
        %1503 = vst.msk [vmem:[%s190 + $0x30] sm:$0x1] %vm771, %v1481
        %1504 = vst.msk [vmem:[%s190 + $0x50] sm:$0x1] %vm771, %v1483
        %1505 = vst.msk [vmem:[%s190 + $0x70] sm:$0x1] %vm771, %v1485
        %1506 = vst.msk [vmem:[%s190 + $0x90] sm:$0x1] %vm771, %v1487
        %1507 = vst.msk [vmem:[%s190 + $0xb0] sm:$0x1] %vm771, %v1489
        %1508 = vst.msk [vmem:[%s190 + $0xd0] sm:$0x1] %vm771, %v1491
        %1509 = vst.msk [vmem:[%s190 + $0xf0] sm:$0x1] %vm771, %v1493
        %1510 = vrot.lane.b32.xlu0 %v1449, 69
        %v1511 = vpop.permute.xlu0 %1510
        %1512 = vrot.lane.b32.xlu0 %v1453, 69
        %v1513 = vpop.permute.xlu0 %1512
        %1514 = vrot.lane.b32.xlu0 %v1457, 69
        %v1515 = vpop.permute.xlu0 %1514
        %1516 = vrot.lane.b32.xlu0 %v1461, 69
        %v1517 = vpop.permute.xlu0 %1516
        %1518 = vrot.lane.b32.xlu0 %v1465, 69
        %v1519 = vpop.permute.xlu0 %1518
        %1520 = vrot.lane.b32.xlu0 %v1469, 69
        %v1521 = vpop.permute.xlu0 %1520
        %1522 = vrot.lane.b32.xlu0 %v1473, 69
        %v1523 = vpop.permute.xlu0 %1522
        %1524 = vrot.lane.b32.xlu0 %v1477, 69
        %v1525 = vpop.permute.xlu0 %1524
        %1534 = vst.msk [vmem:[%s190 + $0x12] sm:$0x1] %vm771, %v1511
        %1535 = vst.msk [vmem:[%s190 + $0x32] sm:$0x1] %vm771, %v1513
        %1536 = vst.msk [vmem:[%s190 + $0x52] sm:$0x1] %vm771, %v1515
        %1537 = vst.msk [vmem:[%s190 + $0x72] sm:$0x1] %vm771, %v1517
        %1538 = vst.msk [vmem:[%s190 + $0x92] sm:$0x1] %vm771, %v1519
        %1539 = vst.msk [vmem:[%s190 + $0xb2] sm:$0x1] %vm771, %v1521
        %1540 = vst.msk [vmem:[%s190 + $0xd2] sm:$0x1] %vm771, %v1523
        %1541 = vst.msk [vmem:[%s190 + $0xf2] sm:$0x1] %vm771, %v1525
        %1542 = vrot.lane.b32.xlu0 %v1449, 34
        %v1543 = vpop.permute.xlu0 %1542
        %1544 = vrot.lane.b32.xlu0 %v1453, 34
        %v1545 = vpop.permute.xlu0 %1544
        %1546 = vrot.lane.b32.xlu0 %v1457, 34
        %v1547 = vpop.permute.xlu0 %1546
        %1548 = vrot.lane.b32.xlu0 %v1461, 34
        %v1549 = vpop.permute.xlu0 %1548
        %1550 = vrot.lane.b32.xlu0 %v1465, 34
        %v1551 = vpop.permute.xlu0 %1550
        %1552 = vrot.lane.b32.xlu0 %v1469, 34
        %v1553 = vpop.permute.xlu0 %1552
        %1554 = vrot.lane.b32.xlu0 %v1473, 34
        %v1555 = vpop.permute.xlu0 %1554
        %1556 = vrot.lane.b32.xlu0 %v1477, 34
        %v1557 = vpop.permute.xlu0 %1556
        %1566 = vst.msk [vmem:[%s190 + $0x14] sm:$0x1] %vm771, %v1543
        %1567 = vst.msk [vmem:[%s190 + $0x34] sm:$0x1] %vm771, %v1545
        %1568 = vst.msk [vmem:[%s190 + $0x54] sm:$0x1] %vm771, %v1547
        %1569 = vst.msk [vmem:[%s190 + $0x74] sm:$0x1] %vm771, %v1549
        %1570 = vst.msk [vmem:[%s190 + $0x94] sm:$0x1] %vm771, %v1551
        %1571 = vst.msk [vmem:[%s190 + $0xb4] sm:$0x1] %vm771, %v1553
        %1572 = vst.msk [vmem:[%s190 + $0xd4] sm:$0x1] %vm771, %v1555
        %1573 = vst.msk [vmem:[%s190 + $0xf4] sm:$0x1] %vm771, %v1557
        %v1575 = vcombine.high %v641, %v641
        %v1577 = vunpack.c.l.s4 1966171168
        %v1578 = vunpack.c.0.s8 %v1577
        %v1579 = vlaneseq
        %v1580 = vshrl.u32 %v1579, 7
        %v1581 = vsub.s32 %v1578, %v1580
        %v1582 = vrot.slane %v641, %v1581
        %v1584 = vunpack.c.l.s4 1966171168
        %v1585 = vunpack.c.0.s8 %v1584
        %v1586 = vlaneseq
        %v1587 = vshrl.u32 %v1586, 7
        %v1588 = vsub.s32 %v1585, %v1587
        %v1589 = vrot.slane %v1575, %v1588
        %v1590 = vcombine.high %v1582, %v1582
        %v1591 = vcombine.high %v1589, %v1589
        %v1593 = vunpack.c.l.s4 1966171168
        %v1594 = vunpack.c.0.s8 %v1593
        %v1595 = vlaneseq
        %v1596 = vshrl.u32 %v1595, 7
        %v1597 = vsub.s32 %v1594, %v1596
        %v1598 = vrot.slane %v1582, %v1597
        %v1600 = vunpack.c.l.s4 1966171168
        %v1601 = vunpack.c.0.s8 %v1600
        %v1602 = vlaneseq
        %v1603 = vshrl.u32 %v1602, 7
        %v1604 = vsub.s32 %v1601, %v1603
        %v1605 = vrot.slane %v1589, %v1604
        %v1607 = vunpack.c.l.s4 1966171168
        %v1608 = vunpack.c.0.s8 %v1607
        %v1609 = vlaneseq
        %v1610 = vshrl.u32 %v1609, 7
        %v1611 = vsub.s32 %v1608, %v1610
        %v1612 = vrot.slane %v1590, %v1611
        %v1614 = vunpack.c.l.s4 1966171168
        %v1615 = vunpack.c.0.s8 %v1614
        %v1616 = vlaneseq
        %v1617 = vshrl.u32 %v1616, 7
        %v1618 = vsub.s32 %v1615, %v1617
        %v1619 = vrot.slane %v1591, %v1618
        %v1620 = vcombine.high %v1598, %v1598
        %v1621 = vcombine.high %v1605, %v1605
        %v1622 = vcombine.high %v1612, %v1612
        %v1623 = vcombine.high %v1619, %v1619
        %v1624 = vlaneseq
        %v1625 = vshrl.u32 %v1624, 7
        %v1626 = vsub.s32 0, %v1625
        %v1627 = vrot.slane %v1598, %v1626
        %v1628 = vlaneseq
        %v1629 = vshrl.u32 %v1628, 7
        %v1630 = vsub.s32 0, %v1629
        %v1631 = vrot.slane %v1612, %v1630
        %v1632 = vlaneseq
        %v1633 = vshrl.u32 %v1632, 7
        %v1634 = vsub.s32 0, %v1633
        %v1635 = vrot.slane %v1620, %v1634
        %v1636 = vlaneseq
        %v1637 = vshrl.u32 %v1636, 7
        %v1638 = vsub.s32 0, %v1637
        %v1639 = vrot.slane %v1622, %v1638
        %v1640 = vlaneseq
        %v1641 = vshrl.u32 %v1640, 7
        %v1642 = vsub.s32 0, %v1641
        %v1643 = vrot.slane %v1605, %v1642
        %v1644 = vlaneseq
        %v1645 = vshrl.u32 %v1644, 7
        %v1646 = vsub.s32 0, %v1645
        %v1647 = vrot.slane %v1619, %v1646
        %v1648 = vlaneseq
        %v1649 = vshrl.u32 %v1648, 7
        %v1650 = vsub.s32 0, %v1649
        %v1651 = vrot.slane %v1621, %v1650
        %v1652 = vlaneseq
        %v1653 = vshrl.u32 %v1652, 7
        %v1654 = vsub.s32 0, %v1653
        %v1655 = vrot.slane %v1623, %v1654
        %1656 = vrot.lane.b32.xlu0 %v1627, 127
        %v1657 = vpop.permute.xlu0 %1656
        %1658 = vrot.lane.b32.xlu0 %v1631, 127
        %v1659 = vpop.permute.xlu0 %1658
        %1660 = vrot.lane.b32.xlu0 %v1635, 127
        %v1661 = vpop.permute.xlu0 %1660
        %1662 = vrot.lane.b32.xlu0 %v1639, 127
        %v1663 = vpop.permute.xlu0 %1662
        %1664 = vrot.lane.b32.xlu0 %v1643, 127
        %v1665 = vpop.permute.xlu0 %1664
        %1666 = vrot.lane.b32.xlu0 %v1647, 127
        %v1667 = vpop.permute.xlu0 %1666
        %1668 = vrot.lane.b32.xlu0 %v1651, 127
        %v1669 = vpop.permute.xlu0 %1668
        %1670 = vrot.lane.b32.xlu0 %v1655, 127
        %v1671 = vpop.permute.xlu0 %1670
        %1680 = vst.msk [vmem:[%s190 + $0x16] sm:$0x1] %vm771, %v1657
        %1681 = vst.msk [vmem:[%s190 + $0x36] sm:$0x1] %vm771, %v1659
        %1682 = vst.msk [vmem:[%s190 + $0x56] sm:$0x1] %vm771, %v1661
        %1683 = vst.msk [vmem:[%s190 + $0x76] sm:$0x1] %vm771, %v1663
        %1684 = vst.msk [vmem:[%s190 + $0x96] sm:$0x1] %vm771, %v1665
        %1685 = vst.msk [vmem:[%s190 + $0xb6] sm:$0x1] %vm771, %v1667
        %1686 = vst.msk [vmem:[%s190 + $0xd6] sm:$0x1] %vm771, %v1669
        %1687 = vst.msk [vmem:[%s190 + $0xf6] sm:$0x1] %vm771, %v1671
        %1688 = vrot.lane.b32.xlu0 %v1627, 92
        %v1689 = vpop.permute.xlu0 %1688
        %1690 = vrot.lane.b32.xlu0 %v1631, 92
        %v1691 = vpop.permute.xlu0 %1690
        %1692 = vrot.lane.b32.xlu0 %v1635, 92
        %v1693 = vpop.permute.xlu0 %1692
        %1694 = vrot.lane.b32.xlu0 %v1639, 92
        %v1695 = vpop.permute.xlu0 %1694
        %1696 = vrot.lane.b32.xlu0 %v1643, 92
        %v1697 = vpop.permute.xlu0 %1696
        %1698 = vrot.lane.b32.xlu0 %v1647, 92
        %v1699 = vpop.permute.xlu0 %1698
        %1700 = vrot.lane.b32.xlu0 %v1651, 92
        %v1701 = vpop.permute.xlu0 %1700
        %1702 = vrot.lane.b32.xlu0 %v1655, 92
        %v1703 = vpop.permute.xlu0 %1702
        %1712 = vst.msk [vmem:[%s190 + $0x18] sm:$0x1] %vm771, %v1689
        %1713 = vst.msk [vmem:[%s190 + $0x38] sm:$0x1] %vm771, %v1691
        %1714 = vst.msk [vmem:[%s190 + $0x58] sm:$0x1] %vm771, %v1693
        %1715 = vst.msk [vmem:[%s190 + $0x78] sm:$0x1] %vm771, %v1695
        %1716 = vst.msk [vmem:[%s190 + $0x98] sm:$0x1] %vm771, %v1697
        %1717 = vst.msk [vmem:[%s190 + $0xb8] sm:$0x1] %vm771, %v1699
        %1718 = vst.msk [vmem:[%s190 + $0xd8] sm:$0x1] %vm771, %v1701
        %1719 = vst.msk [vmem:[%s190 + $0xf8] sm:$0x1] %vm771, %v1703
        %1720 = vrot.lane.b32.xlu0 %v1627, 57
        %v1721 = vpop.permute.xlu0 %1720
        %1722 = vrot.lane.b32.xlu0 %v1631, 57
        %v1723 = vpop.permute.xlu0 %1722
        %1724 = vrot.lane.b32.xlu0 %v1635, 57
        %v1725 = vpop.permute.xlu0 %1724
        %1726 = vrot.lane.b32.xlu0 %v1639, 57
        %v1727 = vpop.permute.xlu0 %1726
        %1728 = vrot.lane.b32.xlu0 %v1643, 57
        %v1729 = vpop.permute.xlu0 %1728
        %1730 = vrot.lane.b32.xlu0 %v1647, 57
        %v1731 = vpop.permute.xlu0 %1730
        %1732 = vrot.lane.b32.xlu0 %v1651, 57
        %v1733 = vpop.permute.xlu0 %1732
        %1734 = vrot.lane.b32.xlu0 %v1655, 57
        %v1735 = vpop.permute.xlu0 %1734
        %1744 = vst.msk [vmem:[%s190 + $0x1a] sm:$0x1] %vm771, %v1721
        %1745 = vst.msk [vmem:[%s190 + $0x3a] sm:$0x1] %vm771, %v1723
        %1746 = vst.msk [vmem:[%s190 + $0x5a] sm:$0x1] %vm771, %v1725
        %1747 = vst.msk [vmem:[%s190 + $0x7a] sm:$0x1] %vm771, %v1727
        %1748 = vst.msk [vmem:[%s190 + $0x9a] sm:$0x1] %vm771, %v1729
        %1749 = vst.msk [vmem:[%s190 + $0xba] sm:$0x1] %vm771, %v1731
        %1750 = vst.msk [vmem:[%s190 + $0xda] sm:$0x1] %vm771, %v1733
        %1751 = vst.msk [vmem:[%s190 + $0xfa] sm:$0x1] %vm771, %v1735
        %v1753 = vcombine.low %v641, %v710
        %v1754 = vcombine.high %v641, %v710
        %v1756 = vunpack.c.l.s4 1966171168
        %v1757 = vunpack.c.0.s8 %v1756
        %v1758 = vlaneseq
        %v1759 = vshrl.u32 %v1758, 7
        %v1760 = vsub.s32 %v1757, %v1759
        %v1761 = vrot.slane %v1753, %v1760
        %v1763 = vunpack.c.l.s4 1966171168
        %v1764 = vunpack.c.0.s8 %v1763
        %v1765 = vlaneseq
        %v1766 = vshrl.u32 %v1765, 7
        %v1767 = vsub.s32 %v1764, %v1766
        %v1768 = vrot.slane %v1754, %v1767
        %v1769 = vcombine.high %v1761, %v1761
        %v1770 = vcombine.high %v1768, %v1768
        %v1772 = vunpack.c.l.s4 1966171168
        %v1773 = vunpack.c.0.s8 %v1772
        %v1774 = vlaneseq
        %v1775 = vshrl.u32 %v1774, 7
        %v1776 = vsub.s32 %v1773, %v1775
        %v1777 = vrot.slane %v1761, %v1776
        %v1779 = vunpack.c.l.s4 1966171168
        %v1780 = vunpack.c.0.s8 %v1779
        %v1781 = vlaneseq
        %v1782 = vshrl.u32 %v1781, 7
        %v1783 = vsub.s32 %v1780, %v1782
        %v1784 = vrot.slane %v1768, %v1783
        %v1786 = vunpack.c.l.s4 1966171168
        %v1787 = vunpack.c.0.s8 %v1786
        %v1788 = vlaneseq
        %v1789 = vshrl.u32 %v1788, 7
        %v1790 = vsub.s32 %v1787, %v1789
        %v1791 = vrot.slane %v1769, %v1790
        %v1793 = vunpack.c.l.s4 1966171168
        %v1794 = vunpack.c.0.s8 %v1793
        %v1795 = vlaneseq
        %v1796 = vshrl.u32 %v1795, 7
        %v1797 = vsub.s32 %v1794, %v1796
        %v1798 = vrot.slane %v1770, %v1797
        %v1799 = vcombine.high %v1777, %v1777
        %v1800 = vcombine.high %v1784, %v1784
        %v1801 = vcombine.high %v1791, %v1791
        %v1802 = vcombine.high %v1798, %v1798
        %v1803 = vlaneseq
        %v1804 = vshrl.u32 %v1803, 7
        %v1805 = vsub.s32 0, %v1804
        %v1806 = vrot.slane %v1777, %v1805
        %v1807 = vlaneseq
        %v1808 = vshrl.u32 %v1807, 7
        %v1809 = vsub.s32 1, %v1808
        %v1810 = vrot.slane %v1777, %v1809
        %v1811 = vlaneseq
        %v1812 = vshrl.u32 %v1811, 7
        %v1813 = vsub.s32 0, %v1812
        %v1814 = vrot.slane %v1791, %v1813
        %v1815 = vlaneseq
        %v1816 = vshrl.u32 %v1815, 7
        %v1817 = vsub.s32 1, %v1816
        %v1818 = vrot.slane %v1791, %v1817
        %v1819 = vlaneseq
        %v1820 = vshrl.u32 %v1819, 7
        %v1821 = vsub.s32 0, %v1820
        %v1822 = vrot.slane %v1799, %v1821
        %v1823 = vlaneseq
        %v1824 = vshrl.u32 %v1823, 7
        %v1825 = vsub.s32 1, %v1824
        %v1826 = vrot.slane %v1799, %v1825
        %v1827 = vlaneseq
        %v1828 = vshrl.u32 %v1827, 7
        %v1829 = vsub.s32 0, %v1828
        %v1830 = vrot.slane %v1801, %v1829
        %v1831 = vlaneseq
        %v1832 = vshrl.u32 %v1831, 7
        %v1833 = vsub.s32 1, %v1832
        %v1834 = vrot.slane %v1801, %v1833
        %v1835 = vlaneseq
        %v1836 = vshrl.u32 %v1835, 7
        %v1837 = vsub.s32 0, %v1836
        %v1838 = vrot.slane %v1784, %v1837
        %v1839 = vlaneseq
        %v1840 = vshrl.u32 %v1839, 7
        %v1841 = vsub.s32 1, %v1840
        %v1842 = vrot.slane %v1784, %v1841
        %v1843 = vlaneseq
        %v1844 = vshrl.u32 %v1843, 7
        %v1845 = vsub.s32 0, %v1844
        %v1846 = vrot.slane %v1798, %v1845
        %v1847 = vlaneseq
        %v1848 = vshrl.u32 %v1847, 7
        %v1849 = vsub.s32 1, %v1848
        %v1850 = vrot.slane %v1798, %v1849
        %v1851 = vlaneseq
        %v1852 = vshrl.u32 %v1851, 7
        %v1853 = vsub.s32 0, %v1852
        %v1854 = vrot.slane %v1800, %v1853
        %v1855 = vlaneseq
        %v1856 = vshrl.u32 %v1855, 7
        %v1857 = vsub.s32 1, %v1856
        %v1858 = vrot.slane %v1800, %v1857
        %v1859 = vlaneseq
        %v1860 = vshrl.u32 %v1859, 7
        %v1861 = vsub.s32 0, %v1860
        %v1862 = vrot.slane %v1802, %v1861
        %v1863 = vlaneseq
        %v1864 = vshrl.u32 %v1863, 7
        %v1865 = vsub.s32 1, %v1864
        %v1866 = vrot.slane %v1802, %v1865
        %1867 = vrot.lane.b32.xlu0 %v1806, 22
        %v1868 = vpop.permute.xlu0 %1867
        %1869 = vrot.lane.b32.xlu0 %v1810, 22
        %v1870 = vpop.permute.xlu0 %1869
        %1871 = vrot.lane.b32.xlu0 %v1814, 22
        %v1872 = vpop.permute.xlu0 %1871
        %1873 = vrot.lane.b32.xlu0 %v1818, 22
        %v1874 = vpop.permute.xlu0 %1873
        %1875 = vrot.lane.b32.xlu0 %v1822, 22
        %v1876 = vpop.permute.xlu0 %1875
        %1877 = vrot.lane.b32.xlu0 %v1826, 22
        %v1878 = vpop.permute.xlu0 %1877
        %1879 = vrot.lane.b32.xlu0 %v1830, 22
        %v1880 = vpop.permute.xlu0 %1879
        %1881 = vrot.lane.b32.xlu0 %v1834, 22
        %v1882 = vpop.permute.xlu0 %1881
        %1883 = vrot.lane.b32.xlu0 %v1838, 22
        %v1884 = vpop.permute.xlu0 %1883
        %1885 = vrot.lane.b32.xlu0 %v1842, 22
        %v1886 = vpop.permute.xlu0 %1885
        %1887 = vrot.lane.b32.xlu0 %v1846, 22
        %v1888 = vpop.permute.xlu0 %1887
        %1889 = vrot.lane.b32.xlu0 %v1850, 22
        %v1890 = vpop.permute.xlu0 %1889
        %1891 = vrot.lane.b32.xlu0 %v1854, 22
        %v1892 = vpop.permute.xlu0 %1891
        %1893 = vrot.lane.b32.xlu0 %v1858, 22
        %v1894 = vpop.permute.xlu0 %1893
        %1895 = vrot.lane.b32.xlu0 %v1862, 22
        %v1896 = vpop.permute.xlu0 %1895
        %1897 = vrot.lane.b32.xlu0 %v1866, 22
        %v1898 = vpop.permute.xlu0 %1897
        %vm1899 = vcmask 179200
        %v1900 = vsel %vm1899, %v1868, %v1870
        %v1901 = vsel %vm1899, %v1872, %v1874
        %v1902 = vsel %vm1899, %v1876, %v1878
        %v1903 = vsel %vm1899, %v1880, %v1882
        %v1904 = vsel %vm1899, %v1884, %v1886
        %v1905 = vsel %vm1899, %v1888, %v1890
        %v1906 = vsel %vm1899, %v1892, %v1894
        %v1907 = vsel %vm1899, %v1896, %v1898
        %1916 = vst.msk [vmem:[%s190 + $0x1c] sm:$0x1] %vm771, %v1900
        %1917 = vst.msk [vmem:[%s190 + $0x3c] sm:$0x1] %vm771, %v1901
        %1918 = vst.msk [vmem:[%s190 + $0x5c] sm:$0x1] %vm771, %v1902
        %1919 = vst.msk [vmem:[%s190 + $0x7c] sm:$0x1] %vm771, %v1903
        %1920 = vst.msk [vmem:[%s190 + $0x9c] sm:$0x1] %vm771, %v1904
        %1921 = vst.msk [vmem:[%s190 + $0xbc] sm:$0x1] %vm771, %v1905
        %1922 = vst.msk [vmem:[%s190 + $0xdc] sm:$0x1] %vm771, %v1906
        %1923 = vst.msk [vmem:[%s190 + $0xfc] sm:$0x1] %vm771, %v1907
        %v1924 = vcombine.high %v710, %v710
        %v1926 = vunpack.c.l.s4 1966171168
        %v1927 = vunpack.c.0.s8 %v1926
        %v1928 = vlaneseq
        %v1929 = vshrl.u32 %v1928, 7
        %v1930 = vsub.s32 %v1927, %v1929
        %v1931 = vrot.slane %v710, %v1930
        %v1933 = vunpack.c.l.s4 1966171168
        %v1934 = vunpack.c.0.s8 %v1933
        %v1935 = vlaneseq
        %v1936 = vshrl.u32 %v1935, 7
        %v1937 = vsub.s32 %v1934, %v1936
        %v1938 = vrot.slane %v1924, %v1937
        %v1939 = vcombine.high %v1931, %v1931
        %v1940 = vcombine.high %v1938, %v1938
        %v1942 = vunpack.c.l.s4 1966171168
        %v1943 = vunpack.c.0.s8 %v1942
        %v1944 = vlaneseq
        %v1945 = vshrl.u32 %v1944, 7
        %v1946 = vsub.s32 %v1943, %v1945
        %v1947 = vrot.slane %v1931, %v1946
        %v1949 = vunpack.c.l.s4 1966171168
        %v1950 = vunpack.c.0.s8 %v1949
        %v1951 = vlaneseq
        %v1952 = vshrl.u32 %v1951, 7
        %v1953 = vsub.s32 %v1950, %v1952
        %v1954 = vrot.slane %v1938, %v1953
        %v1956 = vunpack.c.l.s4 1966171168
        %v1957 = vunpack.c.0.s8 %v1956
        %v1958 = vlaneseq
        %v1959 = vshrl.u32 %v1958, 7
        %v1960 = vsub.s32 %v1957, %v1959
        %v1961 = vrot.slane %v1939, %v1960
        %v1963 = vunpack.c.l.s4 1966171168
        %v1964 = vunpack.c.0.s8 %v1963
        %v1965 = vlaneseq
        %v1966 = vshrl.u32 %v1965, 7
        %v1967 = vsub.s32 %v1964, %v1966
        %v1968 = vrot.slane %v1940, %v1967
        %v1969 = vcombine.high %v1947, %v1947
        %v1970 = vcombine.high %v1954, %v1954
        %v1971 = vcombine.high %v1961, %v1961
        %v1972 = vcombine.high %v1968, %v1968
        %v1973 = vlaneseq
        %v1974 = vshrl.u32 %v1973, 7
        %v1975 = vsub.s32 0, %v1974
        %v1976 = vrot.slane %v1947, %v1975
        %v1977 = vlaneseq
        %v1978 = vshrl.u32 %v1977, 7
        %v1979 = vsub.s32 0, %v1978
        %v1980 = vrot.slane %v1961, %v1979
        %v1981 = vlaneseq
        %v1982 = vshrl.u32 %v1981, 7
        %v1983 = vsub.s32 0, %v1982
        %v1984 = vrot.slane %v1969, %v1983
        %v1985 = vlaneseq
        %v1986 = vshrl.u32 %v1985, 7
        %v1987 = vsub.s32 0, %v1986
        %v1988 = vrot.slane %v1971, %v1987
        %v1989 = vlaneseq
        %v1990 = vshrl.u32 %v1989, 7
        %v1991 = vsub.s32 0, %v1990
        %v1992 = vrot.slane %v1954, %v1991
        %v1993 = vlaneseq
        %v1994 = vshrl.u32 %v1993, 7
        %v1995 = vsub.s32 0, %v1994
        %v1996 = vrot.slane %v1968, %v1995
        %v1997 = vlaneseq
        %v1998 = vshrl.u32 %v1997, 7
        %v1999 = vsub.s32 0, %v1998
        %v2000 = vrot.slane %v1970, %v1999
        %v2001 = vlaneseq
        %v2002 = vshrl.u32 %v2001, 7
        %v2003 = vsub.s32 0, %v2002
        %v2004 = vrot.slane %v1972, %v2003
        %2005 = vrot.lane.b32.xlu0 %v1976, 115
        %v2006 = vpop.permute.xlu0 %2005
        %2007 = vrot.lane.b32.xlu0 %v1980, 115
        %v2008 = vpop.permute.xlu0 %2007
        %2009 = vrot.lane.b32.xlu0 %v1984, 115
        %v2010 = vpop.permute.xlu0 %2009
        %2011 = vrot.lane.b32.xlu0 %v1988, 115
        %v2012 = vpop.permute.xlu0 %2011
        %2013 = vrot.lane.b32.xlu0 %v1992, 115
        %v2014 = vpop.permute.xlu0 %2013
        %2015 = vrot.lane.b32.xlu0 %v1996, 115
        %v2016 = vpop.permute.xlu0 %2015
        %2017 = vrot.lane.b32.xlu0 %v2000, 115
        %v2018 = vpop.permute.xlu0 %2017
        %2019 = vrot.lane.b32.xlu0 %v2004, 115
        %v2020 = vpop.permute.xlu0 %2019
        %2029 = vst.msk [vmem:[%s190 + $0x1e] sm:$0x1] %vm771, %v2006
        %2030 = vst.msk [vmem:[%s190 + $0x3e] sm:$0x1] %vm771, %v2008
        %2031 = vst.msk [vmem:[%s190 + $0x5e] sm:$0x1] %vm771, %v2010
        %2032 = vst.msk [vmem:[%s190 + $0x7e] sm:$0x1] %vm771, %v2012
        %2033 = vst.msk [vmem:[%s190 + $0x9e] sm:$0x1] %vm771, %v2014
        %2034 = vst.msk [vmem:[%s190 + $0xbe] sm:$0x1] %vm771, %v2016
        %2035 = vst.msk [vmem:[%s190 + $0xde] sm:$0x1] %vm771, %v2018
        %2036 = vst.msk [vmem:[%s190 + $0xfe] sm:$0x1] %vm771, %v2020
        %v2037 = vld [vmem:[%s195] sm:$0xff]
        %v2038 = vld [vmem:[%s195 + $0x8] sm:$0xff]
        %v2039 = vld [vmem:[%s195 + $0x10] sm:$0xf]
        %2040 = vset.pattern.permute.xlu0 4
        %2041 = vperm.xlu0 %2040, %v196
        %v2042 = vpop.permute.xlu0 %2041
        %v2044 = vunpack.c.l.s4 839922192
        %v2045 = vunpack.c.0.s8 %v2044
        %v2046 = vlaneseq
        %v2047 = vshrl.u32 %v2046, 7
        %v2048 = vsub.s32 %v2045, %v2047
        %v2049 = vrot.slane %v2042, %v2048
        %v2051 = vmul.f32 %v2037, %v2049
        %v2052 = vmul.f32 %v2038, %v2049
        %v2053 = vmul.f32 %v2039, %v2049
        %2054 = vset.pattern.permute.xlu0 5
        %2055 = vperm.xlu0 %2054, %v196
        %v2056 = vpop.permute.xlu0 %2055
        %v2058 = vunpack.c.l.s4 839922192
        %v2059 = vunpack.c.0.s8 %v2058
        %v2060 = vlaneseq
        %v2061 = vshrl.u32 %v2060, 7
        %v2062 = vsub.s32 %v2059, %v2061
        %v2063 = vrot.slane %v2056, %v2062
        %v2065 = vmul.f32 %v2037, %v2063
        %v2066 = vmul.f32 %v2038, %v2063
        %v2067 = vmul.f32 %v2039, %v2063
        %2071 = vrot.lane.b32.xlu0 %v2065, 127
        %v2072 = vpop.permute.xlu0 %2071
        %2073 = vrot.lane.b32.xlu0 %v2066, 127
        %v2074 = vpop.permute.xlu0 %2073
        %2075 = vrot.lane.b32.xlu0 %v2067, 127
        %v2076 = vpop.permute.xlu0 %2075
        %v2077 = vrot.slane %v2072, 4
        %v2078 = vrot.slane %v2074, 4
        %v2079 = vrot.slane %v2076, 4
        %v2080 = vsel %vm243, %v2077, %v2078
        %v2081 = vsel %vm245, %v2072, %v2080
        %v2082 = vsel %vm243, %v2078, %v2079
        %v2083 = vsel %vm245, %v2074, %v2082
        %v2087 = vadd.f32 %v2051, %v2081
        %v2088 = vadd.f32 %v2052, %v2083
        %v2089 = vadd.f32 %v2053, %v2076
        %2090 = vset.pattern.permute.xlu0 6
        %2091 = vperm.xlu0 %2090, %v196
        %v2092 = vpop.permute.xlu0 %2091
        %v2094 = vunpack.c.l.s4 839922192
        %v2095 = vunpack.c.0.s8 %v2094
        %v2096 = vlaneseq
        %v2097 = vshrl.u32 %v2096, 7
        %v2098 = vsub.s32 %v2095, %v2097
        %v2099 = vrot.slane %v2092, %v2098
        %v2101 = vmul.f32 %v2037, %v2099
        %v2102 = vmul.f32 %v2038, %v2099
        %v2103 = vmul.f32 %v2039, %v2099
        %2107 = vrot.lane.b32.xlu0 %v2101, 126
        %v2108 = vpop.permute.xlu0 %2107
        %2109 = vrot.lane.b32.xlu0 %v2102, 126
        %v2110 = vpop.permute.xlu0 %2109
        %2111 = vrot.lane.b32.xlu0 %v2103, 126
        %v2112 = vpop.permute.xlu0 %2111
        %v2113 = vrot.slane %v2108, 4
        %v2114 = vrot.slane %v2110, 4
        %v2115 = vrot.slane %v2112, 4
        %v2116 = vsel %vm243, %v2113, %v2114
        %v2117 = vsel %vm282, %v2108, %v2116
        %v2118 = vsel %vm243, %v2114, %v2115
        %v2119 = vsel %vm282, %v2110, %v2118
        %v2123 = vadd.f32 %v2087, %v2117
        %v2124 = vadd.f32 %v2088, %v2119
        %v2125 = vadd.f32 %v2089, %v2112
        %2126 = vset.pattern.permute.xlu0 7
        %2127 = vperm.xlu0 %2126, %v196
        %v2128 = vpop.permute.xlu0 %2127
        %v2130 = vunpack.c.l.s4 839922192
        %v2131 = vunpack.c.0.s8 %v2130
        %v2132 = vlaneseq
        %v2133 = vshrl.u32 %v2132, 7
        %v2134 = vsub.s32 %v2131, %v2133
        %v2135 = vrot.slane %v2128, %v2134
        %v2137 = vmul.f32 %v2037, %v2135
        %v2138 = vmul.f32 %v2038, %v2135
        %v2139 = vmul.f32 %v2039, %v2135
        %2143 = vrot.lane.b32.xlu0 %v2137, 125
        %v2144 = vpop.permute.xlu0 %2143
        %2145 = vrot.lane.b32.xlu0 %v2138, 125
        %v2146 = vpop.permute.xlu0 %2145
        %2147 = vrot.lane.b32.xlu0 %v2139, 125
        %v2148 = vpop.permute.xlu0 %2147
        %v2149 = vrot.slane %v2144, 4
        %v2150 = vrot.slane %v2146, 4
        %v2151 = vrot.slane %v2148, 4
        %v2152 = vsel %vm243, %v2149, %v2150
        %v2153 = vsel %vm319, %v2144, %v2152
        %v2154 = vsel %vm243, %v2150, %v2151
        %v2155 = vsel %vm319, %v2146, %v2154
        %v2159 = vadd.f32 %v2123, %v2153
        %v2160 = vadd.f32 %v2124, %v2155
        %v2161 = vadd.f32 %v2125, %v2148
        %2162 = vset.pattern.permute.xlu0 12
        %2163 = vperm.xlu0 %2162, %v196
        %v2164 = vpop.permute.xlu0 %2163
        %v2166 = vunpack.c.l.s4 839922192
        %v2167 = vunpack.c.0.s8 %v2166
        %v2168 = vlaneseq
        %v2169 = vshrl.u32 %v2168, 7
        %v2170 = vsub.s32 %v2167, %v2169
        %v2171 = vrot.slane %v2164, %v2170
        %v2173 = vmul.f32 %v2037, %v2171
        %v2174 = vmul.f32 %v2038, %v2171
        %v2175 = vmul.f32 %v2039, %v2171
        %2179 = vrot.lane.b32.xlu0 %v2173, 93
        %v2180 = vpop.permute.xlu0 %2179
        %2181 = vrot.lane.b32.xlu0 %v2174, 93
        %v2182 = vpop.permute.xlu0 %2181
        %2183 = vrot.lane.b32.xlu0 %v2175, 93
        %v2184 = vpop.permute.xlu0 %2183
        %v2185 = vrot.slane %v2180, 4
        %v2186 = vrot.slane %v2182, 4
        %v2187 = vrot.slane %v2184, 4
        %v2188 = vsel %vm243, %v2185, %v2186
        %v2189 = vsel %vm356, %v2180, %v2188
        %v2190 = vsel %vm243, %v2186, %v2187
        %v2191 = vsel %vm356, %v2182, %v2190
        %v2195 = vadd.f32 %v2159, %v2189
        %v2196 = vadd.f32 %v2160, %v2191
        %v2197 = vadd.f32 %v2161, %v2184
        %2198 = vset.pattern.permute.xlu0 13
        %2199 = vperm.xlu0 %2198, %v196
        %v2200 = vpop.permute.xlu0 %2199
        %v2202 = vunpack.c.l.s4 839922192
        %v2203 = vunpack.c.0.s8 %v2202
        %v2204 = vlaneseq
        %v2205 = vshrl.u32 %v2204, 7
        %v2206 = vsub.s32 %v2203, %v2205
        %v2207 = vrot.slane %v2200, %v2206
        %v2209 = vmul.f32 %v2037, %v2207
        %v2210 = vmul.f32 %v2038, %v2207
        %v2211 = vmul.f32 %v2039, %v2207
        %2215 = vrot.lane.b32.xlu0 %v2209, 92
        %v2216 = vpop.permute.xlu0 %2215
        %2217 = vrot.lane.b32.xlu0 %v2210, 92
        %v2218 = vpop.permute.xlu0 %2217
        %2219 = vrot.lane.b32.xlu0 %v2211, 92
        %v2220 = vpop.permute.xlu0 %2219
        %v2221 = vrot.slane %v2216, 4
        %v2222 = vrot.slane %v2218, 4
        %v2223 = vrot.slane %v2220, 4
        %v2224 = vsel %vm243, %v2221, %v2222
        %v2225 = vsel %vm393, %v2216, %v2224
        %v2226 = vsel %vm243, %v2222, %v2223
        %v2227 = vsel %vm393, %v2218, %v2226
        %v2231 = vadd.f32 %v2195, %v2225
        %v2232 = vadd.f32 %v2196, %v2227
        %v2233 = vadd.f32 %v2197, %v2220
        %2234 = vset.pattern.permute.xlu0 14
        %2235 = vperm.xlu0 %2234, %v196
        %v2236 = vpop.permute.xlu0 %2235
        %v2238 = vunpack.c.l.s4 839922192
        %v2239 = vunpack.c.0.s8 %v2238
        %v2240 = vlaneseq
        %v2241 = vshrl.u32 %v2240, 7
        %v2242 = vsub.s32 %v2239, %v2241
        %v2243 = vrot.slane %v2236, %v2242
        %v2245 = vmul.f32 %v2037, %v2243
        %v2246 = vmul.f32 %v2038, %v2243
        %v2247 = vmul.f32 %v2039, %v2243
        %2251 = vrot.lane.b32.xlu0 %v2245, 91
        %v2252 = vpop.permute.xlu0 %2251
        %2253 = vrot.lane.b32.xlu0 %v2246, 91
        %v2254 = vpop.permute.xlu0 %2253
        %2255 = vrot.lane.b32.xlu0 %v2247, 91
        %v2256 = vpop.permute.xlu0 %2255
        %v2257 = vrot.slane %v2252, 4
        %v2258 = vrot.slane %v2254, 4
        %v2259 = vrot.slane %v2256, 4
        %v2260 = vsel %vm243, %v2257, %v2258
        %v2261 = vsel %vm430, %v2252, %v2260
        %v2262 = vsel %vm243, %v2258, %v2259
        %v2263 = vsel %vm430, %v2254, %v2262
        %v2267 = vadd.f32 %v2231, %v2261
        %v2268 = vadd.f32 %v2232, %v2263
        %v2269 = vadd.f32 %v2233, %v2256
        %2270 = vset.pattern.permute.xlu0 15
        %2271 = vperm.xlu0 %2270, %v196
        %v2272 = vpop.permute.xlu0 %2271
        %v2274 = vunpack.c.l.s4 839922192
        %v2275 = vunpack.c.0.s8 %v2274
        %v2276 = vlaneseq
        %v2277 = vshrl.u32 %v2276, 7
        %v2278 = vsub.s32 %v2275, %v2277
        %v2279 = vrot.slane %v2272, %v2278
        %v2281 = vmul.f32 %v2037, %v2279
        %v2282 = vmul.f32 %v2038, %v2279
        %v2283 = vmul.f32 %v2039, %v2279
        %2287 = vrot.lane.b32.xlu0 %v2281, 90
        %v2288 = vpop.permute.xlu0 %2287
        %2289 = vrot.lane.b32.xlu0 %v2282, 90
        %v2290 = vpop.permute.xlu0 %2289
        %2291 = vrot.lane.b32.xlu0 %v2283, 90
        %v2292 = vpop.permute.xlu0 %2291
        %v2293 = vrot.slane %v2288, 4
        %v2294 = vrot.slane %v2290, 4
        %v2295 = vrot.slane %v2292, 4
        %v2296 = vsel %vm243, %v2293, %v2294
        %v2297 = vsel %vm467, %v2288, %v2296
        %v2298 = vsel %vm243, %v2294, %v2295
        %v2299 = vsel %vm467, %v2290, %v2298
        %v2303 = vadd.f32 %v2267, %v2297
        %v2304 = vadd.f32 %v2268, %v2299
        %v2305 = vadd.f32 %v2269, %v2292
        %v2309 = vcombine.high %v2303, %v2303
        %v2310 = vcombine.high %v2304, %v2304
        %2311 = vrot.lane.b32.xlu0 %v2303, 93
        %v2312 = vpop.permute.xlu0 %2311
        %2313 = vrot.lane.b32.xlu0 %v2309, 93
        %v2314 = vpop.permute.xlu0 %2313
        %2315 = vrot.lane.b32.xlu0 %v2304, 93
        %v2316 = vpop.permute.xlu0 %2315
        %2317 = vrot.lane.b32.xlu0 %v2310, 93
        %v2318 = vpop.permute.xlu0 %2317
        %2319 = vrot.lane.b32.xlu0 %v2305, 93
        %v2320 = vpop.permute.xlu0 %2319
        %v2321 = vsel %vm356, %v2312, %v2314
        %v2322 = vsel %vm356, %v2314, %v2316
        %v2323 = vsel %vm356, %v2316, %v2318
        %v2324 = vsel %vm356, %v2318, %v2320
        %v2325 = vsel %vm243, %v2321, 0
        %v2327 = vsel %vm243, %v2322, 0
        %v2329 = vsel %vm243, %v2323, 0
        %v2331 = vsel %vm243, %v2324, 0
        %v2333 = vsel %vm243, %v2320, 0
        %2335 = vmatprep.subr.mxu0 0.0
        %2336 = vmatpush1.msra.mxu0 0.0
        %2337 = vmatprep.subr.mxu0 0.0
        %2338 = vmatpush1.msra.mxu0 0.0
        %2339 = vmatprep.subr.mxu0 0.0
        %2340 = vmatpush1.msra.mxu0 0.0
        %2341 = vmatprep.subr.mxu0 0.0
        %2342 = vmatpush1.msra.mxu0 0.0
        %2343 = vmatprep.subr.mxu0 0.0
        %2344 = vmatpush1.msra.mxu0 0.0
        %2345 = vmatprep.subr.mxu0 0.0
        %2346 = vmatpush1.msra.mxu0 0.0
        %2347 = vmatprep.subr.mxu0 0.0
        %2348 = vmatpush1.msra.mxu0 0.0
        %2349 = vmatprep.subr.mxu0 0.0
        %2350 = vmatpush1.msra.mxu0 0.0
        %2351 = vmatprep.subr.mxu0 0.0
        %2352 = vmatpush1.msra.mxu0 0.0
        %2353 = vmatprep.subr.mxu0 0.0
        %2354 = vmatpush1.msra.mxu0 0.0
        %2355 = vmatprep.subr.mxu0 0.0
        %2356 = vmatpush1.msra.mxu0 0.0
        %2357 = vmatprep.subr.mxu0 0.0
        %2358 = vmatpush1.msra.mxu0 0.0
        %2359 = vmatprep.subr.mxu0 0.0
        %2360 = vmatpush1.msra.mxu0 0.0
        %2361 = vmatprep.subr.mxu0 0.0
        %2362 = vmatpush1.msra.mxu0 0.0
        %2363 = vmatprep.subr.mxu0 0.0
        %2364 = vmatpush1.msra.mxu0 0.0
        %2365 = vmatprep.subr.mxu0 %v2327
        %2366 = vmatpush1.msra.mxu0 %v2325
        %2367 = vmatprep.subr.mxu0 0.0
        %2368 = vmatpush2.msra.mxu0 0.0
        %2369 = vmatprep.subr.mxu0 0.0
        %2370 = vmatpush2.msra.mxu0 0.0
        %2371 = vmatprep.subr.mxu0 0.0
        %2372 = vmatpush2.msra.mxu0 0.0
        %2373 = vmatprep.subr.mxu0 0.0
        %2374 = vmatpush2.msra.mxu0 0.0
        %2375 = vmatprep.subr.mxu0 0.0
        %2376 = vmatpush2.msra.mxu0 0.0
        %2377 = vmatprep.subr.mxu0 0.0
        %2378 = vmatpush2.msra.mxu0 0.0
        %2379 = vmatprep.subr.mxu0 0.0
        %2380 = vmatpush2.msra.mxu0 0.0
        %2381 = vmatprep.subr.mxu0 0.0
        %2382 = vmatpush2.msra.mxu0 0.0
        %2383 = vmatprep.subr.mxu0 0.0
        %2384 = vmatpush2.msra.mxu0 0.0
        %2385 = vmatprep.subr.mxu0 0.0
        %2386 = vmatpush2.msra.mxu0 0.0
        %2387 = vmatprep.subr.mxu0 0.0
        %2388 = vmatpush2.msra.mxu0 0.0
        %2389 = vmatprep.subr.mxu0 0.0
        %2390 = vmatpush2.msra.mxu0 0.0
        %2391 = vmatprep.subr.mxu0 0.0
        %2392 = vmatpush2.msra.mxu0 0.0
        %2393 = vmatprep.subr.mxu0 0.0
        %2394 = vmatpush2.msra.mxu0 0.0
        %2395 = vmatprep.subr.mxu0 0.0
        %2396 = vmatpush2.msra.mxu0 0.0
        %2397 = vmatprep.subr.mxu0 0.0
        %2398 = vmatpush2.msra.mxu0 0.0
        %2399 = vmatprep.mubr.f32.mxu0 0.0
        %2400 = vmatmul.mubr.f32.gmra.mxu0 %v489
        %v2401 = vpop.f32.mrf.mxu0
        %v2402 = vadd.f32 %v480, %v2401
        %v2403 = vpop.f32.mrf.mxu0
        %v2404 = vadd.f32 %v480, %v2403
        %2405 = vdwg.mxu0
        %2406 = vmatprep.subr.mxu0 0.0
        %2407 = vmatpush1.msra.mxu0 0.0
        %2408 = vmatprep.subr.mxu0 0.0
        %2409 = vmatpush1.msra.mxu0 0.0
        %2410 = vmatprep.subr.mxu0 0.0
        %2411 = vmatpush1.msra.mxu0 0.0
        %2412 = vmatprep.subr.mxu0 0.0
        %2413 = vmatpush1.msra.mxu0 0.0
        %2414 = vmatprep.subr.mxu0 0.0
        %2415 = vmatpush1.msra.mxu0 0.0
        %2416 = vmatprep.subr.mxu0 0.0
        %2417 = vmatpush1.msra.mxu0 0.0
        %2418 = vmatprep.subr.mxu0 0.0
        %2419 = vmatpush1.msra.mxu0 0.0
        %2420 = vmatprep.subr.mxu0 0.0
        %2421 = vmatpush1.msra.mxu0 0.0
        %2422 = vmatprep.subr.mxu0 0.0
        %2423 = vmatpush1.msra.mxu0 0.0
        %2424 = vmatprep.subr.mxu0 0.0
        %2425 = vmatpush1.msra.mxu0 0.0
        %2426 = vmatprep.subr.mxu0 0.0
        %2427 = vmatpush1.msra.mxu0 0.0
        %2428 = vmatprep.subr.mxu0 0.0
        %2429 = vmatpush1.msra.mxu0 0.0
        %2430 = vmatprep.subr.mxu0 0.0
        %2431 = vmatpush1.msra.mxu0 0.0
        %2432 = vmatprep.subr.mxu0 0.0
        %2433 = vmatpush1.msra.mxu0 0.0
        %2434 = vmatprep.subr.mxu0 0.0
        %2435 = vmatpush1.msra.mxu0 0.0
        %2436 = vmatprep.subr.mxu0 %v2331
        %2437 = vmatpush1.msra.mxu0 %v2329
        %2438 = vmatprep.subr.mxu0 0.0
        %2439 = vmatpush2.msra.mxu0 0.0
        %2440 = vmatprep.subr.mxu0 0.0
        %2441 = vmatpush2.msra.mxu0 0.0
        %2442 = vmatprep.subr.mxu0 0.0
        %2443 = vmatpush2.msra.mxu0 0.0
        %2444 = vmatprep.subr.mxu0 0.0
        %2445 = vmatpush2.msra.mxu0 0.0
        %2446 = vmatprep.subr.mxu0 0.0
        %2447 = vmatpush2.msra.mxu0 0.0
        %2448 = vmatprep.subr.mxu0 0.0
        %2449 = vmatpush2.msra.mxu0 0.0
        %2450 = vmatprep.subr.mxu0 0.0
        %2451 = vmatpush2.msra.mxu0 0.0
        %2452 = vmatprep.subr.mxu0 0.0
        %2453 = vmatpush2.msra.mxu0 0.0
        %2454 = vmatprep.subr.mxu0 0.0
        %2455 = vmatpush2.msra.mxu0 0.0
        %2456 = vmatprep.subr.mxu0 0.0
        %2457 = vmatpush2.msra.mxu0 0.0
        %2458 = vmatprep.subr.mxu0 0.0
        %2459 = vmatpush2.msra.mxu0 0.0
        %2460 = vmatprep.subr.mxu0 0.0
        %2461 = vmatpush2.msra.mxu0 0.0
        %2462 = vmatprep.subr.mxu0 0.0
        %2463 = vmatpush2.msra.mxu0 0.0
        %2464 = vmatprep.subr.mxu0 0.0
        %2465 = vmatpush2.msra.mxu0 0.0
        %2466 = vmatprep.subr.mxu0 0.0
        %2467 = vmatpush2.msra.mxu0 0.0
        %2468 = vmatprep.subr.mxu0 0.0
        %2469 = vmatpush2.msra.mxu0 0.0
        %2470 = vmatprep.mubr.f32.mxu0 0.0
        %2471 = vmatmul.mubr.f32.gmra.mxu0 %v489
        %v2472 = vpop.f32.mrf.mxu0
        %v2473 = vadd.f32 %v480, %v2472
        %v2474 = vpop.f32.mrf.mxu0
        %v2475 = vadd.f32 %v480, %v2474
        %2476 = vdwg.mxu0
        %2477 = vmatprep.subr.mxu0 0.0
        %2478 = vmatpush1.msra.mxu0 0.0
        %2479 = vmatprep.subr.mxu0 0.0
        %2480 = vmatpush1.msra.mxu0 0.0
        %2481 = vmatprep.subr.mxu0 0.0
        %2482 = vmatpush1.msra.mxu0 0.0
        %2483 = vmatprep.subr.mxu0 0.0
        %2484 = vmatpush1.msra.mxu0 0.0
        %2485 = vmatprep.subr.mxu0 0.0
        %2486 = vmatpush1.msra.mxu0 0.0
        %2487 = vmatprep.subr.mxu0 0.0
        %2488 = vmatpush1.msra.mxu0 0.0
        %2489 = vmatprep.subr.mxu0 0.0
        %2490 = vmatpush1.msra.mxu0 0.0
        %2491 = vmatprep.subr.mxu0 0.0
        %2492 = vmatpush1.msra.mxu0 0.0
        %2493 = vmatprep.subr.mxu0 0.0
        %2494 = vmatpush1.msra.mxu0 0.0
        %2495 = vmatprep.subr.mxu0 0.0
        %2496 = vmatpush1.msra.mxu0 0.0
        %2497 = vmatprep.subr.mxu0 0.0
        %2498 = vmatpush1.msra.mxu0 0.0
        %2499 = vmatprep.subr.mxu0 0.0
        %2500 = vmatpush1.msra.mxu0 0.0
        %2501 = vmatprep.subr.mxu0 0.0
        %2502 = vmatpush1.msra.mxu0 0.0
        %2503 = vmatprep.subr.mxu0 0.0
        %2504 = vmatpush1.msra.mxu0 0.0
        %2505 = vmatprep.subr.mxu0 0.0
        %2506 = vmatpush1.msra.mxu0 0.0
        %2507 = vmatprep.subr.mxu0 0.0
        %2508 = vmatpush1.msra.mxu0 %v2333
        %2509 = vmatprep.subr.mxu0 0.0
        %2510 = vmatpush2.msra.mxu0 0.0
        %2511 = vmatprep.subr.mxu0 0.0
        %2512 = vmatpush2.msra.mxu0 0.0
        %2513 = vmatprep.subr.mxu0 0.0
        %2514 = vmatpush2.msra.mxu0 0.0
        %2515 = vmatprep.subr.mxu0 0.0
        %2516 = vmatpush2.msra.mxu0 0.0
        %2517 = vmatprep.subr.mxu0 0.0
        %2518 = vmatpush2.msra.mxu0 0.0
        %2519 = vmatprep.subr.mxu0 0.0
        %2520 = vmatpush2.msra.mxu0 0.0
        %2521 = vmatprep.subr.mxu0 0.0
        %2522 = vmatpush2.msra.mxu0 0.0
        %2523 = vmatprep.subr.mxu0 0.0
        %2524 = vmatpush2.msra.mxu0 0.0
        %2525 = vmatprep.subr.mxu0 0.0
        %2526 = vmatpush2.msra.mxu0 0.0
        %2527 = vmatprep.subr.mxu0 0.0
        %2528 = vmatpush2.msra.mxu0 0.0
        %2529 = vmatprep.subr.mxu0 0.0
        %2530 = vmatpush2.msra.mxu0 0.0
        %2531 = vmatprep.subr.mxu0 0.0
        %2532 = vmatpush2.msra.mxu0 0.0
        %2533 = vmatprep.subr.mxu0 0.0
        %2534 = vmatpush2.msra.mxu0 0.0
        %2535 = vmatprep.subr.mxu0 0.0
        %2536 = vmatpush2.msra.mxu0 0.0
        %2537 = vmatprep.subr.mxu0 0.0
        %2538 = vmatpush2.msra.mxu0 0.0
        %2539 = vmatprep.subr.mxu0 0.0
        %2540 = vmatpush2.msra.mxu0 0.0
        %2541 = vmatprep.mubr.f32.mxu0 0.0
        %2542 = vmatmul.mubr.f32.gmra.mxu0 %v489
        %v2543 = vpop.f32.mrf.mxu0
        %v2544 = vadd.f32 %v480, %v2543
        %v2545 = vpop.f32.mrf.mxu0
        %2546 = vdwg.mxu0
        %v2548 = vcombine.high %v2402, %v2402
        %v2550 = vunpack.c.l.s4 1966171168
        %v2551 = vunpack.c.0.s8 %v2550
        %v2552 = vlaneseq
        %v2553 = vshrl.u32 %v2552, 7
        %v2554 = vsub.s32 %v2551, %v2553
        %v2555 = vrot.slane %v2402, %v2554
        %v2557 = vunpack.c.l.s4 1966171168
        %v2558 = vunpack.c.0.s8 %v2557
        %v2559 = vlaneseq
        %v2560 = vshrl.u32 %v2559, 7
        %v2561 = vsub.s32 %v2558, %v2560
        %v2562 = vrot.slane %v2548, %v2561
        %v2563 = vcombine.high %v2555, %v2555
        %v2564 = vcombine.high %v2562, %v2562
        %v2566 = vunpack.c.l.s4 1966171168
        %v2567 = vunpack.c.0.s8 %v2566
        %v2568 = vlaneseq
        %v2569 = vshrl.u32 %v2568, 7
        %v2570 = vsub.s32 %v2567, %v2569
        %v2571 = vrot.slane %v2555, %v2570
        %v2573 = vunpack.c.l.s4 1966171168
        %v2574 = vunpack.c.0.s8 %v2573
        %v2575 = vlaneseq
        %v2576 = vshrl.u32 %v2575, 7
        %v2577 = vsub.s32 %v2574, %v2576
        %v2578 = vrot.slane %v2562, %v2577
        %v2580 = vunpack.c.l.s4 1966171168
        %v2581 = vunpack.c.0.s8 %v2580
        %v2582 = vlaneseq
        %v2583 = vshrl.u32 %v2582, 7
        %v2584 = vsub.s32 %v2581, %v2583
        %v2585 = vrot.slane %v2563, %v2584
        %v2587 = vunpack.c.l.s4 1966171168
        %v2588 = vunpack.c.0.s8 %v2587
        %v2589 = vlaneseq
        %v2590 = vshrl.u32 %v2589, 7
        %v2591 = vsub.s32 %v2588, %v2590
        %v2592 = vrot.slane %v2564, %v2591
        %v2593 = vcombine.high %v2571, %v2571
        %v2594 = vcombine.high %v2578, %v2578
        %v2595 = vcombine.high %v2585, %v2585
        %v2596 = vcombine.high %v2592, %v2592
        %2605 = vst.msk [vmem:[%s190 + $0x1] sm:$0x1] %vm771, %v2571
        %2606 = vst.msk [vmem:[%s190 + $0x21] sm:$0x1] %vm771, %v2585
        %2607 = vst.msk [vmem:[%s190 + $0x41] sm:$0x1] %vm771, %v2593
        %2608 = vst.msk [vmem:[%s190 + $0x61] sm:$0x1] %vm771, %v2595
        %2609 = vst.msk [vmem:[%s190 + $0x81] sm:$0x1] %vm771, %v2578
        %2610 = vst.msk [vmem:[%s190 + $0xa1] sm:$0x1] %vm771, %v2592
        %2611 = vst.msk [vmem:[%s190 + $0xc1] sm:$0x1] %vm771, %v2594
        %2612 = vst.msk [vmem:[%s190 + $0xe1] sm:$0x1] %vm771, %v2596
        %v2613 = vlaneseq
        %v2614 = vshrl.u32 %v2613, 7
        %v2615 = vsub.s32 0, %v2614
        %v2616 = vrot.slane %v2571, %v2615
        %v2617 = vlaneseq
        %v2618 = vshrl.u32 %v2617, 7
        %v2619 = vsub.s32 0, %v2618
        %v2620 = vrot.slane %v2585, %v2619
        %v2621 = vlaneseq
        %v2622 = vshrl.u32 %v2621, 7
        %v2623 = vsub.s32 0, %v2622
        %v2624 = vrot.slane %v2593, %v2623
        %v2625 = vlaneseq
        %v2626 = vshrl.u32 %v2625, 7
        %v2627 = vsub.s32 0, %v2626
        %v2628 = vrot.slane %v2595, %v2627
        %v2629 = vlaneseq
        %v2630 = vshrl.u32 %v2629, 7
        %v2631 = vsub.s32 0, %v2630
        %v2632 = vrot.slane %v2578, %v2631
        %v2633 = vlaneseq
        %v2634 = vshrl.u32 %v2633, 7
        %v2635 = vsub.s32 0, %v2634
        %v2636 = vrot.slane %v2592, %v2635
        %v2637 = vlaneseq
        %v2638 = vshrl.u32 %v2637, 7
        %v2639 = vsub.s32 0, %v2638
        %v2640 = vrot.slane %v2594, %v2639
        %v2641 = vlaneseq
        %v2642 = vshrl.u32 %v2641, 7
        %v2643 = vsub.s32 0, %v2642
        %v2644 = vrot.slane %v2596, %v2643
        %2645 = vrot.lane.b32.xlu0 %v2616, 93
        %v2646 = vpop.permute.xlu0 %2645
        %2647 = vrot.lane.b32.xlu0 %v2620, 93
        %v2648 = vpop.permute.xlu0 %2647
        %2649 = vrot.lane.b32.xlu0 %v2624, 93
        %v2650 = vpop.permute.xlu0 %2649
        %2651 = vrot.lane.b32.xlu0 %v2628, 93
        %v2652 = vpop.permute.xlu0 %2651
        %2653 = vrot.lane.b32.xlu0 %v2632, 93
        %v2654 = vpop.permute.xlu0 %2653
        %2655 = vrot.lane.b32.xlu0 %v2636, 93
        %v2656 = vpop.permute.xlu0 %2655
        %2657 = vrot.lane.b32.xlu0 %v2640, 93
        %v2658 = vpop.permute.xlu0 %2657
        %2659 = vrot.lane.b32.xlu0 %v2644, 93
        %v2660 = vpop.permute.xlu0 %2659
        %2669 = vst.msk [vmem:[%s190 + $0x3] sm:$0x1] %vm771, %v2646
        %2670 = vst.msk [vmem:[%s190 + $0x23] sm:$0x1] %vm771, %v2648
        %2671 = vst.msk [vmem:[%s190 + $0x43] sm:$0x1] %vm771, %v2650
        %2672 = vst.msk [vmem:[%s190 + $0x63] sm:$0x1] %vm771, %v2652
        %2673 = vst.msk [vmem:[%s190 + $0x83] sm:$0x1] %vm771, %v2654
        %2674 = vst.msk [vmem:[%s190 + $0xa3] sm:$0x1] %vm771, %v2656
        %2675 = vst.msk [vmem:[%s190 + $0xc3] sm:$0x1] %vm771, %v2658
        %2676 = vst.msk [vmem:[%s190 + $0xe3] sm:$0x1] %vm771, %v2660
        %2677 = vrot.lane.b32.xlu0 %v2616, 58
        %v2678 = vpop.permute.xlu0 %2677
        %2679 = vrot.lane.b32.xlu0 %v2620, 58
        %v2680 = vpop.permute.xlu0 %2679
        %2681 = vrot.lane.b32.xlu0 %v2624, 58
        %v2682 = vpop.permute.xlu0 %2681
        %2683 = vrot.lane.b32.xlu0 %v2628, 58
        %v2684 = vpop.permute.xlu0 %2683
        %2685 = vrot.lane.b32.xlu0 %v2632, 58
        %v2686 = vpop.permute.xlu0 %2685
        %2687 = vrot.lane.b32.xlu0 %v2636, 58
        %v2688 = vpop.permute.xlu0 %2687
        %2689 = vrot.lane.b32.xlu0 %v2640, 58
        %v2690 = vpop.permute.xlu0 %2689
        %2691 = vrot.lane.b32.xlu0 %v2644, 58
        %v2692 = vpop.permute.xlu0 %2691
        %2701 = vst.msk [vmem:[%s190 + $0x5] sm:$0x1] %vm771, %v2678
        %2702 = vst.msk [vmem:[%s190 + $0x25] sm:$0x1] %vm771, %v2680
        %2703 = vst.msk [vmem:[%s190 + $0x45] sm:$0x1] %vm771, %v2682
        %2704 = vst.msk [vmem:[%s190 + $0x65] sm:$0x1] %vm771, %v2684
        %2705 = vst.msk [vmem:[%s190 + $0x85] sm:$0x1] %vm771, %v2686
        %2706 = vst.msk [vmem:[%s190 + $0xa5] sm:$0x1] %vm771, %v2688
        %2707 = vst.msk [vmem:[%s190 + $0xc5] sm:$0x1] %vm771, %v2690
        %2708 = vst.msk [vmem:[%s190 + $0xe5] sm:$0x1] %vm771, %v2692
        %v2710 = vcombine.low %v2402, %v2404
        %v2711 = vcombine.high %v2402, %v2404
        %v2713 = vunpack.c.l.s4 1966171168
        %v2714 = vunpack.c.0.s8 %v2713
        %v2715 = vlaneseq
        %v2716 = vshrl.u32 %v2715, 7
        %v2717 = vsub.s32 %v2714, %v2716
        %v2718 = vrot.slane %v2710, %v2717
        %v2720 = vunpack.c.l.s4 1966171168
        %v2721 = vunpack.c.0.s8 %v2720
        %v2722 = vlaneseq
        %v2723 = vshrl.u32 %v2722, 7
        %v2724 = vsub.s32 %v2721, %v2723
        %v2725 = vrot.slane %v2711, %v2724
        %v2726 = vcombine.high %v2718, %v2718
        %v2727 = vcombine.high %v2725, %v2725
        %v2729 = vunpack.c.l.s4 1966171168
        %v2730 = vunpack.c.0.s8 %v2729
        %v2731 = vlaneseq
        %v2732 = vshrl.u32 %v2731, 7
        %v2733 = vsub.s32 %v2730, %v2732
        %v2734 = vrot.slane %v2718, %v2733
        %v2736 = vunpack.c.l.s4 1966171168
        %v2737 = vunpack.c.0.s8 %v2736
        %v2738 = vlaneseq
        %v2739 = vshrl.u32 %v2738, 7
        %v2740 = vsub.s32 %v2737, %v2739
        %v2741 = vrot.slane %v2725, %v2740
        %v2743 = vunpack.c.l.s4 1966171168
        %v2744 = vunpack.c.0.s8 %v2743
        %v2745 = vlaneseq
        %v2746 = vshrl.u32 %v2745, 7
        %v2747 = vsub.s32 %v2744, %v2746
        %v2748 = vrot.slane %v2726, %v2747
        %v2750 = vunpack.c.l.s4 1966171168
        %v2751 = vunpack.c.0.s8 %v2750
        %v2752 = vlaneseq
        %v2753 = vshrl.u32 %v2752, 7
        %v2754 = vsub.s32 %v2751, %v2753
        %v2755 = vrot.slane %v2727, %v2754
        %v2756 = vcombine.high %v2734, %v2734
        %v2757 = vcombine.high %v2741, %v2741
        %v2758 = vcombine.high %v2748, %v2748
        %v2759 = vcombine.high %v2755, %v2755
        %v2760 = vlaneseq
        %v2761 = vshrl.u32 %v2760, 7
        %v2762 = vsub.s32 0, %v2761
        %v2763 = vrot.slane %v2734, %v2762
        %v2764 = vlaneseq
        %v2765 = vshrl.u32 %v2764, 7
        %v2766 = vsub.s32 1, %v2765
        %v2767 = vrot.slane %v2734, %v2766
        %v2768 = vlaneseq
        %v2769 = vshrl.u32 %v2768, 7
        %v2770 = vsub.s32 0, %v2769
        %v2771 = vrot.slane %v2748, %v2770
        %v2772 = vlaneseq
        %v2773 = vshrl.u32 %v2772, 7
        %v2774 = vsub.s32 1, %v2773
        %v2775 = vrot.slane %v2748, %v2774
        %v2776 = vlaneseq
        %v2777 = vshrl.u32 %v2776, 7
        %v2778 = vsub.s32 0, %v2777
        %v2779 = vrot.slane %v2756, %v2778
        %v2780 = vlaneseq
        %v2781 = vshrl.u32 %v2780, 7
        %v2782 = vsub.s32 1, %v2781
        %v2783 = vrot.slane %v2756, %v2782
        %v2784 = vlaneseq
        %v2785 = vshrl.u32 %v2784, 7
        %v2786 = vsub.s32 0, %v2785
        %v2787 = vrot.slane %v2758, %v2786
        %v2788 = vlaneseq
        %v2789 = vshrl.u32 %v2788, 7
        %v2790 = vsub.s32 1, %v2789
        %v2791 = vrot.slane %v2758, %v2790
        %v2792 = vlaneseq
        %v2793 = vshrl.u32 %v2792, 7
        %v2794 = vsub.s32 0, %v2793
        %v2795 = vrot.slane %v2741, %v2794
        %v2796 = vlaneseq
        %v2797 = vshrl.u32 %v2796, 7
        %v2798 = vsub.s32 1, %v2797
        %v2799 = vrot.slane %v2741, %v2798
        %v2800 = vlaneseq
        %v2801 = vshrl.u32 %v2800, 7
        %v2802 = vsub.s32 0, %v2801
        %v2803 = vrot.slane %v2755, %v2802
        %v2804 = vlaneseq
        %v2805 = vshrl.u32 %v2804, 7
        %v2806 = vsub.s32 1, %v2805
        %v2807 = vrot.slane %v2755, %v2806
        %v2808 = vlaneseq
        %v2809 = vshrl.u32 %v2808, 7
        %v2810 = vsub.s32 0, %v2809
        %v2811 = vrot.slane %v2757, %v2810
        %v2812 = vlaneseq
        %v2813 = vshrl.u32 %v2812, 7
        %v2814 = vsub.s32 1, %v2813
        %v2815 = vrot.slane %v2757, %v2814
        %v2816 = vlaneseq
        %v2817 = vshrl.u32 %v2816, 7
        %v2818 = vsub.s32 0, %v2817
        %v2819 = vrot.slane %v2759, %v2818
        %v2820 = vlaneseq
        %v2821 = vshrl.u32 %v2820, 7
        %v2822 = vsub.s32 1, %v2821
        %v2823 = vrot.slane %v2759, %v2822
        %2824 = vrot.lane.b32.xlu0 %v2763, 23
        %v2825 = vpop.permute.xlu0 %2824
        %2826 = vrot.lane.b32.xlu0 %v2767, 23
        %v2827 = vpop.permute.xlu0 %2826
        %2828 = vrot.lane.b32.xlu0 %v2771, 23
        %v2829 = vpop.permute.xlu0 %2828
        %2830 = vrot.lane.b32.xlu0 %v2775, 23
        %v2831 = vpop.permute.xlu0 %2830
        %2832 = vrot.lane.b32.xlu0 %v2779, 23
        %v2833 = vpop.permute.xlu0 %2832
        %2834 = vrot.lane.b32.xlu0 %v2783, 23
        %v2835 = vpop.permute.xlu0 %2834
        %2836 = vrot.lane.b32.xlu0 %v2787, 23
        %v2837 = vpop.permute.xlu0 %2836
        %2838 = vrot.lane.b32.xlu0 %v2791, 23
        %v2839 = vpop.permute.xlu0 %2838
        %2840 = vrot.lane.b32.xlu0 %v2795, 23
        %v2841 = vpop.permute.xlu0 %2840
        %2842 = vrot.lane.b32.xlu0 %v2799, 23
        %v2843 = vpop.permute.xlu0 %2842
        %2844 = vrot.lane.b32.xlu0 %v2803, 23
        %v2845 = vpop.permute.xlu0 %2844
        %2846 = vrot.lane.b32.xlu0 %v2807, 23
        %v2847 = vpop.permute.xlu0 %2846
        %2848 = vrot.lane.b32.xlu0 %v2811, 23
        %v2849 = vpop.permute.xlu0 %2848
        %2850 = vrot.lane.b32.xlu0 %v2815, 23
        %v2851 = vpop.permute.xlu0 %2850
        %2852 = vrot.lane.b32.xlu0 %v2819, 23
        %v2853 = vpop.permute.xlu0 %2852
        %2854 = vrot.lane.b32.xlu0 %v2823, 23
        %v2855 = vpop.permute.xlu0 %2854
        %v2856 = vsel %vm1023, %v2825, %v2827
        %v2857 = vsel %vm1023, %v2829, %v2831
        %v2858 = vsel %vm1023, %v2833, %v2835
        %v2859 = vsel %vm1023, %v2837, %v2839
        %v2860 = vsel %vm1023, %v2841, %v2843
        %v2861 = vsel %vm1023, %v2845, %v2847
        %v2862 = vsel %vm1023, %v2849, %v2851
        %v2863 = vsel %vm1023, %v2853, %v2855
        %2872 = vst.msk [vmem:[%s190 + $0x7] sm:$0x1] %vm771, %v2856
        %2873 = vst.msk [vmem:[%s190 + $0x27] sm:$0x1] %vm771, %v2857
        %2874 = vst.msk [vmem:[%s190 + $0x47] sm:$0x1] %vm771, %v2858
        %2875 = vst.msk [vmem:[%s190 + $0x67] sm:$0x1] %vm771, %v2859
        %2876 = vst.msk [vmem:[%s190 + $0x87] sm:$0x1] %vm771, %v2860
        %2877 = vst.msk [vmem:[%s190 + $0xa7] sm:$0x1] %vm771, %v2861
        %2878 = vst.msk [vmem:[%s190 + $0xc7] sm:$0x1] %vm771, %v2862
        %2879 = vst.msk [vmem:[%s190 + $0xe7] sm:$0x1] %vm771, %v2863
        %v2880 = vcombine.high %v2404, %v2404
        %v2882 = vunpack.c.l.s4 1966171168
        %v2883 = vunpack.c.0.s8 %v2882
        %v2884 = vlaneseq
        %v2885 = vshrl.u32 %v2884, 7
        %v2886 = vsub.s32 %v2883, %v2885
        %v2887 = vrot.slane %v2404, %v2886
        %v2889 = vunpack.c.l.s4 1966171168
        %v2890 = vunpack.c.0.s8 %v2889
        %v2891 = vlaneseq
        %v2892 = vshrl.u32 %v2891, 7
        %v2893 = vsub.s32 %v2890, %v2892
        %v2894 = vrot.slane %v2880, %v2893
        %v2895 = vcombine.high %v2887, %v2887
        %v2896 = vcombine.high %v2894, %v2894
        %v2898 = vunpack.c.l.s4 1966171168
        %v2899 = vunpack.c.0.s8 %v2898
        %v2900 = vlaneseq
        %v2901 = vshrl.u32 %v2900, 7
        %v2902 = vsub.s32 %v2899, %v2901
        %v2903 = vrot.slane %v2887, %v2902
        %v2905 = vunpack.c.l.s4 1966171168
        %v2906 = vunpack.c.0.s8 %v2905
        %v2907 = vlaneseq
        %v2908 = vshrl.u32 %v2907, 7
        %v2909 = vsub.s32 %v2906, %v2908
        %v2910 = vrot.slane %v2894, %v2909
        %v2912 = vunpack.c.l.s4 1966171168
        %v2913 = vunpack.c.0.s8 %v2912
        %v2914 = vlaneseq
        %v2915 = vshrl.u32 %v2914, 7
        %v2916 = vsub.s32 %v2913, %v2915
        %v2917 = vrot.slane %v2895, %v2916
        %v2919 = vunpack.c.l.s4 1966171168
        %v2920 = vunpack.c.0.s8 %v2919
        %v2921 = vlaneseq
        %v2922 = vshrl.u32 %v2921, 7
        %v2923 = vsub.s32 %v2920, %v2922
        %v2924 = vrot.slane %v2896, %v2923
        %v2925 = vcombine.high %v2903, %v2903
        %v2926 = vcombine.high %v2910, %v2910
        %v2927 = vcombine.high %v2917, %v2917
        %v2928 = vcombine.high %v2924, %v2924
        %v2929 = vlaneseq
        %v2930 = vshrl.u32 %v2929, 7
        %v2931 = vsub.s32 0, %v2930
        %v2932 = vrot.slane %v2903, %v2931
        %v2933 = vlaneseq
        %v2934 = vshrl.u32 %v2933, 7
        %v2935 = vsub.s32 0, %v2934
        %v2936 = vrot.slane %v2917, %v2935
        %v2937 = vlaneseq
        %v2938 = vshrl.u32 %v2937, 7
        %v2939 = vsub.s32 0, %v2938
        %v2940 = vrot.slane %v2925, %v2939
        %v2941 = vlaneseq
        %v2942 = vshrl.u32 %v2941, 7
        %v2943 = vsub.s32 0, %v2942
        %v2944 = vrot.slane %v2927, %v2943
        %v2945 = vlaneseq
        %v2946 = vshrl.u32 %v2945, 7
        %v2947 = vsub.s32 0, %v2946
        %v2948 = vrot.slane %v2910, %v2947
        %v2949 = vlaneseq
        %v2950 = vshrl.u32 %v2949, 7
        %v2951 = vsub.s32 0, %v2950
        %v2952 = vrot.slane %v2924, %v2951
        %v2953 = vlaneseq
        %v2954 = vshrl.u32 %v2953, 7
        %v2955 = vsub.s32 0, %v2954
        %v2956 = vrot.slane %v2926, %v2955
        %v2957 = vlaneseq
        %v2958 = vshrl.u32 %v2957, 7
        %v2959 = vsub.s32 0, %v2958
        %v2960 = vrot.slane %v2928, %v2959
        %2961 = vrot.lane.b32.xlu0 %v2932, 116
        %v2962 = vpop.permute.xlu0 %2961
        %2963 = vrot.lane.b32.xlu0 %v2936, 116
        %v2964 = vpop.permute.xlu0 %2963
        %2965 = vrot.lane.b32.xlu0 %v2940, 116
        %v2966 = vpop.permute.xlu0 %2965
        %2967 = vrot.lane.b32.xlu0 %v2944, 116
        %v2968 = vpop.permute.xlu0 %2967
        %2969 = vrot.lane.b32.xlu0 %v2948, 116
        %v2970 = vpop.permute.xlu0 %2969
        %2971 = vrot.lane.b32.xlu0 %v2952, 116
        %v2972 = vpop.permute.xlu0 %2971
        %2973 = vrot.lane.b32.xlu0 %v2956, 116
        %v2974 = vpop.permute.xlu0 %2973
        %2975 = vrot.lane.b32.xlu0 %v2960, 116
        %v2976 = vpop.permute.xlu0 %2975
        %2985 = vst.msk [vmem:[%s190 + $0x9] sm:$0x1] %vm771, %v2962
        %2986 = vst.msk [vmem:[%s190 + $0x29] sm:$0x1] %vm771, %v2964
        %2987 = vst.msk [vmem:[%s190 + $0x49] sm:$0x1] %vm771, %v2966
        %2988 = vst.msk [vmem:[%s190 + $0x69] sm:$0x1] %vm771, %v2968
        %2989 = vst.msk [vmem:[%s190 + $0x89] sm:$0x1] %vm771, %v2970
        %2990 = vst.msk [vmem:[%s190 + $0xa9] sm:$0x1] %vm771, %v2972
        %2991 = vst.msk [vmem:[%s190 + $0xc9] sm:$0x1] %vm771, %v2974
        %2992 = vst.msk [vmem:[%s190 + $0xe9] sm:$0x1] %vm771, %v2976
        %2993 = vrot.lane.b32.xlu0 %v2932, 81
        %v2994 = vpop.permute.xlu0 %2993
        %2995 = vrot.lane.b32.xlu0 %v2936, 81
        %v2996 = vpop.permute.xlu0 %2995
        %2997 = vrot.lane.b32.xlu0 %v2940, 81
        %v2998 = vpop.permute.xlu0 %2997
        %2999 = vrot.lane.b32.xlu0 %v2944, 81
        %v3000 = vpop.permute.xlu0 %2999
        %3001 = vrot.lane.b32.xlu0 %v2948, 81
        %v3002 = vpop.permute.xlu0 %3001
        %3003 = vrot.lane.b32.xlu0 %v2952, 81
        %v3004 = vpop.permute.xlu0 %3003
        %3005 = vrot.lane.b32.xlu0 %v2956, 81
        %v3006 = vpop.permute.xlu0 %3005
        %3007 = vrot.lane.b32.xlu0 %v2960, 81
        %v3008 = vpop.permute.xlu0 %3007
        %3017 = vst.msk [vmem:[%s190 + $0xb] sm:$0x1] %vm771, %v2994
        %3018 = vst.msk [vmem:[%s190 + $0x2b] sm:$0x1] %vm771, %v2996
        %3019 = vst.msk [vmem:[%s190 + $0x4b] sm:$0x1] %vm771, %v2998
        %3020 = vst.msk [vmem:[%s190 + $0x6b] sm:$0x1] %vm771, %v3000
        %3021 = vst.msk [vmem:[%s190 + $0x8b] sm:$0x1] %vm771, %v3002
        %3022 = vst.msk [vmem:[%s190 + $0xab] sm:$0x1] %vm771, %v3004
        %3023 = vst.msk [vmem:[%s190 + $0xcb] sm:$0x1] %vm771, %v3006
        %3024 = vst.msk [vmem:[%s190 + $0xeb] sm:$0x1] %vm771, %v3008
        %3025 = vrot.lane.b32.xlu0 %v2932, 46
        %v3026 = vpop.permute.xlu0 %3025
        %3027 = vrot.lane.b32.xlu0 %v2936, 46
        %v3028 = vpop.permute.xlu0 %3027
        %3029 = vrot.lane.b32.xlu0 %v2940, 46
        %v3030 = vpop.permute.xlu0 %3029
        %3031 = vrot.lane.b32.xlu0 %v2944, 46
        %v3032 = vpop.permute.xlu0 %3031
        %3033 = vrot.lane.b32.xlu0 %v2948, 46
        %v3034 = vpop.permute.xlu0 %3033
        %3035 = vrot.lane.b32.xlu0 %v2952, 46
        %v3036 = vpop.permute.xlu0 %3035
        %3037 = vrot.lane.b32.xlu0 %v2956, 46
        %v3038 = vpop.permute.xlu0 %3037
        %3039 = vrot.lane.b32.xlu0 %v2960, 46
        %v3040 = vpop.permute.xlu0 %3039
        %3049 = vst.msk [vmem:[%s190 + $0xd] sm:$0x1] %vm771, %v3026
        %3050 = vst.msk [vmem:[%s190 + $0x2d] sm:$0x1] %vm771, %v3028
        %3051 = vst.msk [vmem:[%s190 + $0x4d] sm:$0x1] %vm771, %v3030
        %3052 = vst.msk [vmem:[%s190 + $0x6d] sm:$0x1] %vm771, %v3032
        %3053 = vst.msk [vmem:[%s190 + $0x8d] sm:$0x1] %vm771, %v3034
        %3054 = vst.msk [vmem:[%s190 + $0xad] sm:$0x1] %vm771, %v3036
        %3055 = vst.msk [vmem:[%s190 + $0xcd] sm:$0x1] %vm771, %v3038
        %3056 = vst.msk [vmem:[%s190 + $0xed] sm:$0x1] %vm771, %v3040
        %v3058 = vcombine.low %v2404, %v2473
        %v3059 = vcombine.high %v2404, %v2473
        %v3061 = vunpack.c.l.s4 1966171168
        %v3062 = vunpack.c.0.s8 %v3061
        %v3063 = vlaneseq
        %v3064 = vshrl.u32 %v3063, 7
        %v3065 = vsub.s32 %v3062, %v3064
        %v3066 = vrot.slane %v3058, %v3065
        %v3068 = vunpack.c.l.s4 1966171168
        %v3069 = vunpack.c.0.s8 %v3068
        %v3070 = vlaneseq
        %v3071 = vshrl.u32 %v3070, 7
        %v3072 = vsub.s32 %v3069, %v3071
        %v3073 = vrot.slane %v3059, %v3072
        %v3074 = vcombine.high %v3066, %v3066
        %v3075 = vcombine.high %v3073, %v3073
        %v3077 = vunpack.c.l.s4 1966171168
        %v3078 = vunpack.c.0.s8 %v3077
        %v3079 = vlaneseq
        %v3080 = vshrl.u32 %v3079, 7
        %v3081 = vsub.s32 %v3078, %v3080
        %v3082 = vrot.slane %v3066, %v3081
        %v3084 = vunpack.c.l.s4 1966171168
        %v3085 = vunpack.c.0.s8 %v3084
        %v3086 = vlaneseq
        %v3087 = vshrl.u32 %v3086, 7
        %v3088 = vsub.s32 %v3085, %v3087
        %v3089 = vrot.slane %v3073, %v3088
        %v3091 = vunpack.c.l.s4 1966171168
        %v3092 = vunpack.c.0.s8 %v3091
        %v3093 = vlaneseq
        %v3094 = vshrl.u32 %v3093, 7
        %v3095 = vsub.s32 %v3092, %v3094
        %v3096 = vrot.slane %v3074, %v3095
        %v3098 = vunpack.c.l.s4 1966171168
        %v3099 = vunpack.c.0.s8 %v3098
        %v3100 = vlaneseq
        %v3101 = vshrl.u32 %v3100, 7
        %v3102 = vsub.s32 %v3099, %v3101
        %v3103 = vrot.slane %v3075, %v3102
        %v3104 = vcombine.high %v3082, %v3082
        %v3105 = vcombine.high %v3089, %v3089
        %v3106 = vcombine.high %v3096, %v3096
        %v3107 = vcombine.high %v3103, %v3103
        %v3108 = vlaneseq
        %v3109 = vshrl.u32 %v3108, 7
        %v3110 = vsub.s32 0, %v3109
        %v3111 = vrot.slane %v3082, %v3110
        %v3112 = vlaneseq
        %v3113 = vshrl.u32 %v3112, 7
        %v3114 = vsub.s32 1, %v3113
        %v3115 = vrot.slane %v3082, %v3114
        %v3116 = vlaneseq
        %v3117 = vshrl.u32 %v3116, 7
        %v3118 = vsub.s32 0, %v3117
        %v3119 = vrot.slane %v3096, %v3118
        %v3120 = vlaneseq
        %v3121 = vshrl.u32 %v3120, 7
        %v3122 = vsub.s32 1, %v3121
        %v3123 = vrot.slane %v3096, %v3122
        %v3124 = vlaneseq
        %v3125 = vshrl.u32 %v3124, 7
        %v3126 = vsub.s32 0, %v3125
        %v3127 = vrot.slane %v3104, %v3126
        %v3128 = vlaneseq
        %v3129 = vshrl.u32 %v3128, 7
        %v3130 = vsub.s32 1, %v3129
        %v3131 = vrot.slane %v3104, %v3130
        %v3132 = vlaneseq
        %v3133 = vshrl.u32 %v3132, 7
        %v3134 = vsub.s32 0, %v3133
        %v3135 = vrot.slane %v3106, %v3134
        %v3136 = vlaneseq
        %v3137 = vshrl.u32 %v3136, 7
        %v3138 = vsub.s32 1, %v3137
        %v3139 = vrot.slane %v3106, %v3138
        %v3140 = vlaneseq
        %v3141 = vshrl.u32 %v3140, 7
        %v3142 = vsub.s32 0, %v3141
        %v3143 = vrot.slane %v3089, %v3142
        %v3144 = vlaneseq
        %v3145 = vshrl.u32 %v3144, 7
        %v3146 = vsub.s32 1, %v3145
        %v3147 = vrot.slane %v3089, %v3146
        %v3148 = vlaneseq
        %v3149 = vshrl.u32 %v3148, 7
        %v3150 = vsub.s32 0, %v3149
        %v3151 = vrot.slane %v3103, %v3150
        %v3152 = vlaneseq
        %v3153 = vshrl.u32 %v3152, 7
        %v3154 = vsub.s32 1, %v3153
        %v3155 = vrot.slane %v3103, %v3154
        %v3156 = vlaneseq
        %v3157 = vshrl.u32 %v3156, 7
        %v3158 = vsub.s32 0, %v3157
        %v3159 = vrot.slane %v3105, %v3158
        %v3160 = vlaneseq
        %v3161 = vshrl.u32 %v3160, 7
        %v3162 = vsub.s32 1, %v3161
        %v3163 = vrot.slane %v3105, %v3162
        %v3164 = vlaneseq
        %v3165 = vshrl.u32 %v3164, 7
        %v3166 = vsub.s32 0, %v3165
        %v3167 = vrot.slane %v3107, %v3166
        %v3168 = vlaneseq
        %v3169 = vshrl.u32 %v3168, 7
        %v3170 = vsub.s32 1, %v3169
        %v3171 = vrot.slane %v3107, %v3170
        %3172 = vrot.lane.b32.xlu0 %v3111, 11
        %v3173 = vpop.permute.xlu0 %3172
        %3174 = vrot.lane.b32.xlu0 %v3115, 11
        %v3175 = vpop.permute.xlu0 %3174
        %3176 = vrot.lane.b32.xlu0 %v3119, 11
        %v3177 = vpop.permute.xlu0 %3176
        %3178 = vrot.lane.b32.xlu0 %v3123, 11
        %v3179 = vpop.permute.xlu0 %3178
        %3180 = vrot.lane.b32.xlu0 %v3127, 11
        %v3181 = vpop.permute.xlu0 %3180
        %3182 = vrot.lane.b32.xlu0 %v3131, 11
        %v3183 = vpop.permute.xlu0 %3182
        %3184 = vrot.lane.b32.xlu0 %v3135, 11
        %v3185 = vpop.permute.xlu0 %3184
        %3186 = vrot.lane.b32.xlu0 %v3139, 11
        %v3187 = vpop.permute.xlu0 %3186
        %3188 = vrot.lane.b32.xlu0 %v3143, 11
        %v3189 = vpop.permute.xlu0 %3188
        %3190 = vrot.lane.b32.xlu0 %v3147, 11
        %v3191 = vpop.permute.xlu0 %3190
        %3192 = vrot.lane.b32.xlu0 %v3151, 11
        %v3193 = vpop.permute.xlu0 %3192
        %3194 = vrot.lane.b32.xlu0 %v3155, 11
        %v3195 = vpop.permute.xlu0 %3194
        %3196 = vrot.lane.b32.xlu0 %v3159, 11
        %v3197 = vpop.permute.xlu0 %3196
        %3198 = vrot.lane.b32.xlu0 %v3163, 11
        %v3199 = vpop.permute.xlu0 %3198
        %3200 = vrot.lane.b32.xlu0 %v3167, 11
        %v3201 = vpop.permute.xlu0 %3200
        %3202 = vrot.lane.b32.xlu0 %v3171, 11
        %v3203 = vpop.permute.xlu0 %3202
        %v3204 = vsel %vm1372, %v3173, %v3175
        %v3205 = vsel %vm1372, %v3177, %v3179
        %v3206 = vsel %vm1372, %v3181, %v3183
        %v3207 = vsel %vm1372, %v3185, %v3187
        %v3208 = vsel %vm1372, %v3189, %v3191
        %v3209 = vsel %vm1372, %v3193, %v3195
        %v3210 = vsel %vm1372, %v3197, %v3199
        %v3211 = vsel %vm1372, %v3201, %v3203
        %3220 = vst.msk [vmem:[%s190 + $0xf] sm:$0x1] %vm771, %v3204
        %3221 = vst.msk [vmem:[%s190 + $0x2f] sm:$0x1] %vm771, %v3205
        %3222 = vst.msk [vmem:[%s190 + $0x4f] sm:$0x1] %vm771, %v3206
        %3223 = vst.msk [vmem:[%s190 + $0x6f] sm:$0x1] %vm771, %v3207
        %3224 = vst.msk [vmem:[%s190 + $0x8f] sm:$0x1] %vm771, %v3208
        %3225 = vst.msk [vmem:[%s190 + $0xaf] sm:$0x1] %vm771, %v3209
        %3226 = vst.msk [vmem:[%s190 + $0xcf] sm:$0x1] %vm771, %v3210
        %3227 = vst.msk [vmem:[%s190 + $0xef] sm:$0x1] %vm771, %v3211
        %v3228 = vcombine.high %v2473, %v2473
        %v3230 = vunpack.c.l.s4 1966171168
        %v3231 = vunpack.c.0.s8 %v3230
        %v3232 = vlaneseq
        %v3233 = vshrl.u32 %v3232, 7
        %v3234 = vsub.s32 %v3231, %v3233
        %v3235 = vrot.slane %v2473, %v3234
        %v3237 = vunpack.c.l.s4 1966171168
        %v3238 = vunpack.c.0.s8 %v3237
        %v3239 = vlaneseq
        %v3240 = vshrl.u32 %v3239, 7
        %v3241 = vsub.s32 %v3238, %v3240
        %v3242 = vrot.slane %v3228, %v3241
        %v3243 = vcombine.high %v3235, %v3235
        %v3244 = vcombine.high %v3242, %v3242
        %v3246 = vunpack.c.l.s4 1966171168
        %v3247 = vunpack.c.0.s8 %v3246
        %v3248 = vlaneseq
        %v3249 = vshrl.u32 %v3248, 7
        %v3250 = vsub.s32 %v3247, %v3249
        %v3251 = vrot.slane %v3235, %v3250
        %v3253 = vunpack.c.l.s4 1966171168
        %v3254 = vunpack.c.0.s8 %v3253
        %v3255 = vlaneseq
        %v3256 = vshrl.u32 %v3255, 7
        %v3257 = vsub.s32 %v3254, %v3256
        %v3258 = vrot.slane %v3242, %v3257
        %v3260 = vunpack.c.l.s4 1966171168
        %v3261 = vunpack.c.0.s8 %v3260
        %v3262 = vlaneseq
        %v3263 = vshrl.u32 %v3262, 7
        %v3264 = vsub.s32 %v3261, %v3263
        %v3265 = vrot.slane %v3243, %v3264
        %v3267 = vunpack.c.l.s4 1966171168
        %v3268 = vunpack.c.0.s8 %v3267
        %v3269 = vlaneseq
        %v3270 = vshrl.u32 %v3269, 7
        %v3271 = vsub.s32 %v3268, %v3270
        %v3272 = vrot.slane %v3244, %v3271
        %v3273 = vcombine.high %v3251, %v3251
        %v3274 = vcombine.high %v3258, %v3258
        %v3275 = vcombine.high %v3265, %v3265
        %v3276 = vcombine.high %v3272, %v3272
        %v3277 = vlaneseq
        %v3278 = vshrl.u32 %v3277, 7
        %v3279 = vsub.s32 0, %v3278
        %v3280 = vrot.slane %v3251, %v3279
        %v3281 = vlaneseq
        %v3282 = vshrl.u32 %v3281, 7
        %v3283 = vsub.s32 0, %v3282
        %v3284 = vrot.slane %v3265, %v3283
        %v3285 = vlaneseq
        %v3286 = vshrl.u32 %v3285, 7
        %v3287 = vsub.s32 0, %v3286
        %v3288 = vrot.slane %v3273, %v3287
        %v3289 = vlaneseq
        %v3290 = vshrl.u32 %v3289, 7
        %v3291 = vsub.s32 0, %v3290
        %v3292 = vrot.slane %v3275, %v3291
        %v3293 = vlaneseq
        %v3294 = vshrl.u32 %v3293, 7
        %v3295 = vsub.s32 0, %v3294
        %v3296 = vrot.slane %v3258, %v3295
        %v3297 = vlaneseq
        %v3298 = vshrl.u32 %v3297, 7
        %v3299 = vsub.s32 0, %v3298
        %v3300 = vrot.slane %v3272, %v3299
        %v3301 = vlaneseq
        %v3302 = vshrl.u32 %v3301, 7
        %v3303 = vsub.s32 0, %v3302
        %v3304 = vrot.slane %v3274, %v3303
        %v3305 = vlaneseq
        %v3306 = vshrl.u32 %v3305, 7
        %v3307 = vsub.s32 0, %v3306
        %v3308 = vrot.slane %v3276, %v3307
        %3309 = vrot.lane.b32.xlu0 %v3280, 104
        %v3310 = vpop.permute.xlu0 %3309
        %3311 = vrot.lane.b32.xlu0 %v3284, 104
        %v3312 = vpop.permute.xlu0 %3311
        %3313 = vrot.lane.b32.xlu0 %v3288, 104
        %v3314 = vpop.permute.xlu0 %3313
        %3315 = vrot.lane.b32.xlu0 %v3292, 104
        %v3316 = vpop.permute.xlu0 %3315
        %3317 = vrot.lane.b32.xlu0 %v3296, 104
        %v3318 = vpop.permute.xlu0 %3317
        %3319 = vrot.lane.b32.xlu0 %v3300, 104
        %v3320 = vpop.permute.xlu0 %3319
        %3321 = vrot.lane.b32.xlu0 %v3304, 104
        %v3322 = vpop.permute.xlu0 %3321
        %3323 = vrot.lane.b32.xlu0 %v3308, 104
        %v3324 = vpop.permute.xlu0 %3323
        %3333 = vst.msk [vmem:[%s190 + $0x11] sm:$0x1] %vm771, %v3310
        %3334 = vst.msk [vmem:[%s190 + $0x31] sm:$0x1] %vm771, %v3312
        %3335 = vst.msk [vmem:[%s190 + $0x51] sm:$0x1] %vm771, %v3314
        %3336 = vst.msk [vmem:[%s190 + $0x71] sm:$0x1] %vm771, %v3316
        %3337 = vst.msk [vmem:[%s190 + $0x91] sm:$0x1] %vm771, %v3318
        %3338 = vst.msk [vmem:[%s190 + $0xb1] sm:$0x1] %vm771, %v3320
        %3339 = vst.msk [vmem:[%s190 + $0xd1] sm:$0x1] %vm771, %v3322
        %3340 = vst.msk [vmem:[%s190 + $0xf1] sm:$0x1] %vm771, %v3324
        %3341 = vrot.lane.b32.xlu0 %v3280, 69
        %v3342 = vpop.permute.xlu0 %3341
        %3343 = vrot.lane.b32.xlu0 %v3284, 69
        %v3344 = vpop.permute.xlu0 %3343
        %3345 = vrot.lane.b32.xlu0 %v3288, 69
        %v3346 = vpop.permute.xlu0 %3345
        %3347 = vrot.lane.b32.xlu0 %v3292, 69
        %v3348 = vpop.permute.xlu0 %3347
        %3349 = vrot.lane.b32.xlu0 %v3296, 69
        %v3350 = vpop.permute.xlu0 %3349
        %3351 = vrot.lane.b32.xlu0 %v3300, 69
        %v3352 = vpop.permute.xlu0 %3351
        %3353 = vrot.lane.b32.xlu0 %v3304, 69
        %v3354 = vpop.permute.xlu0 %3353
        %3355 = vrot.lane.b32.xlu0 %v3308, 69
        %v3356 = vpop.permute.xlu0 %3355
        %3365 = vst.msk [vmem:[%s190 + $0x13] sm:$0x1] %vm771, %v3342
        %3366 = vst.msk [vmem:[%s190 + $0x33] sm:$0x1] %vm771, %v3344
        %3367 = vst.msk [vmem:[%s190 + $0x53] sm:$0x1] %vm771, %v3346
        %3368 = vst.msk [vmem:[%s190 + $0x73] sm:$0x1] %vm771, %v3348
        %3369 = vst.msk [vmem:[%s190 + $0x93] sm:$0x1] %vm771, %v3350
        %3370 = vst.msk [vmem:[%s190 + $0xb3] sm:$0x1] %vm771, %v3352
        %3371 = vst.msk [vmem:[%s190 + $0xd3] sm:$0x1] %vm771, %v3354
        %3372 = vst.msk [vmem:[%s190 + $0xf3] sm:$0x1] %vm771, %v3356
        %3373 = vrot.lane.b32.xlu0 %v3280, 34
        %v3374 = vpop.permute.xlu0 %3373
        %3375 = vrot.lane.b32.xlu0 %v3284, 34
        %v3376 = vpop.permute.xlu0 %3375
        %3377 = vrot.lane.b32.xlu0 %v3288, 34
        %v3378 = vpop.permute.xlu0 %3377
        %3379 = vrot.lane.b32.xlu0 %v3292, 34
        %v3380 = vpop.permute.xlu0 %3379
        %3381 = vrot.lane.b32.xlu0 %v3296, 34
        %v3382 = vpop.permute.xlu0 %3381
        %3383 = vrot.lane.b32.xlu0 %v3300, 34
        %v3384 = vpop.permute.xlu0 %3383
        %3385 = vrot.lane.b32.xlu0 %v3304, 34
        %v3386 = vpop.permute.xlu0 %3385
        %3387 = vrot.lane.b32.xlu0 %v3308, 34
        %v3388 = vpop.permute.xlu0 %3387
        %3397 = vst.msk [vmem:[%s190 + $0x15] sm:$0x1] %vm771, %v3374
        %3398 = vst.msk [vmem:[%s190 + $0x35] sm:$0x1] %vm771, %v3376
        %3399 = vst.msk [vmem:[%s190 + $0x55] sm:$0x1] %vm771, %v3378
        %3400 = vst.msk [vmem:[%s190 + $0x75] sm:$0x1] %vm771, %v3380
        %3401 = vst.msk [vmem:[%s190 + $0x95] sm:$0x1] %vm771, %v3382
        %3402 = vst.msk [vmem:[%s190 + $0xb5] sm:$0x1] %vm771, %v3384
        %3403 = vst.msk [vmem:[%s190 + $0xd5] sm:$0x1] %vm771, %v3386
        %3404 = vst.msk [vmem:[%s190 + $0xf5] sm:$0x1] %vm771, %v3388
        %v3406 = vcombine.high %v2475, %v2475
        %v3408 = vunpack.c.l.s4 1966171168
        %v3409 = vunpack.c.0.s8 %v3408
        %v3410 = vlaneseq
        %v3411 = vshrl.u32 %v3410, 7
        %v3412 = vsub.s32 %v3409, %v3411
        %v3413 = vrot.slane %v2475, %v3412
        %v3415 = vunpack.c.l.s4 1966171168
        %v3416 = vunpack.c.0.s8 %v3415
        %v3417 = vlaneseq
        %v3418 = vshrl.u32 %v3417, 7
        %v3419 = vsub.s32 %v3416, %v3418
        %v3420 = vrot.slane %v3406, %v3419
        %v3421 = vcombine.high %v3413, %v3413
        %v3422 = vcombine.high %v3420, %v3420
        %v3424 = vunpack.c.l.s4 1966171168
        %v3425 = vunpack.c.0.s8 %v3424
        %v3426 = vlaneseq
        %v3427 = vshrl.u32 %v3426, 7
        %v3428 = vsub.s32 %v3425, %v3427
        %v3429 = vrot.slane %v3413, %v3428
        %v3431 = vunpack.c.l.s4 1966171168
        %v3432 = vunpack.c.0.s8 %v3431
        %v3433 = vlaneseq
        %v3434 = vshrl.u32 %v3433, 7
        %v3435 = vsub.s32 %v3432, %v3434
        %v3436 = vrot.slane %v3420, %v3435
        %v3438 = vunpack.c.l.s4 1966171168
        %v3439 = vunpack.c.0.s8 %v3438
        %v3440 = vlaneseq
        %v3441 = vshrl.u32 %v3440, 7
        %v3442 = vsub.s32 %v3439, %v3441
        %v3443 = vrot.slane %v3421, %v3442
        %v3445 = vunpack.c.l.s4 1966171168
        %v3446 = vunpack.c.0.s8 %v3445
        %v3447 = vlaneseq
        %v3448 = vshrl.u32 %v3447, 7
        %v3449 = vsub.s32 %v3446, %v3448
        %v3450 = vrot.slane %v3422, %v3449
        %v3451 = vcombine.high %v3429, %v3429
        %v3452 = vcombine.high %v3436, %v3436
        %v3453 = vcombine.high %v3443, %v3443
        %v3454 = vcombine.high %v3450, %v3450
        %v3455 = vlaneseq
        %v3456 = vshrl.u32 %v3455, 7
        %v3457 = vsub.s32 0, %v3456
        %v3458 = vrot.slane %v3429, %v3457
        %v3459 = vlaneseq
        %v3460 = vshrl.u32 %v3459, 7
        %v3461 = vsub.s32 0, %v3460
        %v3462 = vrot.slane %v3443, %v3461
        %v3463 = vlaneseq
        %v3464 = vshrl.u32 %v3463, 7
        %v3465 = vsub.s32 0, %v3464
        %v3466 = vrot.slane %v3451, %v3465
        %v3467 = vlaneseq
        %v3468 = vshrl.u32 %v3467, 7
        %v3469 = vsub.s32 0, %v3468
        %v3470 = vrot.slane %v3453, %v3469
        %v3471 = vlaneseq
        %v3472 = vshrl.u32 %v3471, 7
        %v3473 = vsub.s32 0, %v3472
        %v3474 = vrot.slane %v3436, %v3473
        %v3475 = vlaneseq
        %v3476 = vshrl.u32 %v3475, 7
        %v3477 = vsub.s32 0, %v3476
        %v3478 = vrot.slane %v3450, %v3477
        %v3479 = vlaneseq
        %v3480 = vshrl.u32 %v3479, 7
        %v3481 = vsub.s32 0, %v3480
        %v3482 = vrot.slane %v3452, %v3481
        %v3483 = vlaneseq
        %v3484 = vshrl.u32 %v3483, 7
        %v3485 = vsub.s32 0, %v3484
        %v3486 = vrot.slane %v3454, %v3485
        %3487 = vrot.lane.b32.xlu0 %v3458, 127
        %v3488 = vpop.permute.xlu0 %3487
        %3489 = vrot.lane.b32.xlu0 %v3462, 127
        %v3490 = vpop.permute.xlu0 %3489
        %3491 = vrot.lane.b32.xlu0 %v3466, 127
        %v3492 = vpop.permute.xlu0 %3491
        %3493 = vrot.lane.b32.xlu0 %v3470, 127
        %v3494 = vpop.permute.xlu0 %3493
        %3495 = vrot.lane.b32.xlu0 %v3474, 127
        %v3496 = vpop.permute.xlu0 %3495
        %3497 = vrot.lane.b32.xlu0 %v3478, 127
        %v3498 = vpop.permute.xlu0 %3497
        %3499 = vrot.lane.b32.xlu0 %v3482, 127
        %v3500 = vpop.permute.xlu0 %3499
        %3501 = vrot.lane.b32.xlu0 %v3486, 127
        %v3502 = vpop.permute.xlu0 %3501
        %3511 = vst.msk [vmem:[%s190 + $0x17] sm:$0x1] %vm771, %v3488
        %3512 = vst.msk [vmem:[%s190 + $0x37] sm:$0x1] %vm771, %v3490
        %3513 = vst.msk [vmem:[%s190 + $0x57] sm:$0x1] %vm771, %v3492
        %3514 = vst.msk [vmem:[%s190 + $0x77] sm:$0x1] %vm771, %v3494
        %3515 = vst.msk [vmem:[%s190 + $0x97] sm:$0x1] %vm771, %v3496
        %3516 = vst.msk [vmem:[%s190 + $0xb7] sm:$0x1] %vm771, %v3498
        %3517 = vst.msk [vmem:[%s190 + $0xd7] sm:$0x1] %vm771, %v3500
        %3518 = vst.msk [vmem:[%s190 + $0xf7] sm:$0x1] %vm771, %v3502
        %3519 = vrot.lane.b32.xlu0 %v3458, 92
        %v3520 = vpop.permute.xlu0 %3519
        %3521 = vrot.lane.b32.xlu0 %v3462, 92
        %v3522 = vpop.permute.xlu0 %3521
        %3523 = vrot.lane.b32.xlu0 %v3466, 92
        %v3524 = vpop.permute.xlu0 %3523
        %3525 = vrot.lane.b32.xlu0 %v3470, 92
        %v3526 = vpop.permute.xlu0 %3525
        %3527 = vrot.lane.b32.xlu0 %v3474, 92
        %v3528 = vpop.permute.xlu0 %3527
        %3529 = vrot.lane.b32.xlu0 %v3478, 92
        %v3530 = vpop.permute.xlu0 %3529
        %3531 = vrot.lane.b32.xlu0 %v3482, 92
        %v3532 = vpop.permute.xlu0 %3531
        %3533 = vrot.lane.b32.xlu0 %v3486, 92
        %v3534 = vpop.permute.xlu0 %3533
        %3543 = vst.msk [vmem:[%s190 + $0x19] sm:$0x1] %vm771, %v3520
        %3544 = vst.msk [vmem:[%s190 + $0x39] sm:$0x1] %vm771, %v3522
        %3545 = vst.msk [vmem:[%s190 + $0x59] sm:$0x1] %vm771, %v3524
        %3546 = vst.msk [vmem:[%s190 + $0x79] sm:$0x1] %vm771, %v3526
        %3547 = vst.msk [vmem:[%s190 + $0x99] sm:$0x1] %vm771, %v3528
        %3548 = vst.msk [vmem:[%s190 + $0xb9] sm:$0x1] %vm771, %v3530
        %3549 = vst.msk [vmem:[%s190 + $0xd9] sm:$0x1] %vm771, %v3532
        %3550 = vst.msk [vmem:[%s190 + $0xf9] sm:$0x1] %vm771, %v3534
        %3551 = vrot.lane.b32.xlu0 %v3458, 57
        %v3552 = vpop.permute.xlu0 %3551
        %3553 = vrot.lane.b32.xlu0 %v3462, 57
        %v3554 = vpop.permute.xlu0 %3553
        %3555 = vrot.lane.b32.xlu0 %v3466, 57
        %v3556 = vpop.permute.xlu0 %3555
        %3557 = vrot.lane.b32.xlu0 %v3470, 57
        %v3558 = vpop.permute.xlu0 %3557
        %3559 = vrot.lane.b32.xlu0 %v3474, 57
        %v3560 = vpop.permute.xlu0 %3559
        %3561 = vrot.lane.b32.xlu0 %v3478, 57
        %v3562 = vpop.permute.xlu0 %3561
        %3563 = vrot.lane.b32.xlu0 %v3482, 57
        %v3564 = vpop.permute.xlu0 %3563
        %3565 = vrot.lane.b32.xlu0 %v3486, 57
        %v3566 = vpop.permute.xlu0 %3565
        %3575 = vst.msk [vmem:[%s190 + $0x1b] sm:$0x1] %vm771, %v3552
        %3576 = vst.msk [vmem:[%s190 + $0x3b] sm:$0x1] %vm771, %v3554
        %3577 = vst.msk [vmem:[%s190 + $0x5b] sm:$0x1] %vm771, %v3556
        %3578 = vst.msk [vmem:[%s190 + $0x7b] sm:$0x1] %vm771, %v3558
        %3579 = vst.msk [vmem:[%s190 + $0x9b] sm:$0x1] %vm771, %v3560
        %3580 = vst.msk [vmem:[%s190 + $0xbb] sm:$0x1] %vm771, %v3562
        %3581 = vst.msk [vmem:[%s190 + $0xdb] sm:$0x1] %vm771, %v3564
        %3582 = vst.msk [vmem:[%s190 + $0xfb] sm:$0x1] %vm771, %v3566
        %v3584 = vcombine.low %v2475, %v2544
        %v3585 = vcombine.high %v2475, %v2544
        %v3587 = vunpack.c.l.s4 1966171168
        %v3588 = vunpack.c.0.s8 %v3587
        %v3589 = vlaneseq
        %v3590 = vshrl.u32 %v3589, 7
        %v3591 = vsub.s32 %v3588, %v3590
        %v3592 = vrot.slane %v3584, %v3591
        %v3594 = vunpack.c.l.s4 1966171168
        %v3595 = vunpack.c.0.s8 %v3594
        %v3596 = vlaneseq
        %v3597 = vshrl.u32 %v3596, 7
        %v3598 = vsub.s32 %v3595, %v3597
        %v3599 = vrot.slane %v3585, %v3598
        %v3600 = vcombine.high %v3592, %v3592
        %v3601 = vcombine.high %v3599, %v3599
        %v3603 = vunpack.c.l.s4 1966171168
        %v3604 = vunpack.c.0.s8 %v3603
        %v3605 = vlaneseq
        %v3606 = vshrl.u32 %v3605, 7
        %v3607 = vsub.s32 %v3604, %v3606
        %v3608 = vrot.slane %v3592, %v3607
        %v3610 = vunpack.c.l.s4 1966171168
        %v3611 = vunpack.c.0.s8 %v3610
        %v3612 = vlaneseq
        %v3613 = vshrl.u32 %v3612, 7
        %v3614 = vsub.s32 %v3611, %v3613
        %v3615 = vrot.slane %v3599, %v3614
        %v3617 = vunpack.c.l.s4 1966171168
        %v3618 = vunpack.c.0.s8 %v3617
        %v3619 = vlaneseq
        %v3620 = vshrl.u32 %v3619, 7
        %v3621 = vsub.s32 %v3618, %v3620
        %v3622 = vrot.slane %v3600, %v3621
        %v3624 = vunpack.c.l.s4 1966171168
        %v3625 = vunpack.c.0.s8 %v3624
        %v3626 = vlaneseq
        %v3627 = vshrl.u32 %v3626, 7
        %v3628 = vsub.s32 %v3625, %v3627
        %v3629 = vrot.slane %v3601, %v3628
        %v3630 = vcombine.high %v3608, %v3608
        %v3631 = vcombine.high %v3615, %v3615
        %v3632 = vcombine.high %v3622, %v3622
        %v3633 = vcombine.high %v3629, %v3629
        %v3634 = vlaneseq
        %v3635 = vshrl.u32 %v3634, 7
        %v3636 = vsub.s32 0, %v3635
        %v3637 = vrot.slane %v3608, %v3636
        %v3638 = vlaneseq
        %v3639 = vshrl.u32 %v3638, 7
        %v3640 = vsub.s32 1, %v3639
        %v3641 = vrot.slane %v3608, %v3640
        %v3642 = vlaneseq
        %v3643 = vshrl.u32 %v3642, 7
        %v3644 = vsub.s32 0, %v3643
        %v3645 = vrot.slane %v3622, %v3644
        %v3646 = vlaneseq
        %v3647 = vshrl.u32 %v3646, 7
        %v3648 = vsub.s32 1, %v3647
        %v3649 = vrot.slane %v3622, %v3648
        %v3650 = vlaneseq
        %v3651 = vshrl.u32 %v3650, 7
        %v3652 = vsub.s32 0, %v3651
        %v3653 = vrot.slane %v3630, %v3652
        %v3654 = vlaneseq
        %v3655 = vshrl.u32 %v3654, 7
        %v3656 = vsub.s32 1, %v3655
        %v3657 = vrot.slane %v3630, %v3656
        %v3658 = vlaneseq
        %v3659 = vshrl.u32 %v3658, 7
        %v3660 = vsub.s32 0, %v3659
        %v3661 = vrot.slane %v3632, %v3660
        %v3662 = vlaneseq
        %v3663 = vshrl.u32 %v3662, 7
        %v3664 = vsub.s32 1, %v3663
        %v3665 = vrot.slane %v3632, %v3664
        %v3666 = vlaneseq
        %v3667 = vshrl.u32 %v3666, 7
        %v3668 = vsub.s32 0, %v3667
        %v3669 = vrot.slane %v3615, %v3668
        %v3670 = vlaneseq
        %v3671 = vshrl.u32 %v3670, 7
        %v3672 = vsub.s32 1, %v3671
        %v3673 = vrot.slane %v3615, %v3672
        %v3674 = vlaneseq
        %v3675 = vshrl.u32 %v3674, 7
        %v3676 = vsub.s32 0, %v3675
        %v3677 = vrot.slane %v3629, %v3676
        %v3678 = vlaneseq
        %v3679 = vshrl.u32 %v3678, 7
        %v3680 = vsub.s32 1, %v3679
        %v3681 = vrot.slane %v3629, %v3680
        %v3682 = vlaneseq
        %v3683 = vshrl.u32 %v3682, 7
        %v3684 = vsub.s32 0, %v3683
        %v3685 = vrot.slane %v3631, %v3684
        %v3686 = vlaneseq
        %v3687 = vshrl.u32 %v3686, 7
        %v3688 = vsub.s32 1, %v3687
        %v3689 = vrot.slane %v3631, %v3688
        %v3690 = vlaneseq
        %v3691 = vshrl.u32 %v3690, 7
        %v3692 = vsub.s32 0, %v3691
        %v3693 = vrot.slane %v3633, %v3692
        %v3694 = vlaneseq
        %v3695 = vshrl.u32 %v3694, 7
        %v3696 = vsub.s32 1, %v3695
        %v3697 = vrot.slane %v3633, %v3696
        %3698 = vrot.lane.b32.xlu0 %v3637, 22
        %v3699 = vpop.permute.xlu0 %3698
        %3700 = vrot.lane.b32.xlu0 %v3641, 22
        %v3701 = vpop.permute.xlu0 %3700
        %3702 = vrot.lane.b32.xlu0 %v3645, 22
        %v3703 = vpop.permute.xlu0 %3702
        %3704 = vrot.lane.b32.xlu0 %v3649, 22
        %v3705 = vpop.permute.xlu0 %3704
        %3706 = vrot.lane.b32.xlu0 %v3653, 22
        %v3707 = vpop.permute.xlu0 %3706
        %3708 = vrot.lane.b32.xlu0 %v3657, 22
        %v3709 = vpop.permute.xlu0 %3708
        %3710 = vrot.lane.b32.xlu0 %v3661, 22
        %v3711 = vpop.permute.xlu0 %3710
        %3712 = vrot.lane.b32.xlu0 %v3665, 22
        %v3713 = vpop.permute.xlu0 %3712
        %3714 = vrot.lane.b32.xlu0 %v3669, 22
        %v3715 = vpop.permute.xlu0 %3714
        %3716 = vrot.lane.b32.xlu0 %v3673, 22
        %v3717 = vpop.permute.xlu0 %3716
        %3718 = vrot.lane.b32.xlu0 %v3677, 22
        %v3719 = vpop.permute.xlu0 %3718
        %3720 = vrot.lane.b32.xlu0 %v3681, 22
        %v3721 = vpop.permute.xlu0 %3720
        %3722 = vrot.lane.b32.xlu0 %v3685, 22
        %v3723 = vpop.permute.xlu0 %3722
        %3724 = vrot.lane.b32.xlu0 %v3689, 22
        %v3725 = vpop.permute.xlu0 %3724
        %3726 = vrot.lane.b32.xlu0 %v3693, 22
        %v3727 = vpop.permute.xlu0 %3726
        %3728 = vrot.lane.b32.xlu0 %v3697, 22
        %v3729 = vpop.permute.xlu0 %3728
        %v3730 = vsel %vm1899, %v3699, %v3701
        %v3731 = vsel %vm1899, %v3703, %v3705
        %v3732 = vsel %vm1899, %v3707, %v3709
        %v3733 = vsel %vm1899, %v3711, %v3713
        %v3734 = vsel %vm1899, %v3715, %v3717
        %v3735 = vsel %vm1899, %v3719, %v3721
        %v3736 = vsel %vm1899, %v3723, %v3725
        %v3737 = vsel %vm1899, %v3727, %v3729
        %3746 = vst.msk [vmem:[%s190 + $0x1d] sm:$0x1] %vm771, %v3730
        %3747 = vst.msk [vmem:[%s190 + $0x3d] sm:$0x1] %vm771, %v3731
        %3748 = vst.msk [vmem:[%s190 + $0x5d] sm:$0x1] %vm771, %v3732
        %3749 = vst.msk [vmem:[%s190 + $0x7d] sm:$0x1] %vm771, %v3733
        %3750 = vst.msk [vmem:[%s190 + $0x9d] sm:$0x1] %vm771, %v3734
        %3751 = vst.msk [vmem:[%s190 + $0xbd] sm:$0x1] %vm771, %v3735
        %3752 = vst.msk [vmem:[%s190 + $0xdd] sm:$0x1] %vm771, %v3736
        %3753 = vst.msk [vmem:[%s190 + $0xfd] sm:$0x1] %vm771, %v3737
        %v3754 = vcombine.high %v2544, %v2544
        %v3756 = vunpack.c.l.s4 1966171168
        %v3757 = vunpack.c.0.s8 %v3756
        %v3758 = vlaneseq
        %v3759 = vshrl.u32 %v3758, 7
        %v3760 = vsub.s32 %v3757, %v3759
        %v3761 = vrot.slane %v2544, %v3760
        %v3763 = vunpack.c.l.s4 1966171168
        %v3764 = vunpack.c.0.s8 %v3763
        %v3765 = vlaneseq
        %v3766 = vshrl.u32 %v3765, 7
        %v3767 = vsub.s32 %v3764, %v3766
        %v3768 = vrot.slane %v3754, %v3767
        %v3769 = vcombine.high %v3761, %v3761
        %v3770 = vcombine.high %v3768, %v3768
        %v3772 = vunpack.c.l.s4 1966171168
        %v3773 = vunpack.c.0.s8 %v3772
        %v3774 = vlaneseq
        %v3775 = vshrl.u32 %v3774, 7
        %v3776 = vsub.s32 %v3773, %v3775
        %v3777 = vrot.slane %v3761, %v3776
        %v3779 = vunpack.c.l.s4 1966171168
        %v3780 = vunpack.c.0.s8 %v3779
        %v3781 = vlaneseq
        %v3782 = vshrl.u32 %v3781, 7
        %v3783 = vsub.s32 %v3780, %v3782
        %v3784 = vrot.slane %v3768, %v3783
        %v3786 = vunpack.c.l.s4 1966171168
        %v3787 = vunpack.c.0.s8 %v3786
        %v3788 = vlaneseq
        %v3789 = vshrl.u32 %v3788, 7
        %v3790 = vsub.s32 %v3787, %v3789
        %v3791 = vrot.slane %v3769, %v3790
        %v3793 = vunpack.c.l.s4 1966171168
        %v3794 = vunpack.c.0.s8 %v3793
        %v3795 = vlaneseq
        %v3796 = vshrl.u32 %v3795, 7
        %v3797 = vsub.s32 %v3794, %v3796
        %v3798 = vrot.slane %v3770, %v3797
        %v3799 = vcombine.high %v3777, %v3777
        %v3800 = vcombine.high %v3784, %v3784
        %v3801 = vcombine.high %v3791, %v3791
        %v3802 = vcombine.high %v3798, %v3798
        %v3803 = vlaneseq
        %v3804 = vshrl.u32 %v3803, 7
        %v3805 = vsub.s32 0, %v3804
        %v3806 = vrot.slane %v3777, %v3805
        %v3807 = vlaneseq
        %v3808 = vshrl.u32 %v3807, 7
        %v3809 = vsub.s32 0, %v3808
        %v3810 = vrot.slane %v3791, %v3809
        %v3811 = vlaneseq
        %v3812 = vshrl.u32 %v3811, 7
        %v3813 = vsub.s32 0, %v3812
        %v3814 = vrot.slane %v3799, %v3813
        %v3815 = vlaneseq
        %v3816 = vshrl.u32 %v3815, 7
        %v3817 = vsub.s32 0, %v3816
        %v3818 = vrot.slane %v3801, %v3817
        %v3819 = vlaneseq
        %v3820 = vshrl.u32 %v3819, 7
        %v3821 = vsub.s32 0, %v3820
        %v3822 = vrot.slane %v3784, %v3821
        %v3823 = vlaneseq
        %v3824 = vshrl.u32 %v3823, 7
        %v3825 = vsub.s32 0, %v3824
        %v3826 = vrot.slane %v3798, %v3825
        %v3827 = vlaneseq
        %v3828 = vshrl.u32 %v3827, 7
        %v3829 = vsub.s32 0, %v3828
        %v3830 = vrot.slane %v3800, %v3829
        %v3831 = vlaneseq
        %v3832 = vshrl.u32 %v3831, 7
        %v3833 = vsub.s32 0, %v3832
        %v3834 = vrot.slane %v3802, %v3833
        %3835 = vrot.lane.b32.xlu0 %v3806, 115
        %v3836 = vpop.permute.xlu0 %3835
        %3837 = vrot.lane.b32.xlu0 %v3810, 115
        %v3838 = vpop.permute.xlu0 %3837
        %3839 = vrot.lane.b32.xlu0 %v3814, 115
        %v3840 = vpop.permute.xlu0 %3839
        %3841 = vrot.lane.b32.xlu0 %v3818, 115
        %v3842 = vpop.permute.xlu0 %3841
        %3843 = vrot.lane.b32.xlu0 %v3822, 115
        %v3844 = vpop.permute.xlu0 %3843
        %3845 = vrot.lane.b32.xlu0 %v3826, 115
        %v3846 = vpop.permute.xlu0 %3845
        %3847 = vrot.lane.b32.xlu0 %v3830, 115
        %v3848 = vpop.permute.xlu0 %3847
        %3849 = vrot.lane.b32.xlu0 %v3834, 115
        %v3850 = vpop.permute.xlu0 %3849
        %3859 = vst.msk [vmem:[%s190 + $0x1f] sm:$0x1] %vm771, %v3836
        %3860 = vst.msk [vmem:[%s190 + $0x3f] sm:$0x1] %vm771, %v3838
        %3861 = vst.msk [vmem:[%s190 + $0x5f] sm:$0x1] %vm771, %v3840
        %3862 = vst.msk [vmem:[%s190 + $0x7f] sm:$0x1] %vm771, %v3842
        %3863 = vst.msk [vmem:[%s190 + $0x9f] sm:$0x1] %vm771, %v3844
        %3864 = vst.msk [vmem:[%s190 + $0xbf] sm:$0x1] %vm771, %v3846
        %3865 = vst.msk [vmem:[%s190 + $0xdf] sm:$0x1] %vm771, %v3848
        %3866 = vst.msk [vmem:[%s190 + $0xff] sm:$0x1] %vm771, %v3850
        %s3867 = sand.u32 %s115, 1
        %s3868 = scalar_lea.sflag [#allocation3], %s3867
        %s3869 = sand.u32 %s115, 1
        %s3870 = smul.addr %s3869, 256
        %s3871 = scalar_lea.vmem [#allocation2], %s3870
        // Predicated region
        $region37: #{dsc_conv_transpose2d.1} parent=35 // pred_check
          %p3872 = pneg %p125
        $region38: #{dsc_conv_transpose2d.1} parent=35 // pred_check_branch
          %3874 = sbr.rel (%p3872) target = $region40
        $region39: #{dsc_conv_transpose2d.1} parent=35 // pred_region
          %s3876 = ssub.s32 4096, 4096
          %3877 = vsyncadd %s3868, %s3876
          %s3878 = smul.addr %s18, 32
          %s3879 = smul.addr %s3878, 128
          %s3880 = scalar_lea.hbm %s4, %s3879
          %s3881 = sshll.u32 %s3871, 4
          %s3882 = int_to_ptr.vmem [resolvable:$true] %s3881
          %3887 = dma.vmem_to_hbm [thread:$0]  %s3882, 4096, %s3880, %s3868, 128, 128, 8
        $region40: #{dsc_conv_transpose2d.1} parent=35 // pred_fallthru
          _
      $region36: #{dsc_conv_transpose2d.1} parent=5 // pred_fallthru
        _
      %p3888 = scmp.le.s32.totalorder 2, %s13
      // Predicated region
      $region41: #{dsc_conv_transpose2d.1} parent=5 // pred_check
        %p3889 = pneg %p3888
      $region42: #{dsc_conv_transpose2d.1} parent=5 // pred_check_branch
        %3891 = sbr.rel (%p3889) target = $region44
      $region43: #{dsc_conv_transpose2d.1} parent=5 // pred_region
        %s3892 = ssub.s32 %s13, 2
        // Predicated region
        $region45: #{dsc_conv_transpose2d.1} parent=43 // pred_check
          %p3893 = pneg %p131
        $region46: #{dsc_conv_transpose2d.1} parent=43 // pred_check_branch
          %3895 = sbr.rel (%p3893) target = $region48
        $region47: #{dsc_conv_transpose2d.1} parent=43 // pred_region
          %s3896 = sand.u32 %s116, 1
          %s3897 = scalar_lea.sflag [#allocation3], %s3896
          %s3898 = sand.u32 %s116, 1
          %s3899 = smul.addr %s3898, 256
          %s3900 = scalar_lea.vmem [#allocation2], %s3899
          %3901 = dma.done %s3897, 4096
        $region48: #{dsc_conv_transpose2d.1} parent=43 // pred_fallthru
          _
      $region44: #{dsc_conv_transpose2d.1} parent=5 // pred_fallthru
        _
    $region6: #{dsc_conv_transpose2d.1} parent=1 // loop_footer
      %s17 = sadd.s32 1, %s13
    $region7: #{dsc_conv_transpose2d.1} parent=1 // loop_footer_branch
      %12 = sbr.rel target = $region3
    $region8: #{dsc_conv_transpose2d.1} parent=1 // loop_exit
      _
    %3902 = vsyncpa [#allocation3], 1
    %s3903 = scalar_lea.sflag [#allocation3], 1
    %3904 = vsyncpa %s3903, 1

</llo_original>
